<compile_context>
chip_gen: v7x
topology: tpu7x:2x2x1
jax: 0.10.0
libtpu: 0.0.40
codegen_flags: <defaults>
</compile_context>

<pallas_src>
import jax
import jax.numpy as jnp
import numpy as np
from jax.experimental import pallas as pl
from jax.experimental.pallas import tpu as pltpu

_EPS = 1e-5
_VMEM_SPEC = pl.BlockSpec(memory_space=pltpu.MemorySpace.VMEM)
_ANY_SPEC = pl.BlockSpec(memory_space=pl.ANY)


# ------------------------------ fused kernel ------------------------------- #

def _stl_fused_kernel(x_ref, w1_ref, w2_hbm, w3_hbm, w4_ref, wo_ref, vec_ref,
                      o_ref,
                      w2_buf, w3_buf, sems):
    # Kick off the big weight streams immediately so they overlap with fc1/bn1
    # (and fc2) compute.  (Chunked emit_pipeline over K would give finer-grained
    # overlap but is unnecessary at this size.)
    cp2 = pltpu.make_async_copy(w2_hbm, w2_buf, sems.at[0])
    cp3 = pltpu.make_async_copy(w3_hbm, w3_buf, sems.at[1])
    cp2.start()
    cp3.start()

    n3 = w3_buf.shape[1]   # 512
    n4 = w4_ref.shape[1]   # 128
    no = wo_ref.shape[1]   # 2

    def bn_relu_bf16(y, g, be):
        # nn.BatchNorm1d training mode: batch mean, biased variance, eps=1e-5,
        # affine, then ReLU.  Folded: one reduction pair + one fused y*s + t pass.
        m = jnp.mean(y, axis=0, keepdims=True)
        ms = jnp.mean(y * y, axis=0, keepdims=True)
        v = ms - m * m
        s = g * jax.lax.rsqrt(v + _EPS)
        t = be - m * s
        return jnp.maximum(y * s + t, 0.0).astype(jnp.bfloat16)

    xb = x_ref[...].astype(jnp.bfloat16)

    # fc1 + bn1 + relu1   (pre-BN bias is absorbed by the mean subtraction -> dropped)
    h = bn_relu_bf16(
        jnp.dot(xb, w1_ref[...], preferred_element_type=jnp.float32),
        vec_ref[0:1, :], vec_ref[1:2, :])

    # fc2 + bn2 + relu2
    cp2.wait()
    h = bn_relu_bf16(
        jnp.dot(h, w2_buf[...], preferred_element_type=jnp.float32),
        vec_ref[2:3, :], vec_ref[3:4, :])

    # fc3 + bn3 + relu3
    cp3.wait()
    h = bn_relu_bf16(
        jnp.dot(h, w3_buf[...], preferred_element_type=jnp.float32),
        vec_ref[4:5, :n3], vec_ref[5:6, :n3])

    # fc4, then the F.relu applied outside `shared`
    h = jnp.maximum(
        jnp.dot(h, w4_ref[...], preferred_element_type=jnp.float32)
        + vec_ref[6:7, :n4], 0.0)

    # tasks_out (tiny 128x2 projection kept in f32)
    o_ref[...] = (jnp.dot(h, wo_ref[...], preferred_element_type=jnp.float32)
                  + vec_ref[7:8, :no]).astype(o_ref.dtype)


# --------------------------- host-side preparation -------------------------- #

def prep_params(p, k_pad=64):
    """Torch-layout f32 params -> kernel-ready operands.

    Weights are stored (in_features, out_features) and quantized to bf16
    (except the tiny final projection).  Per-feature vectors (gamma/beta x3,
    b4, bo) are packed into a single (8, Nmax) f32 slab.  w1 / x are zero-padded
    along K from d_in to k_pad (exact: padded columns multiply zero rows).
    """
    d_in, n1 = p["w1"].shape
    nmax = n1
    w1p = jnp.zeros((k_pad, n1), jnp.float32).at[:d_in].set(p["w1"])

    def row(v):
        r = jnp.zeros((nmax,), jnp.float32)
        return r.at[: v.shape[-1]].set(v.reshape(-1))

    vec = jnp.stack([row(p["g1"]), row(p["be1"]),
                     row(p["g2"]), row(p["be2"]),
                     row(p["g3"]), row(p["be3"]),
                     row(p["b4"]), row(p["bo"])], axis=0)

    return {
        "w1": w1p.astype(jnp.bfloat16),
        "w2": p["w2"].astype(jnp.bfloat16),
        "w3": p["w3"].astype(jnp.bfloat16),
        "w4": p["w4"].astype(jnp.bfloat16),
        "wo": p["wo"].astype(jnp.float32),
        "vec": vec,
    }


def stl_forward(x, kp):
    """Single fused pallas_call over the whole STL forward pass.

    The whole batch stays in one block because BatchNorm needs full-batch
    statistics; weights (~3.5 MB bf16) + activations (KBs) fit VMEM easily
    on v5e / v6e / v7x, so no vmem_limit override is requested.
    """
    B = x.shape[0]
    k_pad = kp["w1"].shape[0]
    d_out = kp["wo"].shape[1]
    x_p = jnp.zeros((B, k_pad), x.dtype).at[:, : x.shape[1]].set(x)

    return pl.pallas_call(
        _stl_fused_kernel,
        out_shape=jax.ShapeDtypeStruct((B, d_out), x.dtype),
        in_specs=[_VMEM_SPEC,   # x (padded)
                  _VMEM_SPEC,   # w1  (bf16, K padded)
                  _ANY_SPEC,    # w2  stays in HBM, streamed manually
                  _ANY_SPEC,    # w3  stays in HBM, streamed manually
                  _VMEM_SPEC,   # w4  (bf16)
                  _VMEM_SPEC,   # wo  (f32, tiny)
                  _VMEM_SPEC],  # packed gamma/beta/b4/bo slab
        out_specs=_VMEM_SPEC,
        scratch_shapes=[pltpu.VMEM(kp["w2"].shape, jnp.bfloat16),
                        pltpu.VMEM(kp["w3"].shape, jnp.bfloat16),
                        pltpu.SemaphoreType.DMA((2,))],
    )(x_p, kp["w1"], kp["w2"], kp["w3"], kp["w4"], kp["wo"], kp["vec"])


# ----------------------------- pure-JAX reference -------------------------- #

def reference_forward(x, rp):
    def linear(a, w, b):
        return a @ w + b

    def bn_relu(y, g, be):
        m = jnp.mean(y, axis=0, keepdims=True)
        v = jnp.mean((y - m) ** 2, axis=0, keepdims=True)
        return jax.nn.relu((y - m) * jax.lax.rsqrt(v + _EPS) * g + be)

    h = bn_relu(linear(x, rp["w1"], rp["b1"]), rp["g1"], rp["be1"])
    h = bn_relu(linear(h, rp["w2"], rp["b2"]), rp["g2"], rp["be2"])
    h = bn_relu(linear(h, rp["w3"], rp["b3"]), rp["g3"], rp["be3"])
    h = jax.nn.relu(linear(h, rp["w4"], rp["b4"]))
    return linear(h, rp["wo"], rp["bo"])


# ----------------------------------- main ----------------------------------- #

if __name__ == "__main__":
    # Module defaults: d_in=50, shapes=[1024, 1024, 512, 128], tasks_out -> 2.
    B = 16
    D_IN = 50
    SHAPES = [1024, 1024, 512, 128]
    D_OUT = 2

    key = jax.random.PRNGKey(0)
    keys = jax.random.split(key, 16)
    ki = iter(keys)

    def init(shape, scale=0.05):
        return (scale * jax.random.normal(next(ki), shape)).astype(jnp.float32)

    p = {
        # weights are (in, out) = torch weight transposed; bias/gamma/beta are (1, D)
        "w1": init((D_IN, SHAPES[0])), "b1": init((1, SHAPES[0])),
        "g1": jnp.ones((1, SHAPES[0]), jnp.float32), "be1": jnp.zeros((1, SHAPES[0]), jnp.float32),
        "w2": init((SHAPES[0], SHAPES[1])), "b2": init((1, SHAPES[1])),
        "g2": jnp.ones((1, SHAPES[1]), jnp.float32), "be2": jnp.zeros((1, SHAPES[1]), jnp.float32),
        "w3": init((SHAPES[1], SHAPES[2])), "b3": init((1, SHAPES[2])),
        "g3": jnp.ones((1, SHAPES[2]), jnp.float32), "be3": jnp.zeros((1, SHAPES[2]), jnp.float32),
        "w4": init((SHAPES[2], SHAPES[3])), "b4": init((1, SHAPES[3])),
        "wo": init((SHAPES[3], D_OUT)), "bo": init((1, D_OUT)),
    }
    x = jax.random.normal(next(ki), (B, D_IN), dtype=jnp.float32)

    kp = prep_params(p)

    # Reference uses the same bf16-stored weights (upcast to f32) so the check
    # isolates kernel math: BN fold, dropped (mathematically dead) pre-BN biases,
    # and bf16 activation rounding inside the kernel.
    rp = dict(p)
    for name in ("w1", "w2", "w3", "w4"):
        rp[name] = p[name].astype(jnp.bfloat16).astype(jnp.float32)

    out = jax.block_until_ready(stl_forward(x, kp))
    ref = reference_forward(x, rp)

    assert out.shape == (B, D_OUT), out.shape
    np.testing.assert_allclose(np.asarray(out), np.asarray(ref), rtol=2e-2, atol=5e-3)

    print("KERNEL_OK")
</pallas_src>

<mosaic_0001>
module attributes {stable_mosaic.version = 11 : i64} {
  func.func @_stl_fused_kernel(%arg0: memref<16x64xf32, #tpu.memory_space<vmem>>, %arg1: memref<64x1024xbf16, #tpu.memory_space<vmem>>, %arg2: memref<1024x1024xbf16, #tpu.memory_space<any>>, %arg3: memref<1024x512xbf16, #tpu.memory_space<any>>, %arg4: memref<512x128xbf16, #tpu.memory_space<vmem>>, %arg5: memref<128x2xf32, #tpu.memory_space<vmem>>, %arg6: memref<8x1024xf32, #tpu.memory_space<vmem>>, %arg7: memref<16x2xf32, #tpu.memory_space<vmem>>, %arg8: memref<1024x1024xbf16, #tpu.memory_space<vmem>>, %arg9: memref<1024x512xbf16, #tpu.memory_space<vmem>>, %arg10: memref<2x!tpu.dma_semaphore, #tpu.memory_space<semaphore_mem>>) attributes {dimension_semantics = [], scalar_prefetch = 0 : i64, scratch_operands = 3 : i64, tpu.core_type = #tpu.core_type<tc>} {
    %c0_i32 = arith.constant 0 : i32
    %0 = tpu.memref_slice %arg10[%c0_i32] : memref<2x!tpu.dma_semaphore, #tpu.memory_space<semaphore_mem>> -> memref<1x!tpu.dma_semaphore, #tpu.memory_space<semaphore_mem>>
    %1 = tpu.memref_squeeze %0 : memref<1x!tpu.dma_semaphore, #tpu.memory_space<semaphore_mem>> -> memref<!tpu.dma_semaphore, #tpu.memory_space<semaphore_mem>>
    tpu.enqueue_dma source(%arg2 : memref<1024x1024xbf16, #tpu.memory_space<any>>) target(%arg8 : memref<1024x1024xbf16, #tpu.memory_space<vmem>>) target_semaphore(%1 : memref<!tpu.dma_semaphore, #tpu.memory_space<semaphore_mem>>)
    %c1_i32 = arith.constant 1 : i32
    %2 = tpu.memref_slice %arg10[%c1_i32] : memref<2x!tpu.dma_semaphore, #tpu.memory_space<semaphore_mem>> -> memref<1x!tpu.dma_semaphore, #tpu.memory_space<semaphore_mem>>
    %3 = tpu.memref_squeeze %2 : memref<1x!tpu.dma_semaphore, #tpu.memory_space<semaphore_mem>> -> memref<!tpu.dma_semaphore, #tpu.memory_space<semaphore_mem>>
    tpu.enqueue_dma source(%arg3 : memref<1024x512xbf16, #tpu.memory_space<any>>) target(%arg9 : memref<1024x512xbf16, #tpu.memory_space<vmem>>) target_semaphore(%3 : memref<!tpu.dma_semaphore, #tpu.memory_space<semaphore_mem>>)
    %c0 = arith.constant 0 : index
    %c0_0 = arith.constant 0 : index
    %4 = vector.load %arg0[%c0, %c0_0] : memref<16x64xf32, #tpu.memory_space<vmem>>, vector<16x64xf32>
    %5 = arith.truncf %4 : vector<16x64xf32> to vector<16x64xbf16>
    %c0_1 = arith.constant 0 : index
    %c0_2 = arith.constant 0 : index
    %6 = vector.load %arg1[%c0_1, %c0_2] : memref<64x1024xbf16, #tpu.memory_space<vmem>>, vector<64x1024xbf16>
    %cst = arith.constant dense<0.000000e+00> : vector<16x1024xf32>
    %7 = tpu.matmul %5, %6, %cst {dimension_numbers = #tpu.dot_dimension_numbers<[1], [0], [0], [1], [0, 0, 1, 1], [], []>} : vector<16x64xbf16>, vector<64x1024xbf16>, vector<16x1024xf32> -> vector<16x1024xf32>
    %c0_3 = arith.constant 0 : index
    %c0_4 = arith.constant 0 : index
    %8 = vector.load %arg6[%c0_3, %c0_4] : memref<8x1024xf32, #tpu.memory_space<vmem>>, vector<1x1024xf32>
    %c1 = arith.constant 1 : index
    %c0_5 = arith.constant 0 : index
    %9 = vector.load %arg6[%c1, %c0_5] : memref<8x1024xf32, #tpu.memory_space<vmem>>, vector<1x1024xf32>
    %cst_6 = arith.constant dense<0.000000e+00> : vector<1024xf32>
    %10 = vector.multi_reduction <add>, %7, %cst_6 [0] : vector<16x1024xf32> to vector<1024xf32>
    %11 = vector.shape_cast %10 : vector<1024xf32> to vector<1x1024xf32>
    %cst_7 = arith.constant 1.600000e+01 : f32
    %12 = vector.broadcast %cst_7 : f32 to vector<1x1024xf32>
    %13 = arith.divf %11, %12 : vector<1x1024xf32>
    %14 = arith.mulf %7, %7 : vector<16x1024xf32>
    %cst_8 = arith.constant dense<0.000000e+00> : vector<1024xf32>
    %15 = vector.multi_reduction <add>, %14, %cst_8 [0] : vector<16x1024xf32> to vector<1024xf32>
    %16 = vector.shape_cast %15 : vector<1024xf32> to vector<1x1024xf32>
    %cst_9 = arith.constant 1.600000e+01 : f32
    %17 = vector.broadcast %cst_9 : f32 to vector<1x1024xf32>
    %18 = arith.divf %16, %17 : vector<1x1024xf32>
    %19 = arith.mulf %13, %13 : vector<1x1024xf32>
    %20 = arith.subf %18, %19 : vector<1x1024xf32>
    %cst_10 = arith.constant 9.99999974E-6 : f32
    %21 = vector.broadcast %cst_10 : f32 to vector<1x1024xf32>
    %22 = arith.addf %20, %21 : vector<1x1024xf32>
    %23 = math.rsqrt %22 : vector<1x1024xf32>
    %24 = arith.mulf %8, %23 : vector<1x1024xf32>
    %25 = arith.mulf %13, %24 : vector<1x1024xf32>
    %26 = arith.subf %9, %25 : vector<1x1024xf32>
    %27 = vector.broadcast %24 : vector<1x1024xf32> to vector<16x1024xf32>
    %28 = arith.mulf %7, %27 : vector<16x1024xf32>
    %29 = vector.broadcast %26 : vector<1x1024xf32> to vector<16x1024xf32>
    %30 = arith.addf %28, %29 : vector<16x1024xf32>
    %cst_11 = arith.constant 0.000000e+00 : f32
    %31 = vector.broadcast %cst_11 : f32 to vector<16x1024xf32>
    %32 = arith.maximumf %30, %31 : vector<16x1024xf32>
    %33 = arith.truncf %32 : vector<16x1024xf32> to vector<16x1024xbf16>
    %c0_i32_12 = arith.constant 0 : i32
    %34 = tpu.memref_slice %arg10[%c0_i32_12] : memref<2x!tpu.dma_semaphore, #tpu.memory_space<semaphore_mem>> -> memref<1x!tpu.dma_semaphore, #tpu.memory_space<semaphore_mem>>
    %35 = tpu.memref_squeeze %34 : memref<1x!tpu.dma_semaphore, #tpu.memory_space<semaphore_mem>> -> memref<!tpu.dma_semaphore, #tpu.memory_space<semaphore_mem>>
    tpu.wait_dma2 semaphore(%35 : memref<!tpu.dma_semaphore, #tpu.memory_space<semaphore_mem>>) src(%arg2 : memref<1024x1024xbf16, #tpu.memory_space<any>>) dst(%arg8 : memref<1024x1024xbf16, #tpu.memory_space<vmem>>)
    %c0_13 = arith.constant 0 : index
    %c0_14 = arith.constant 0 : index
    %36 = vector.load %arg8[%c0_13, %c0_14] : memref<1024x1024xbf16, #tpu.memory_space<vmem>>, vector<1024x1024xbf16>
    %cst_15 = arith.constant dense<0.000000e+00> : vector<16x1024xf32>
    %37 = tpu.matmul %33, %36, %cst_15 {dimension_numbers = #tpu.dot_dimension_numbers<[1], [0], [0], [1], [0, 0, 1, 1], [], []>} : vector<16x1024xbf16>, vector<1024x1024xbf16>, vector<16x1024xf32> -> vector<16x1024xf32>
    %c2 = arith.constant 2 : index
    %c0_16 = arith.constant 0 : index
    %38 = vector.load %arg6[%c2, %c0_16] : memref<8x1024xf32, #tpu.memory_space<vmem>>, vector<1x1024xf32>
    %c3 = arith.constant 3 : index
    %c0_17 = arith.constant 0 : index
    %39 = vector.load %arg6[%c3, %c0_17] : memref<8x1024xf32, #tpu.memory_space<vmem>>, vector<1x1024xf32>
    %cst_18 = arith.constant dense<0.000000e+00> : vector<1024xf32>
    %40 = vector.multi_reduction <add>, %37, %cst_18 [0] : vector<16x1024xf32> to vector<1024xf32>
    %41 = vector.shape_cast %40 : vector<1024xf32> to vector<1x1024xf32>
    %cst_19 = arith.constant 1.600000e+01 : f32
    %42 = vector.broadcast %cst_19 : f32 to vector<1x1024xf32>
    %43 = arith.divf %41, %42 : vector<1x1024xf32>
    %44 = arith.mulf %37, %37 : vector<16x1024xf32>
    %cst_20 = arith.constant dense<0.000000e+00> : vector<1024xf32>
    %45 = vector.multi_reduction <add>, %44, %cst_20 [0] : vector<16x1024xf32> to vector<1024xf32>
    %46 = vector.shape_cast %45 : vector<1024xf32> to vector<1x1024xf32>
    %cst_21 = arith.constant 1.600000e+01 : f32
    %47 = vector.broadcast %cst_21 : f32 to vector<1x1024xf32>
    %48 = arith.divf %46, %47 : vector<1x1024xf32>
    %49 = arith.mulf %43, %43 : vector<1x1024xf32>
    %50 = arith.subf %48, %49 : vector<1x1024xf32>
    %cst_22 = arith.constant 9.99999974E-6 : f32
    %51 = vector.broadcast %cst_22 : f32 to vector<1x1024xf32>
    %52 = arith.addf %50, %51 : vector<1x1024xf32>
    %53 = math.rsqrt %52 : vector<1x1024xf32>
    %54 = arith.mulf %38, %53 : vector<1x1024xf32>
    %55 = arith.mulf %43, %54 : vector<1x1024xf32>
    %56 = arith.subf %39, %55 : vector<1x1024xf32>
    %57 = vector.broadcast %54 : vector<1x1024xf32> to vector<16x1024xf32>
    %58 = arith.mulf %37, %57 : vector<16x1024xf32>
    %59 = vector.broadcast %56 : vector<1x1024xf32> to vector<16x1024xf32>
    %60 = arith.addf %58, %59 : vector<16x1024xf32>
    %cst_23 = arith.constant 0.000000e+00 : f32
    %61 = vector.broadcast %cst_23 : f32 to vector<16x1024xf32>
    %62 = arith.maximumf %60, %61 : vector<16x1024xf32>
    %63 = arith.truncf %62 : vector<16x1024xf32> to vector<16x1024xbf16>
    %c1_i32_24 = arith.constant 1 : i32
    %64 = tpu.memref_slice %arg10[%c1_i32_24] : memref<2x!tpu.dma_semaphore, #tpu.memory_space<semaphore_mem>> -> memref<1x!tpu.dma_semaphore, #tpu.memory_space<semaphore_mem>>
    %65 = tpu.memref_squeeze %64 : memref<1x!tpu.dma_semaphore, #tpu.memory_space<semaphore_mem>> -> memref<!tpu.dma_semaphore, #tpu.memory_space<semaphore_mem>>
    tpu.wait_dma2 semaphore(%65 : memref<!tpu.dma_semaphore, #tpu.memory_space<semaphore_mem>>) src(%arg3 : memref<1024x512xbf16, #tpu.memory_space<any>>) dst(%arg9 : memref<1024x512xbf16, #tpu.memory_space<vmem>>)
    %c0_25 = arith.constant 0 : index
    %c0_26 = arith.constant 0 : index
    %66 = vector.load %arg9[%c0_25, %c0_26] : memref<1024x512xbf16, #tpu.memory_space<vmem>>, vector<1024x512xbf16>
    %cst_27 = arith.constant dense<0.000000e+00> : vector<16x512xf32>
    %67 = tpu.matmul %63, %66, %cst_27 {dimension_numbers = #tpu.dot_dimension_numbers<[1], [0], [0], [1], [0, 0, 1, 1], [], []>} : vector<16x1024xbf16>, vector<1024x512xbf16>, vector<16x512xf32> -> vector<16x512xf32>
    %c4 = arith.constant 4 : index
    %c0_28 = arith.constant 0 : index
    %68 = vector.load %arg6[%c4, %c0_28] : memref<8x1024xf32, #tpu.memory_space<vmem>>, vector<1x512xf32>
    %c5 = arith.constant 5 : index
    %c0_29 = arith.constant 0 : index
    %69 = vector.load %arg6[%c5, %c0_29] : memref<8x1024xf32, #tpu.memory_space<vmem>>, vector<1x512xf32>
    %cst_30 = arith.constant dense<0.000000e+00> : vector<512xf32>
    %70 = vector.multi_reduction <add>, %67, %cst_30 [0] : vector<16x512xf32> to vector<512xf32>
    %71 = vector.shape_cast %70 : vector<512xf32> to vector<1x512xf32>
    %cst_31 = arith.constant 1.600000e+01 : f32
    %72 = vector.broadcast %cst_31 : f32 to vector<1x512xf32>
    %73 = arith.divf %71, %72 : vector<1x512xf32>
    %74 = arith.mulf %67, %67 : vector<16x512xf32>
    %cst_32 = arith.constant dense<0.000000e+00> : vector<512xf32>
    %75 = vector.multi_reduction <add>, %74, %cst_32 [0] : vector<16x512xf32> to vector<512xf32>
    %76 = vector.shape_cast %75 : vector<512xf32> to vector<1x512xf32>
    %cst_33 = arith.constant 1.600000e+01 : f32
    %77 = vector.broadcast %cst_33 : f32 to vector<1x512xf32>
    %78 = arith.divf %76, %77 : vector<1x512xf32>
    %79 = arith.mulf %73, %73 : vector<1x512xf32>
    %80 = arith.subf %78, %79 : vector<1x512xf32>
    %cst_34 = arith.constant 9.99999974E-6 : f32
    %81 = vector.broadcast %cst_34 : f32 to vector<1x512xf32>
    %82 = arith.addf %80, %81 : vector<1x512xf32>
    %83 = math.rsqrt %82 : vector<1x512xf32>
    %84 = arith.mulf %68, %83 : vector<1x512xf32>
    %85 = arith.mulf %73, %84 : vector<1x512xf32>
    %86 = arith.subf %69, %85 : vector<1x512xf32>
    %87 = vector.broadcast %84 : vector<1x512xf32> to vector<16x512xf32>
    %88 = arith.mulf %67, %87 : vector<16x512xf32>
    %89 = vector.broadcast %86 : vector<1x512xf32> to vector<16x512xf32>
    %90 = arith.addf %88, %89 : vector<16x512xf32>
    %cst_35 = arith.constant 0.000000e+00 : f32
    %91 = vector.broadcast %cst_35 : f32 to vector<16x512xf32>
    %92 = arith.maximumf %90, %91 : vector<16x512xf32>
    %93 = arith.truncf %92 : vector<16x512xf32> to vector<16x512xbf16>
    %c0_36 = arith.constant 0 : index
    %c0_37 = arith.constant 0 : index
    %94 = vector.load %arg4[%c0_36, %c0_37] : memref<512x128xbf16, #tpu.memory_space<vmem>>, vector<512x128xbf16>
    %cst_38 = arith.constant dense<0.000000e+00> : vector<16x128xf32>
    %95 = tpu.matmul %93, %94, %cst_38 {dimension_numbers = #tpu.dot_dimension_numbers<[1], [0], [0], [1], [0, 0, 1, 1], [], []>} : vector<16x512xbf16>, vector<512x128xbf16>, vector<16x128xf32> -> vector<16x128xf32>
    %c6 = arith.constant 6 : index
    %c0_39 = arith.constant 0 : index
    %96 = vector.load %arg6[%c6, %c0_39] : memref<8x1024xf32, #tpu.memory_space<vmem>>, vector<1x128xf32>
    %97 = vector.broadcast %96 : vector<1x128xf32> to vector<16x128xf32>
    %98 = arith.addf %95, %97 : vector<16x128xf32>
    %cst_40 = arith.constant 0.000000e+00 : f32
    %99 = vector.broadcast %cst_40 : f32 to vector<16x128xf32>
    %100 = arith.maximumf %98, %99 : vector<16x128xf32>
    %c0_41 = arith.constant 0 : index
    %c0_42 = arith.constant 0 : index
    %101 = vector.load %arg5[%c0_41, %c0_42] : memref<128x2xf32, #tpu.memory_space<vmem>>, vector<128x2xf32>
    %cst_43 = arith.constant dense<0.000000e+00> : vector<16x2xf32>
    %102 = tpu.matmul %100, %101, %cst_43 {dimension_numbers = #tpu.dot_dimension_numbers<[1], [0], [0], [1], [0, 0, 1, 1], [], []>} : vector<16x128xf32>, vector<128x2xf32>, vector<16x2xf32> -> vector<16x2xf32>
    %c7 = arith.constant 7 : index
    %c0_44 = arith.constant 0 : index
    %103 = vector.load %arg6[%c7, %c0_44] : memref<8x1024xf32, #tpu.memory_space<vmem>>, vector<1x2xf32>
    %104 = vector.broadcast %103 : vector<1x2xf32> to vector<16x2xf32>
    %105 = arith.addf %102, %104 : vector<16x2xf32>
    %c0_45 = arith.constant 0 : index
    %c0_46 = arith.constant 0 : index
    %106 = vector.load %arg7[%c0_45, %c0_46] : memref<16x2xf32, #tpu.memory_space<vmem>>, vector<16x2xf32>
    tpu.vector_store %arg7[%c0_45, %c0_46], %105 {strides = array<i32>} : memref<16x2xf32, #tpu.memory_space<vmem>>, vector<16x2xf32>,
    return
  }
}

</mosaic_0001>

<llo_original>
// kernel: tpu_custom_call.1
$region0: #{tpu_custom_call.1}
  #allocation0 [shape = 'u32[]', space=smem, size = 0x4, offset = 0x4, fixed_abs, tag = 'smem constant byte address 0x4 - core index']
  #allocation1 [shape = 'u32[144,128]{1,0:T(1,128)}', space=vmem, size = 0x12000, scoped, tag = 'internal scratch']
  #allocation2 [shape = 'bf16[1024,1024]{1,0:T(16,128)(2,1)}', space=vmem, size = 0x200000, scoped, tag = 'scratch operand']
  #allocation3 [shape = 'bf16[1024,512]{1,0:T(16,128)(2,1)}', space=vmem, size = 0x100000, scoped, tag = 'scratch operand']
  #allocation4 [shape = 's32[2]{0}', space=sflag, size = 0x8, scoped, tag = 'scratch operand']
  #allocation12 [shape = 's32[]', space=sflag, size = 0x4, offset = 0, fixed_abs, tag = 'sflag constant byte address 0x0 - dummy sync flag']
  #allocation14 [shape = 's32[]', space=sflag, size = 0x4, offset = 0, fixed_abs, tag = 'sflag constant byte address 0x0 - dummy sync flag']
  %s0 = inlined_call_operand.hbm [shape: f32[16,64], index: 0, kind: input, shape index: {}]
  %s1 = inlined_call_operand.hbm [shape: bf16[64,1024], index: 1, kind: input, shape index: {}]
  %s2 = inlined_call_operand.hbm [shape: bf16[1024,1024], index: 2, kind: input, shape index: {}]
  %s3 = inlined_call_operand.hbm [shape: bf16[1024,512], index: 3, kind: input, shape index: {}]
  %s4 = inlined_call_operand.hbm [shape: bf16[512,128], index: 4, kind: input, shape index: {}]
  %s5 = inlined_call_operand.vmem [shape: f32[128,2], index: 5, kind: input, shape index: {}]
  %s6 = inlined_call_operand.hbm [shape: f32[8,1024], index: 6, kind: input, shape index: {}]
  %s7 = inlined_call_operand.vmem [shape: f32[16,2], index: 7, kind: output, shape index: {}]
  %s8 = sld [smem:[#allocation0]]
  $region46: #{tpu_custom_call.1} parent=0
    _
  %s10 = ssub.s32 1, %s8
  %s11 = scalar_select 0, %s10, %s8
  $region1: #{tpu_custom_call.1} parent=0
    #allocation5 [shape = 'u8[8192]{0}', space=vmem, size = 0x2000, scoped, tag = 'input window, operand 0, single buffered']
    #allocation6 [shape = 's32[1]{0}', space=sflag, size = 0x4, scoped, tag = 'scoped memory for tpu_custom_call.1']
    #allocation7 [shape = 'u8[131072]{0}', space=vmem, size = 0x20000, scoped, tag = 'input window, operand 1, single buffered']
    #allocation8 [shape = 's32[1]{0}', space=sflag, size = 0x4, scoped, tag = 'scoped memory for tpu_custom_call.1']
    #allocation9 [shape = 'u8[131072]{0}', space=vmem, size = 0x20000, scoped, tag = 'input window, operand 4, single buffered']
    #allocation10 [shape = 'u8[32768]{0}', space=vmem, size = 0x8000, scoped, tag = 'input window, operand 6, single buffered']
    #allocation11 [shape = 's32[1]{0}', space=sflag, size = 0x4, scoped, tag = 'scoped memory for tpu_custom_call.1']
    #allocation13 [shape = 'u32[9]{0}', space=smem, size = 0x24, scoped, tag = 'DMA stride descriptor']
    #allocation15 [shape = 'u32[9]{0}', space=smem, size = 0x24, scoped, tag = 'DMA stride descriptor']
    %12 = vsyncpa [#allocation6], 0
    %13 = vsyncpa [#allocation8], 0
    %14 = vsyncpa [#allocation11], 0
    // Predicated region
    $region2: #{tpu_custom_call.1} parent=1 // pred_check
      _
    $region3: #{tpu_custom_call.1} parent=1 // pred_check_branch
      %16 = sbr.rel (0) target = $region5
    $region4: #{tpu_custom_call.1} parent=1 // pred_region
      %s18 = ssub.s32 256, 256
      %19 = vsyncadd [#allocation6], %s18
      %s20 = sshll.u32 [#allocation5], 4
      %s21 = int_to_ptr.vmem [resolvable:$true] %s20
      %26 = dma.hbm_to_vmem [thread:$0]  %s0, 256, %s21, [#allocation6], 128, 128, 8
    $region5: #{tpu_custom_call.1} parent=1 // pred_fallthru
      _
    // Predicated region
    $region6: #{tpu_custom_call.1} parent=1 // pred_check
      _
    $region7: #{tpu_custom_call.1} parent=1 // pred_check_branch
      %28 = sbr.rel (0) target = $region9
    $region8: #{tpu_custom_call.1} parent=1 // pred_region
      %s30 = ssub.s32 4096, 4096
      %31 = vsyncadd [#allocation8], %s30
      %s32 = sshll.u32 [#allocation7], 4
      %s33 = int_to_ptr.vmem [resolvable:$true] %s32
      %38 = dma.hbm_to_vmem [thread:$0]  %s1, 4096, %s33, [#allocation8], 512, 512, 32
    $region9: #{tpu_custom_call.1} parent=1 // pred_fallthru
      _
    // Predicated region
    $region10: #{tpu_custom_call.1} parent=1 // pred_check
      _
    $region11: #{tpu_custom_call.1} parent=1 // pred_check_branch
      %40 = sbr.rel (0) target = $region13
    $region12: #{tpu_custom_call.1} parent=1 // pred_region
      %s42 = ssub.s32 4096, 4096
      %43 = vsyncadd [#allocation8], %s42
      %s44 = sshll.u32 [#allocation9], 4
      %s45 = int_to_ptr.vmem [resolvable:$true] %s44
      %50 = dma.hbm_to_vmem [thread:$0]  %s4, 4096, %s45, [#allocation8], 64, 64, 4
    $region13: #{tpu_custom_call.1} parent=1 // pred_fallthru
      _
    // Predicated region
    $region14: #{tpu_custom_call.1} parent=1 // pred_check
      _
    $region15: #{tpu_custom_call.1} parent=1 // pred_check_branch
      %52 = sbr.rel (0) target = $region17
    $region16: #{tpu_custom_call.1} parent=1 // pred_region
      _
    $region17: #{tpu_custom_call.1} parent=1 // pred_fallthru
      _
    // Predicated region
    $region18: #{tpu_custom_call.1} parent=1 // pred_check
      _
    $region19: #{tpu_custom_call.1} parent=1 // pred_check_branch
      %54 = sbr.rel (0) target = $region21
    $region20: #{tpu_custom_call.1} parent=1 // pred_region
      %s56 = ssub.s32 1024, 1024
      %57 = vsyncadd [#allocation11], %s56
      %s59 = sshll.u32 [#allocation10], 4
      %s60 = int_to_ptr.vmem [resolvable:$true] %s59
      %62 = dma.hbm_to_vmem [thread:$0]  %s6, 1024, %s60, [#allocation11]
    $region21: #{tpu_custom_call.1} parent=1 // pred_fallthru
      _
    // Predicated region
    $region22: #{tpu_custom_call.1} parent=1 // pred_check
      _
    $region23: #{tpu_custom_call.1} parent=1 // pred_check_branch
      %64 = sbr.rel (0) target = $region25
    $region24: #{tpu_custom_call.1} parent=1 // pred_region
      %65 = dma.done [#allocation6], 256
    $region25: #{tpu_custom_call.1} parent=1 // pred_fallthru
      _
    // Predicated region
    $region26: #{tpu_custom_call.1} parent=1 // pred_check
      _
    $region27: #{tpu_custom_call.1} parent=1 // pred_check_branch
      %67 = sbr.rel (0) target = $region29
    $region28: #{tpu_custom_call.1} parent=1 // pred_region
      %68 = dma.done [#allocation8], 4096
    $region29: #{tpu_custom_call.1} parent=1 // pred_fallthru
      _
    // Predicated region
    $region30: #{tpu_custom_call.1} parent=1 // pred_check
      _
    $region31: #{tpu_custom_call.1} parent=1 // pred_check_branch
      %70 = sbr.rel (0) target = $region33
    $region32: #{tpu_custom_call.1} parent=1 // pred_region
      %71 = dma.done [#allocation8], 4096
    $region33: #{tpu_custom_call.1} parent=1 // pred_fallthru
      _
    // Predicated region
    $region34: #{tpu_custom_call.1} parent=1 // pred_check
      _
    $region35: #{tpu_custom_call.1} parent=1 // pred_check_branch
      %73 = sbr.rel (0) target = $region37
    $region36: #{tpu_custom_call.1} parent=1 // pred_region
      %74 = dma.done [#allocation11], 1024
    $region37: #{tpu_custom_call.1} parent=1 // pred_fallthru
      _
    %s77 = sshll.u32 1, 14
    %s78 = sxor.u32 4294967295, %s77
    %s80 = sld [smem:[#allocation0]]
    %s81 = sadd.s32 2, %s80
    %s83 = sshll.u32 7, 26
    %s84 = sxor.u32 4294967295, %s83
    %s85 = sand.u32 0, %s84
    %s86 = sshll.u32 %s81, 26
    %s87 = sor.u32 %s85, %s86
    %s88 = sshll.u32 [#allocation2], 4
    %s89 = int_to_ptr.vmem [resolvable:$true] %s88
    %92 = sst [smem:[#allocation13]] 1024
    %s93 = scalar_lea.smem [#allocation13], 1
    %94 = sst [smem:[%s93]] 1024
    %s95 = scalar_lea.smem [#allocation13], 2
    %96 = sst [smem:[%s95]] 8
    %s97 = scalar_lea.smem [#allocation13], 3
    %98 = sst [smem:[%s97]] 64
    %s99 = scalar_lea.smem [#allocation13], 4
    %100 = sst [smem:[%s99]] 128
    %s101 = scalar_lea.smem [#allocation13], 5
    %102 = sst [smem:[%s101]] 2
    %s103 = scalar_lea.smem [#allocation13], 6
    %104 = sst [smem:[%s103]] 512
    %s105 = scalar_lea.smem [#allocation13], 7
    %106 = sst [smem:[%s105]] 64
    %s107 = scalar_lea.smem [#allocation13], 8
    %108 = sst [smem:[%s107]] 4
    %110 = dma.general %s2, 65536, %s89, [#allocation4], [#allocation12], [#allocation13], %s87, 0
    %s111 = scalar_lea.sflag [#allocation4], 1
    %s113 = sshll.u32 1, 14
    %s114 = sxor.u32 4294967295, %s113
    %s116 = sadd.s32 2, %s80
    %s118 = sshll.u32 7, 26
    %s119 = sxor.u32 4294967295, %s118
    %s120 = sand.u32 0, %s119
    %s121 = sshll.u32 %s116, 26
    %s122 = sor.u32 %s120, %s121
    %s123 = sshll.u32 [#allocation3], 4
    %s124 = int_to_ptr.vmem [resolvable:$true] %s123
    %127 = sst [smem:[#allocation15]] 512
    %s128 = scalar_lea.smem [#allocation15], 1
    %129 = sst [smem:[%s128]] 512
    %s130 = scalar_lea.smem [#allocation15], 2
    %131 = sst [smem:[%s130]] 4
    %s132 = scalar_lea.smem [#allocation15], 3
    %133 = sst [smem:[%s132]] 64
    %s134 = scalar_lea.smem [#allocation15], 4
    %135 = sst [smem:[%s134]] 128
    %s136 = scalar_lea.smem [#allocation15], 5
    %137 = sst [smem:[%s136]] 2
    %s138 = scalar_lea.smem [#allocation15], 6
    %139 = sst [smem:[%s138]] 256
    %s140 = scalar_lea.smem [#allocation15], 7
    %141 = sst [smem:[%s140]] 64
    %s142 = scalar_lea.smem [#allocation15], 8
    %143 = sst [smem:[%s142]] 4
    %145 = dma.general %s3, 32768, %s124, %s111, [#allocation14], [#allocation15], %s122, 0
    %v146 = vld [vmem:[#allocation5] sm:$0xff]
    %v147 = vld [vmem:[#allocation5 + $0x8] sm:$0xff]
    %v148 = vpack.c.bf16 %v147, %v146
    %v149 = vld [vmem:[#allocation7] sm:$0xff]
    %v150 = vld [vmem:[#allocation7 + $0x8] sm:$0xff]
    %v151 = vld [vmem:[#allocation7 + $0x10] sm:$0xff]
    %v152 = vld [vmem:[#allocation7 + $0x18] sm:$0xff]
    %v153 = vld [vmem:[#allocation7 + $0x20] sm:$0xff]
    %v154 = vld [vmem:[#allocation7 + $0x28] sm:$0xff]
    %v155 = vld [vmem:[#allocation7 + $0x30] sm:$0xff]
    %v156 = vld [vmem:[#allocation7 + $0x38] sm:$0xff]
    %v157 = vld [vmem:[#allocation7 + $0x40] sm:$0xff]
    %v158 = vld [vmem:[#allocation7 + $0x48] sm:$0xff]
    %v159 = vld [vmem:[#allocation7 + $0x50] sm:$0xff]
    %v160 = vld [vmem:[#allocation7 + $0x58] sm:$0xff]
    %v161 = vld [vmem:[#allocation7 + $0x60] sm:$0xff]
    %v162 = vld [vmem:[#allocation7 + $0x68] sm:$0xff]
    %v163 = vld [vmem:[#allocation7 + $0x70] sm:$0xff]
    %v164 = vld [vmem:[#allocation7 + $0x78] sm:$0xff]
    %v165 = vld [vmem:[#allocation7 + $0x80] sm:$0xff]
    %v166 = vld [vmem:[#allocation7 + $0x88] sm:$0xff]
    %v167 = vld [vmem:[#allocation7 + $0x90] sm:$0xff]
    %v168 = vld [vmem:[#allocation7 + $0x98] sm:$0xff]
    %v169 = vld [vmem:[#allocation7 + $0xa0] sm:$0xff]
    %v170 = vld [vmem:[#allocation7 + $0xa8] sm:$0xff]
    %v171 = vld [vmem:[#allocation7 + $0xb0] sm:$0xff]
    %v172 = vld [vmem:[#allocation7 + $0xb8] sm:$0xff]
    %v173 = vld [vmem:[#allocation7 + $0xc0] sm:$0xff]
    %v174 = vld [vmem:[#allocation7 + $0xc8] sm:$0xff]
    %v175 = vld [vmem:[#allocation7 + $0xd0] sm:$0xff]
    %v176 = vld [vmem:[#allocation7 + $0xd8] sm:$0xff]
    %v177 = vld [vmem:[#allocation7 + $0xe0] sm:$0xff]
    %v178 = vld [vmem:[#allocation7 + $0xe8] sm:$0xff]
    %v179 = vld [vmem:[#allocation7 + $0xf0] sm:$0xff]
    %v180 = vld [vmem:[#allocation7 + $0xf8] sm:$0xff]
    %v213 = vunpack.c.l.b16 %v149
    %v214 = vunpack.c.h.b16 %v149
    %v215 = vunpack.c.l.b16 %v150
    %v216 = vunpack.c.h.b16 %v150
    %v217 = vunpack.c.l.b16 %v151
    %v218 = vunpack.c.h.b16 %v151
    %v219 = vunpack.c.l.b16 %v152
    %v220 = vunpack.c.h.b16 %v152
    %v221 = vunpack.c.l.b16 %v153
    %v222 = vunpack.c.h.b16 %v153
    %v223 = vunpack.c.l.b16 %v154
    %v224 = vunpack.c.h.b16 %v154
    %v225 = vunpack.c.l.b16 %v155
    %v226 = vunpack.c.h.b16 %v155
    %v227 = vunpack.c.l.b16 %v156
    %v228 = vunpack.c.h.b16 %v156
    %v229 = vunpack.c.l.b16 %v157
    %v230 = vunpack.c.h.b16 %v157
    %v231 = vunpack.c.l.b16 %v158
    %v232 = vunpack.c.h.b16 %v158
    %v233 = vunpack.c.l.b16 %v159
    %v234 = vunpack.c.h.b16 %v159
    %v235 = vunpack.c.l.b16 %v160
    %v236 = vunpack.c.h.b16 %v160
    %v237 = vunpack.c.l.b16 %v161
    %v238 = vunpack.c.h.b16 %v161
    %v239 = vunpack.c.l.b16 %v162
    %v240 = vunpack.c.h.b16 %v162
    %v241 = vunpack.c.l.b16 %v163
    %v242 = vunpack.c.h.b16 %v163
    %v243 = vunpack.c.l.b16 %v164
    %v244 = vunpack.c.h.b16 %v164
    %v245 = vunpack.c.l.b16 %v165
    %v246 = vunpack.c.h.b16 %v165
    %v247 = vunpack.c.l.b16 %v166
    %v248 = vunpack.c.h.b16 %v166
    %v249 = vunpack.c.l.b16 %v167
    %v250 = vunpack.c.h.b16 %v167
    %v251 = vunpack.c.l.b16 %v168
    %v252 = vunpack.c.h.b16 %v168
    %v253 = vunpack.c.l.b16 %v169
    %v254 = vunpack.c.h.b16 %v169
    %v255 = vunpack.c.l.b16 %v170
    %v256 = vunpack.c.h.b16 %v170
    %v257 = vunpack.c.l.b16 %v171
    %v258 = vunpack.c.h.b16 %v171
    %v259 = vunpack.c.l.b16 %v172
    %v260 = vunpack.c.h.b16 %v172
    %v261 = vunpack.c.l.b16 %v173
    %v262 = vunpack.c.h.b16 %v173
    %v263 = vunpack.c.l.b16 %v174
    %v264 = vunpack.c.h.b16 %v174
    %v265 = vunpack.c.l.b16 %v175
    %v266 = vunpack.c.h.b16 %v175
    %v267 = vunpack.c.l.b16 %v176
    %v268 = vunpack.c.h.b16 %v176
    %v269 = vunpack.c.l.b16 %v177
    %v270 = vunpack.c.h.b16 %v177
    %v271 = vunpack.c.l.b16 %v178
    %v272 = vunpack.c.h.b16 %v178
    %v273 = vunpack.c.l.b16 %v179
    %v274 = vunpack.c.h.b16 %v179
    %v275 = vunpack.c.l.b16 %v180
    %v276 = vunpack.c.h.b16 %v180
    %v277 = vpack.c.b16 %v221, %v213
    %v278 = vpack.c.b16 %v222, %v214
    %v279 = vpack.c.b16 %v223, %v215
    %v280 = vpack.c.b16 %v224, %v216
    %v281 = vpack.c.b16 %v225, %v217
    %v282 = vpack.c.b16 %v226, %v218
    %v283 = vpack.c.b16 %v227, %v219
    %v284 = vpack.c.b16 %v228, %v220
    %v285 = vpack.c.b16 %v237, %v229
    %v286 = vpack.c.b16 %v238, %v230
    %v287 = vpack.c.b16 %v239, %v231
    %v288 = vpack.c.b16 %v240, %v232
    %v289 = vpack.c.b16 %v241, %v233
    %v290 = vpack.c.b16 %v242, %v234
    %v291 = vpack.c.b16 %v243, %v235
    %v292 = vpack.c.b16 %v244, %v236
    %v293 = vpack.c.b16 %v253, %v245
    %v294 = vpack.c.b16 %v254, %v246
    %v295 = vpack.c.b16 %v255, %v247
    %v296 = vpack.c.b16 %v256, %v248
    %v297 = vpack.c.b16 %v257, %v249
    %v298 = vpack.c.b16 %v258, %v250
    %v299 = vpack.c.b16 %v259, %v251
    %v300 = vpack.c.b16 %v260, %v252
    %v301 = vpack.c.b16 %v269, %v261
    %v302 = vpack.c.b16 %v270, %v262
    %v303 = vpack.c.b16 %v271, %v263
    %v304 = vpack.c.b16 %v272, %v264
    %v305 = vpack.c.b16 %v273, %v265
    %v306 = vpack.c.b16 %v274, %v266
    %v307 = vpack.c.b16 %v275, %v267
    %v308 = vpack.c.b16 %v276, %v268
    %vm341 = vcmask 523264
    %v343 = vsel %vm341, %v148, 0
    %345 = vmatprep.subr.bf16.mxu0 %v278
    %346 = vmatpush1.bf16.msra.mxu0 %v277
    %347 = vmatprep.subr.bf16.mxu0 %v286
    %348 = vmatpush1.bf16.msra.mxu0 %v285
    %349 = vmatprep.subr.bf16.mxu0 %v294
    %350 = vmatpush1.bf16.msra.mxu0 %v293
    %351 = vmatprep.subr.bf16.mxu0 %v302
    %352 = vmatpush1.bf16.msra.mxu0 %v301
    %353 = vmatprep.subr.bf16.mxu0 0
    %354 = vmatpush1.bf16.msra.mxu0 0
    %355 = vmatprep.subr.bf16.mxu0 0
    %356 = vmatpush1.bf16.msra.mxu0 0
    %357 = vmatprep.subr.bf16.mxu0 0
    %358 = vmatpush1.bf16.msra.mxu0 0
    %359 = vmatprep.subr.bf16.mxu0 0
    %360 = vmatpush1.bf16.msra.mxu0 0
    %361 = vmatprep.subr.bf16.mxu0 0
    %362 = vmatpush1.bf16.msra.mxu0 0
    %363 = vmatprep.subr.bf16.mxu0 0
    %364 = vmatpush1.bf16.msra.mxu0 0
    %365 = vmatprep.subr.bf16.mxu0 0
    %366 = vmatpush1.bf16.msra.mxu0 0
    %367 = vmatprep.subr.bf16.mxu0 0
    %368 = vmatpush1.bf16.msra.mxu0 0
    %369 = vmatprep.subr.bf16.mxu0 0
    %370 = vmatpush1.bf16.msra.mxu0 0
    %371 = vmatprep.subr.bf16.mxu0 0
    %372 = vmatpush1.bf16.msra.mxu0 0
    %373 = vmatprep.subr.bf16.mxu0 0
    %374 = vmatpush1.bf16.msra.mxu0 0
    %375 = vmatprep.subr.bf16.mxu0 0
    %376 = vmatpush1.bf16.msra.mxu0 0
    %377 = vmatprep.mubr.bf16.mxu0 0
    %378 = vmatmul.mubr.bf16.gmra.mrb[0].mxu0 %v343
    %v379 = vpop.f32.mrb[0].mxu0
    %v380 = vadd.f32 0.0, %v379
    %v381 = vpop.f32.mrb[0].mxu0
    %v382 = vadd.f32 0.0, %v381
    %v383 = vpop.f32.mrb[0].mxu0
    %v384 = vadd.f32 0.0, %v383
    %v385 = vpop.f32.mrb[0].mxu0
    %v386 = vadd.f32 0.0, %v385
    %387 = vdwg.mxu0
    %388 = vmatprep.subr.bf16.mxu0 %v280
    %389 = vmatpush1.bf16.msra.mxu0 %v279
    %390 = vmatprep.subr.bf16.mxu0 %v288
    %391 = vmatpush1.bf16.msra.mxu0 %v287
    %392 = vmatprep.subr.bf16.mxu0 %v296
    %393 = vmatpush1.bf16.msra.mxu0 %v295
    %394 = vmatprep.subr.bf16.mxu0 %v304
    %395 = vmatpush1.bf16.msra.mxu0 %v303
    %396 = vmatprep.subr.bf16.mxu0 0
    %397 = vmatpush1.bf16.msra.mxu0 0
    %398 = vmatprep.subr.bf16.mxu0 0
    %399 = vmatpush1.bf16.msra.mxu0 0
    %400 = vmatprep.subr.bf16.mxu0 0
    %401 = vmatpush1.bf16.msra.mxu0 0
    %402 = vmatprep.subr.bf16.mxu0 0
    %403 = vmatpush1.bf16.msra.mxu0 0
    %404 = vmatprep.subr.bf16.mxu0 0
    %405 = vmatpush1.bf16.msra.mxu0 0
    %406 = vmatprep.subr.bf16.mxu0 0
    %407 = vmatpush1.bf16.msra.mxu0 0
    %408 = vmatprep.subr.bf16.mxu0 0
    %409 = vmatpush1.bf16.msra.mxu0 0
    %410 = vmatprep.subr.bf16.mxu0 0
    %411 = vmatpush1.bf16.msra.mxu0 0
    %412 = vmatprep.subr.bf16.mxu0 0
    %413 = vmatpush1.bf16.msra.mxu0 0
    %414 = vmatprep.subr.bf16.mxu0 0
    %415 = vmatpush1.bf16.msra.mxu0 0
    %416 = vmatprep.subr.bf16.mxu0 0
    %417 = vmatpush1.bf16.msra.mxu0 0
    %418 = vmatprep.subr.bf16.mxu0 0
    %419 = vmatpush1.bf16.msra.mxu0 0
    %420 = vmatprep.mubr.bf16.mxu0 0
    %421 = vmatmul.mubr.bf16.gmra.mrb[0].mxu0 %v343
    %v422 = vpop.f32.mrb[0].mxu0
    %v423 = vadd.f32 0.0, %v422
    %v424 = vpop.f32.mrb[0].mxu0
    %v425 = vadd.f32 0.0, %v424
    %v426 = vpop.f32.mrb[0].mxu0
    %v427 = vadd.f32 0.0, %v426
    %v428 = vpop.f32.mrb[0].mxu0
    %v429 = vadd.f32 0.0, %v428
    %430 = vdwg.mxu0
    %431 = vmatprep.subr.bf16.mxu0 %v282
    %432 = vmatpush1.bf16.msra.mxu0 %v281
    %433 = vmatprep.subr.bf16.mxu0 %v290
    %434 = vmatpush1.bf16.msra.mxu0 %v289
    %435 = vmatprep.subr.bf16.mxu0 %v298
    %436 = vmatpush1.bf16.msra.mxu0 %v297
    %437 = vmatprep.subr.bf16.mxu0 %v306
    %438 = vmatpush1.bf16.msra.mxu0 %v305
    %439 = vmatprep.subr.bf16.mxu0 0
    %440 = vmatpush1.bf16.msra.mxu0 0
    %441 = vmatprep.subr.bf16.mxu0 0
    %442 = vmatpush1.bf16.msra.mxu0 0
    %443 = vmatprep.subr.bf16.mxu0 0
    %444 = vmatpush1.bf16.msra.mxu0 0
    %445 = vmatprep.subr.bf16.mxu0 0
    %446 = vmatpush1.bf16.msra.mxu0 0
    %447 = vmatprep.subr.bf16.mxu0 0
    %448 = vmatpush1.bf16.msra.mxu0 0
    %449 = vmatprep.subr.bf16.mxu0 0
    %450 = vmatpush1.bf16.msra.mxu0 0
    %451 = vmatprep.subr.bf16.mxu0 0
    %452 = vmatpush1.bf16.msra.mxu0 0
    %453 = vmatprep.subr.bf16.mxu0 0
    %454 = vmatpush1.bf16.msra.mxu0 0
    %455 = vmatprep.subr.bf16.mxu0 0
    %456 = vmatpush1.bf16.msra.mxu0 0
    %457 = vmatprep.subr.bf16.mxu0 0
    %458 = vmatpush1.bf16.msra.mxu0 0
    %459 = vmatprep.subr.bf16.mxu0 0
    %460 = vmatpush1.bf16.msra.mxu0 0
    %461 = vmatprep.subr.bf16.mxu0 0
    %462 = vmatpush1.bf16.msra.mxu0 0
    %463 = vmatprep.mubr.bf16.mxu0 0
    %464 = vmatmul.mubr.bf16.gmra.mrb[0].mxu0 %v343
    %v465 = vpop.f32.mrb[0].mxu0
    %v466 = vadd.f32 0.0, %v465
    %v467 = vpop.f32.mrb[0].mxu0
    %v468 = vadd.f32 0.0, %v467
    %v469 = vpop.f32.mrb[0].mxu0
    %v470 = vadd.f32 0.0, %v469
    %v471 = vpop.f32.mrb[0].mxu0
    %v472 = vadd.f32 0.0, %v471
    %473 = vdwg.mxu0
    %474 = vmatprep.subr.bf16.mxu0 %v284
    %475 = vmatpush1.bf16.msra.mxu0 %v283
    %476 = vmatprep.subr.bf16.mxu0 %v292
    %477 = vmatpush1.bf16.msra.mxu0 %v291
    %478 = vmatprep.subr.bf16.mxu0 %v300
    %479 = vmatpush1.bf16.msra.mxu0 %v299
    %480 = vmatprep.subr.bf16.mxu0 %v308
    %481 = vmatpush1.bf16.msra.mxu0 %v307
    %482 = vmatprep.subr.bf16.mxu0 0
    %483 = vmatpush1.bf16.msra.mxu0 0
    %484 = vmatprep.subr.bf16.mxu0 0
    %485 = vmatpush1.bf16.msra.mxu0 0
    %486 = vmatprep.subr.bf16.mxu0 0
    %487 = vmatpush1.bf16.msra.mxu0 0
    %488 = vmatprep.subr.bf16.mxu0 0
    %489 = vmatpush1.bf16.msra.mxu0 0
    %490 = vmatprep.subr.bf16.mxu0 0
    %491 = vmatpush1.bf16.msra.mxu0 0
    %492 = vmatprep.subr.bf16.mxu0 0
    %493 = vmatpush1.bf16.msra.mxu0 0
    %494 = vmatprep.subr.bf16.mxu0 0
    %495 = vmatpush1.bf16.msra.mxu0 0
    %496 = vmatprep.subr.bf16.mxu0 0
    %497 = vmatpush1.bf16.msra.mxu0 0
    %498 = vmatprep.subr.bf16.mxu0 0
    %499 = vmatpush1.bf16.msra.mxu0 0
    %500 = vmatprep.subr.bf16.mxu0 0
    %501 = vmatpush1.bf16.msra.mxu0 0
    %502 = vmatprep.subr.bf16.mxu0 0
    %503 = vmatpush1.bf16.msra.mxu0 0
    %504 = vmatprep.subr.bf16.mxu0 0
    %505 = vmatpush1.bf16.msra.mxu0 0
    %506 = vmatprep.mubr.bf16.mxu0 0
    %507 = vmatmul.mubr.bf16.gmra.mrb[0].mxu0 %v343
    %v508 = vpop.f32.mrb[0].mxu0
    %v509 = vadd.f32 0.0, %v508
    %v510 = vpop.f32.mrb[0].mxu0
    %v511 = vadd.f32 0.0, %v510
    %v512 = vpop.f32.mrb[0].mxu0
    %v513 = vadd.f32 0.0, %v512
    %v514 = vpop.f32.mrb[0].mxu0
    %v515 = vadd.f32 0.0, %v514
    %516 = vdwg.mxu0
    %v517 = vld [vmem:[#allocation10] ss:$8 sm:$0xf]
    %v518 = vld [vmem:[#allocation10] ss:$8 sm:$0xf0]
    %v519 = vor.u32 %v517, %v518
    %s520 = scalar_lea.vmem [#allocation10], 1
    %v521 = vld [vmem:[%s520] ss:$8 sm:$0xf]
    %v522 = vld [vmem:[%s520] ss:$8 sm:$0xf0]
    %v523 = vor.u32 %v521, %v522
    %v524 = vadd.f32 %v380, %v384
    %v525 = vrot.slane %v524, 4
    %v526 = vadd.f32 %v524, %v525
    %v527 = vrot.slane %v526, 2
    %v528 = vadd.f32 %v526, %v527
    %v529 = vrot.slane %v528, 1
    %v530 = vadd.f32 %v528, %v529
    %v531 = vadd.f32 %v382, %v386
    %v532 = vrot.slane %v531, 4
    %v533 = vadd.f32 %v531, %v532
    %v534 = vrot.slane %v533, 2
    %v535 = vadd.f32 %v533, %v534
    %v536 = vrot.slane %v535, 1
    %v537 = vadd.f32 %v535, %v536
    %v538 = vadd.f32 %v423, %v427
    %v539 = vrot.slane %v538, 4
    %v540 = vadd.f32 %v538, %v539
    %v541 = vrot.slane %v540, 2
    %v542 = vadd.f32 %v540, %v541
    %v543 = vrot.slane %v542, 1
    %v544 = vadd.f32 %v542, %v543
    %v545 = vadd.f32 %v425, %v429
    %v546 = vrot.slane %v545, 4
    %v547 = vadd.f32 %v545, %v546
    %v548 = vrot.slane %v547, 2
    %v549 = vadd.f32 %v547, %v548
    %v550 = vrot.slane %v549, 1
    %v551 = vadd.f32 %v549, %v550
    %v552 = vadd.f32 %v466, %v470
    %v553 = vrot.slane %v552, 4
    %v554 = vadd.f32 %v552, %v553
    %v555 = vrot.slane %v554, 2
    %v556 = vadd.f32 %v554, %v555
    %v557 = vrot.slane %v556, 1
    %v558 = vadd.f32 %v556, %v557
    %v559 = vadd.f32 %v468, %v472
    %v560 = vrot.slane %v559, 4
    %v561 = vadd.f32 %v559, %v560
    %v562 = vrot.slane %v561, 2
    %v563 = vadd.f32 %v561, %v562
    %v564 = vrot.slane %v563, 1
    %v565 = vadd.f32 %v563, %v564
    %v566 = vadd.f32 %v509, %v513
    %v567 = vrot.slane %v566, 4
    %v568 = vadd.f32 %v566, %v567
    %v569 = vrot.slane %v568, 2
    %v570 = vadd.f32 %v568, %v569
    %v571 = vrot.slane %v570, 1
    %v572 = vadd.f32 %v570, %v571
    %v573 = vadd.f32 %v511, %v515
    %v574 = vrot.slane %v573, 4
    %v575 = vadd.f32 %v573, %v574
    %v576 = vrot.slane %v575, 2
    %v577 = vadd.f32 %v575, %v576
    %v578 = vrot.slane %v577, 1
    %v579 = vadd.f32 %v577, %v578
    %v580 = vrcp.pop 16.0
    %v581 = vmul.f32 %v530, %v580
    %v582 = vmul.f32 %v537, %v580
    %v583 = vmul.f32 %v544, %v580
    %v584 = vmul.f32 %v551, %v580
    %v585 = vmul.f32 %v558, %v580
    %v586 = vmul.f32 %v565, %v580
    %v587 = vmul.f32 %v572, %v580
    %v588 = vmul.f32 %v579, %v580
    %v589 = vmul.f32 %v380, %v380
    %v590 = vmul.f32 %v382, %v382
    %v591 = vmul.f32 %v423, %v423
    %v592 = vmul.f32 %v425, %v425
    %v593 = vmul.f32 %v466, %v466
    %v594 = vmul.f32 %v468, %v468
    %v595 = vmul.f32 %v509, %v509
    %v596 = vmul.f32 %v511, %v511
    %v597 = vmul.f32 %v384, %v384
    %v598 = vmul.f32 %v386, %v386
    %v599 = vmul.f32 %v427, %v427
    %v600 = vmul.f32 %v429, %v429
    %v601 = vmul.f32 %v470, %v470
    %v602 = vmul.f32 %v472, %v472
    %v603 = vmul.f32 %v513, %v513
    %v604 = vmul.f32 %v515, %v515
    %v605 = vadd.f32 %v589, %v597
    %v606 = vrot.slane %v605, 4
    %v607 = vadd.f32 %v605, %v606
    %v608 = vrot.slane %v607, 2
    %v609 = vadd.f32 %v607, %v608
    %v610 = vrot.slane %v609, 1
    %v611 = vadd.f32 %v609, %v610
    %v612 = vadd.f32 %v590, %v598
    %v613 = vrot.slane %v612, 4
    %v614 = vadd.f32 %v612, %v613
    %v615 = vrot.slane %v614, 2
    %v616 = vadd.f32 %v614, %v615
    %v617 = vrot.slane %v616, 1
    %v618 = vadd.f32 %v616, %v617
    %v619 = vadd.f32 %v591, %v599
    %v620 = vrot.slane %v619, 4
    %v621 = vadd.f32 %v619, %v620
    %v622 = vrot.slane %v621, 2
    %v623 = vadd.f32 %v621, %v622
    %v624 = vrot.slane %v623, 1
    %v625 = vadd.f32 %v623, %v624
    %v626 = vadd.f32 %v592, %v600
    %v627 = vrot.slane %v626, 4
    %v628 = vadd.f32 %v626, %v627
    %v629 = vrot.slane %v628, 2
    %v630 = vadd.f32 %v628, %v629
    %v631 = vrot.slane %v630, 1
    %v632 = vadd.f32 %v630, %v631
    %v633 = vadd.f32 %v593, %v601
    %v634 = vrot.slane %v633, 4
    %v635 = vadd.f32 %v633, %v634
    %v636 = vrot.slane %v635, 2
    %v637 = vadd.f32 %v635, %v636
    %v638 = vrot.slane %v637, 1
    %v639 = vadd.f32 %v637, %v638
    %v640 = vadd.f32 %v594, %v602
    %v641 = vrot.slane %v640, 4
    %v642 = vadd.f32 %v640, %v641
    %v643 = vrot.slane %v642, 2
    %v644 = vadd.f32 %v642, %v643
    %v645 = vrot.slane %v644, 1
    %v646 = vadd.f32 %v644, %v645
    %v647 = vadd.f32 %v595, %v603
    %v648 = vrot.slane %v647, 4
    %v649 = vadd.f32 %v647, %v648
    %v650 = vrot.slane %v649, 2
    %v651 = vadd.f32 %v649, %v650
    %v652 = vrot.slane %v651, 1
    %v653 = vadd.f32 %v651, %v652
    %v654 = vadd.f32 %v596, %v604
    %v655 = vrot.slane %v654, 4
    %v656 = vadd.f32 %v654, %v655
    %v657 = vrot.slane %v656, 2
    %v658 = vadd.f32 %v656, %v657
    %v659 = vrot.slane %v658, 1
    %v660 = vadd.f32 %v658, %v659
    %v661 = vmul.f32 %v611, %v580
    %v662 = vmul.f32 %v618, %v580
    %v663 = vmul.f32 %v625, %v580
    %v664 = vmul.f32 %v632, %v580
    %v665 = vmul.f32 %v639, %v580
    %v666 = vmul.f32 %v646, %v580
    %v667 = vmul.f32 %v653, %v580
    %v668 = vmul.f32 %v660, %v580
    %v669 = vmul.f32 %v581, %v581
    %v670 = vmul.f32 %v582, %v582
    %v671 = vmul.f32 %v583, %v583
    %v672 = vmul.f32 %v584, %v584
    %v673 = vmul.f32 %v585, %v585
    %v674 = vmul.f32 %v586, %v586
    %v675 = vmul.f32 %v587, %v587
    %v676 = vmul.f32 %v588, %v588
    %v677 = vsub.f32 %v661, %v669
    %v678 = vsub.f32 %v662, %v670
    %v679 = vsub.f32 %v663, %v671
    %v680 = vsub.f32 %v664, %v672
    %v681 = vsub.f32 %v665, %v673
    %v682 = vsub.f32 %v666, %v674
    %v683 = vsub.f32 %v667, %v675
    %v684 = vsub.f32 %v668, %v676
    %v685 = vadd.f32 %v677, 1e-05
    %v686 = vadd.f32 %v678, 1e-05
    %v687 = vadd.f32 %v679, 1e-05
    %v688 = vadd.f32 %v680, 1e-05
    %v689 = vadd.f32 %v681, 1e-05
    %v690 = vadd.f32 %v682, 1e-05
    %v691 = vadd.f32 %v683, 1e-05
    %v692 = vadd.f32 %v684, 1e-05
    %v693 = vrsqrt.pop %v685
    %v694 = vrsqrt.pop %v686
    %v695 = vrsqrt.pop %v687
    %v696 = vrsqrt.pop %v688
    %v697 = vrsqrt.pop %v689
    %v698 = vrsqrt.pop %v690
    %v699 = vrsqrt.pop %v691
    %v700 = vrsqrt.pop %v692
    %v709 = vcombine.low %v693, %v694
    %v710 = vcombine.low %v695, %v696
    %v711 = vcombine.low %v697, %v698
    %v712 = vcombine.low %v699, %v700
    %v714 = vunpack.c.l.s4 1966171168
    %v715 = vunpack.c.0.s8 %v714
    %v716 = vlaneseq
    %v717 = vshrl.u32 %v716, 7
    %v718 = vsub.s32 %v715, %v717
    %v719 = vrot.slane %v709, %v718
    %v721 = vunpack.c.l.s4 1966171168
    %v722 = vunpack.c.0.s8 %v721
    %v723 = vlaneseq
    %v724 = vshrl.u32 %v723, 7
    %v725 = vsub.s32 %v722, %v724
    %v726 = vrot.slane %v710, %v725
    %v728 = vunpack.c.l.s4 1966171168
    %v729 = vunpack.c.0.s8 %v728
    %v730 = vlaneseq
    %v731 = vshrl.u32 %v730, 7
    %v732 = vsub.s32 %v729, %v731
    %v733 = vrot.slane %v711, %v732
    %v735 = vunpack.c.l.s4 1966171168
    %v736 = vunpack.c.0.s8 %v735
    %v737 = vlaneseq
    %v738 = vshrl.u32 %v737, 7
    %v739 = vsub.s32 %v736, %v738
    %v740 = vrot.slane %v712, %v739
    %v741 = vcombine.low %v719, %v726
    %v742 = vcombine.low %v733, %v740
    %v744 = vunpack.c.l.s4 1966171168
    %v745 = vunpack.c.0.s8 %v744
    %v746 = vlaneseq
    %v747 = vshrl.u32 %v746, 7
    %v748 = vsub.s32 %v745, %v747
    %v749 = vrot.slane %v741, %v748
    %v751 = vunpack.c.l.s4 1966171168
    %v752 = vunpack.c.0.s8 %v751
    %v753 = vlaneseq
    %v754 = vshrl.u32 %v753, 7
    %v755 = vsub.s32 %v752, %v754
    %v756 = vrot.slane %v742, %v755
    %v757 = vcombine.low %v749, %v756
    %v759 = vmul.f32 %v519, %v757
    %v761 = vlaneseq
    %v762 = vshrl.u32 %v761, 7
    %v763 = vsub.s32 0, %v762
    %v764 = vrot.slane %v759, %v763
    %v765 = vlaneseq
    %v766 = vshrl.u32 %v765, 7
    %v767 = vsub.s32 1, %v766
    %v768 = vrot.slane %v759, %v767
    %v769 = vlaneseq
    %v770 = vshrl.u32 %v769, 7
    %v771 = vsub.s32 2, %v770
    %v772 = vrot.slane %v759, %v771
    %v773 = vlaneseq
    %v774 = vshrl.u32 %v773, 7
    %v775 = vsub.s32 3, %v774
    %v776 = vrot.slane %v759, %v775
    %v777 = vlaneseq
    %v778 = vshrl.u32 %v777, 7
    %v779 = vsub.s32 4, %v778
    %v780 = vrot.slane %v759, %v779
    %v781 = vlaneseq
    %v782 = vshrl.u32 %v781, 7
    %v783 = vsub.s32 5, %v782
    %v784 = vrot.slane %v759, %v783
    %v785 = vlaneseq
    %v786 = vshrl.u32 %v785, 7
    %v787 = vsub.s32 6, %v786
    %v788 = vrot.slane %v759, %v787
    %v789 = vlaneseq
    %v790 = vshrl.u32 %v789, 7
    %v791 = vsub.s32 7, %v790
    %v792 = vrot.slane %v759, %v791
    %v801 = vmul.f32 %v581, %v764
    %v802 = vmul.f32 %v582, %v768
    %v803 = vmul.f32 %v583, %v772
    %v804 = vmul.f32 %v584, %v776
    %v805 = vmul.f32 %v585, %v780
    %v806 = vmul.f32 %v586, %v784
    %v807 = vmul.f32 %v587, %v788
    %v808 = vmul.f32 %v588, %v792
    %v817 = vcombine.low %v801, %v802
    %v818 = vcombine.low %v803, %v804
    %v819 = vcombine.low %v805, %v806
    %v820 = vcombine.low %v807, %v808
    %v822 = vunpack.c.l.s4 1966171168
    %v823 = vunpack.c.0.s8 %v822
    %v824 = vlaneseq
    %v825 = vshrl.u32 %v824, 7
    %v826 = vsub.s32 %v823, %v825
    %v827 = vrot.slane %v817, %v826
    %v829 = vunpack.c.l.s4 1966171168
    %v830 = vunpack.c.0.s8 %v829
    %v831 = vlaneseq
    %v832 = vshrl.u32 %v831, 7
    %v833 = vsub.s32 %v830, %v832
    %v834 = vrot.slane %v818, %v833
    %v836 = vunpack.c.l.s4 1966171168
    %v837 = vunpack.c.0.s8 %v836
    %v838 = vlaneseq
    %v839 = vshrl.u32 %v838, 7
    %v840 = vsub.s32 %v837, %v839
    %v841 = vrot.slane %v819, %v840
    %v843 = vunpack.c.l.s4 1966171168
    %v844 = vunpack.c.0.s8 %v843
    %v845 = vlaneseq
    %v846 = vshrl.u32 %v845, 7
    %v847 = vsub.s32 %v844, %v846
    %v848 = vrot.slane %v820, %v847
    %v849 = vcombine.low %v827, %v834
    %v850 = vcombine.low %v841, %v848
    %v852 = vunpack.c.l.s4 1966171168
    %v853 = vunpack.c.0.s8 %v852
    %v854 = vlaneseq
    %v855 = vshrl.u32 %v854, 7
    %v856 = vsub.s32 %v853, %v855
    %v857 = vrot.slane %v849, %v856
    %v859 = vunpack.c.l.s4 1966171168
    %v860 = vunpack.c.0.s8 %v859
    %v861 = vlaneseq
    %v862 = vshrl.u32 %v861, 7
    %v863 = vsub.s32 %v860, %v862
    %v864 = vrot.slane %v850, %v863
    %v865 = vcombine.low %v857, %v864
    %v867 = vsub.f32 %v523, %v865
    %v868 = vmul.f32 %v380, %v764
    %v869 = vmul.f32 %v382, %v768
    %v870 = vmul.f32 %v423, %v772
    %v871 = vmul.f32 %v425, %v776
    %v872 = vmul.f32 %v466, %v780
    %v873 = vmul.f32 %v468, %v784
    %v874 = vmul.f32 %v509, %v788
    %v875 = vmul.f32 %v511, %v792
    %v876 = vmul.f32 %v384, %v764
    %v877 = vmul.f32 %v386, %v768
    %v878 = vmul.f32 %v427, %v772
    %v879 = vmul.f32 %v429, %v776
    %v880 = vmul.f32 %v470, %v780
    %v881 = vmul.f32 %v472, %v784
    %v882 = vmul.f32 %v513, %v788
    %v883 = vmul.f32 %v515, %v792
    %v885 = vlaneseq
    %v886 = vshrl.u32 %v885, 7
    %v887 = vsub.s32 0, %v886
    %v888 = vrot.slane %v867, %v887
    %v889 = vlaneseq
    %v890 = vshrl.u32 %v889, 7
    %v891 = vsub.s32 1, %v890
    %v892 = vrot.slane %v867, %v891
    %v893 = vlaneseq
    %v894 = vshrl.u32 %v893, 7
    %v895 = vsub.s32 2, %v894
    %v896 = vrot.slane %v867, %v895
    %v897 = vlaneseq
    %v898 = vshrl.u32 %v897, 7
    %v899 = vsub.s32 3, %v898
    %v900 = vrot.slane %v867, %v899
    %v901 = vlaneseq
    %v902 = vshrl.u32 %v901, 7
    %v903 = vsub.s32 4, %v902
    %v904 = vrot.slane %v867, %v903
    %v905 = vlaneseq
    %v906 = vshrl.u32 %v905, 7
    %v907 = vsub.s32 5, %v906
    %v908 = vrot.slane %v867, %v907
    %v909 = vlaneseq
    %v910 = vshrl.u32 %v909, 7
    %v911 = vsub.s32 6, %v910
    %v912 = vrot.slane %v867, %v911
    %v913 = vlaneseq
    %v914 = vshrl.u32 %v913, 7
    %v915 = vsub.s32 7, %v914
    %v916 = vrot.slane %v867, %v915
    %v925 = vadd.f32 %v868, %v888
    %v926 = vadd.f32 %v869, %v892
    %v927 = vadd.f32 %v870, %v896
    %v928 = vadd.f32 %v871, %v900
    %v929 = vadd.f32 %v872, %v904
    %v930 = vadd.f32 %v873, %v908
    %v931 = vadd.f32 %v874, %v912
    %v932 = vadd.f32 %v875, %v916
    %v933 = vadd.f32 %v876, %v888
    %v934 = vadd.f32 %v877, %v892
    %v935 = vadd.f32 %v878, %v896
    %v936 = vadd.f32 %v879, %v900
    %v937 = vadd.f32 %v880, %v904
    %v938 = vadd.f32 %v881, %v908
    %v939 = vadd.f32 %v882, %v912
    %v940 = vadd.f32 %v883, %v916
    %v941 = vmax.f32 %v925, 0.0
    %v942 = vmax.f32 %v926, 0.0
    %v943 = vmax.f32 %v927, 0.0
    %v944 = vmax.f32 %v928, 0.0
    %v945 = vmax.f32 %v929, 0.0
    %v946 = vmax.f32 %v930, 0.0
    %v947 = vmax.f32 %v931, 0.0
    %v948 = vmax.f32 %v932, 0.0
    %v949 = vmax.f32 %v933, 0.0
    %v950 = vmax.f32 %v934, 0.0
    %v951 = vmax.f32 %v935, 0.0
    %v952 = vmax.f32 %v936, 0.0
    %v953 = vmax.f32 %v937, 0.0
    %v954 = vmax.f32 %v938, 0.0
    %v955 = vmax.f32 %v939, 0.0
    %v956 = vmax.f32 %v940, 0.0
    %v957 = vpack.c.bf16 %v949, %v941
    %v958 = vpack.c.bf16 %v950, %v942
    %v959 = vpack.c.bf16 %v951, %v943
    %v960 = vpack.c.bf16 %v952, %v944
    %v961 = vpack.c.bf16 %v953, %v945
    %v962 = vpack.c.bf16 %v954, %v946
    %v963 = vpack.c.bf16 %v955, %v947
    %v964 = vpack.c.bf16 %v956, %v948
    %s965 = smul.u32 4, 128
    %s966 = smul.u32 %s965, 8
    %s967 = sshll.u32 %s966, 4
    %968 = dma.done [#allocation4], %s967
    %v969 = vld [vmem:[#allocation2] sm:$0xff]
    %v970 = vld [vmem:[#allocation2 + $0x8] sm:$0xff]
    %v971 = vld [vmem:[#allocation2 + $0x10] sm:$0xff]
    %v972 = vld [vmem:[#allocation2 + $0x18] sm:$0xff]
    %v973 = vld [vmem:[#allocation2 + $0x20] sm:$0xff]
    %v974 = vld [vmem:[#allocation2 + $0x28] sm:$0xff]
    %v975 = vld [vmem:[#allocation2 + $0x30] sm:$0xff]
    %v976 = vld [vmem:[#allocation2 + $0x38] sm:$0xff]
    %v977 = vld [vmem:[#allocation2 + $0x40] sm:$0xff]
    %v978 = vld [vmem:[#allocation2 + $0x48] sm:$0xff]
    %v979 = vld [vmem:[#allocation2 + $0x50] sm:$0xff]
    %v980 = vld [vmem:[#allocation2 + $0x58] sm:$0xff]
    %v981 = vld [vmem:[#allocation2 + $0x60] sm:$0xff]
    %v982 = vld [vmem:[#allocation2 + $0x68] sm:$0xff]
    %v983 = vld [vmem:[#allocation2 + $0x70] sm:$0xff]
    %v984 = vld [vmem:[#allocation2 + $0x78] sm:$0xff]
    %v985 = vld [vmem:[#allocation2 + $0x80] sm:$0xff]
    %v986 = vld [vmem:[#allocation2 + $0x88] sm:$0xff]
    %v987 = vld [vmem:[#allocation2 + $0x90] sm:$0xff]
    %v988 = vld [vmem:[#allocation2 + $0x98] sm:$0xff]
    %v989 = vld [vmem:[#allocation2 + $0xa0] sm:$0xff]
    %v990 = vld [vmem:[#allocation2 + $0xa8] sm:$0xff]
    %v991 = vld [vmem:[#allocation2 + $0xb0] sm:$0xff]
    %v992 = vld [vmem:[#allocation2 + $0xb8] sm:$0xff]
    %v993 = vld [vmem:[#allocation2 + $0xc0] sm:$0xff]
    %v994 = vld [vmem:[#allocation2 + $0xc8] sm:$0xff]
    %v995 = vld [vmem:[#allocation2 + $0xd0] sm:$0xff]
    %v996 = vld [vmem:[#allocation2 + $0xd8] sm:$0xff]
    %v997 = vld [vmem:[#allocation2 + $0xe0] sm:$0xff]
    %v998 = vld [vmem:[#allocation2 + $0xe8] sm:$0xff]
    %v999 = vld [vmem:[#allocation2 + $0xf0] sm:$0xff]
    %v1000 = vld [vmem:[#allocation2 + $0xf8] sm:$0xff]
    %v1001 = vld [vmem:[#allocation2 + $0x100] sm:$0xff]
    %v1002 = vld [vmem:[#allocation2 + $0x108] sm:$0xff]
    %v1003 = vld [vmem:[#allocation2 + $0x110] sm:$0xff]
    %v1004 = vld [vmem:[#allocation2 + $0x118] sm:$0xff]
    %v1005 = vld [vmem:[#allocation2 + $0x120] sm:$0xff]
    %v1006 = vld [vmem:[#allocation2 + $0x128] sm:$0xff]
    %v1007 = vld [vmem:[#allocation2 + $0x130] sm:$0xff]
    %v1008 = vld [vmem:[#allocation2 + $0x138] sm:$0xff]
    %v1009 = vld [vmem:[#allocation2 + $0x140] sm:$0xff]
    %v1010 = vld [vmem:[#allocation2 + $0x148] sm:$0xff]
    %v1011 = vld [vmem:[#allocation2 + $0x150] sm:$0xff]
    %v1012 = vld [vmem:[#allocation2 + $0x158] sm:$0xff]
    %v1013 = vld [vmem:[#allocation2 + $0x160] sm:$0xff]
    %v1014 = vld [vmem:[#allocation2 + $0x168] sm:$0xff]
    %v1015 = vld [vmem:[#allocation2 + $0x170] sm:$0xff]
    %v1016 = vld [vmem:[#allocation2 + $0x178] sm:$0xff]
    %v1017 = vld [vmem:[#allocation2 + $0x180] sm:$0xff]
    %v1018 = vld [vmem:[#allocation2 + $0x188] sm:$0xff]
    %v1019 = vld [vmem:[#allocation2 + $0x190] sm:$0xff]
    %v1020 = vld [vmem:[#allocation2 + $0x198] sm:$0xff]
    %v1021 = vld [vmem:[#allocation2 + $0x1a0] sm:$0xff]
    %v1022 = vld [vmem:[#allocation2 + $0x1a8] sm:$0xff]
    %v1023 = vld [vmem:[#allocation2 + $0x1b0] sm:$0xff]
    %v1024 = vld [vmem:[#allocation2 + $0x1b8] sm:$0xff]
    %v1025 = vld [vmem:[#allocation2 + $0x1c0] sm:$0xff]
    %v1026 = vld [vmem:[#allocation2 + $0x1c8] sm:$0xff]
    %v1027 = vld [vmem:[#allocation2 + $0x1d0] sm:$0xff]
    %v1028 = vld [vmem:[#allocation2 + $0x1d8] sm:$0xff]
    %v1029 = vld [vmem:[#allocation2 + $0x1e0] sm:$0xff]
    %v1030 = vld [vmem:[#allocation2 + $0x1e8] sm:$0xff]
    %v1031 = vld [vmem:[#allocation2 + $0x1f0] sm:$0xff]
    %v1032 = vld [vmem:[#allocation2 + $0x1f8] sm:$0xff]
    %v1033 = vld [vmem:[#allocation2 + $0x200] sm:$0xff]
    %v1034 = vld [vmem:[#allocation2 + $0x208] sm:$0xff]
    %v1035 = vld [vmem:[#allocation2 + $0x210] sm:$0xff]
    %v1036 = vld [vmem:[#allocation2 + $0x218] sm:$0xff]
    %v1037 = vld [vmem:[#allocation2 + $0x220] sm:$0xff]
    %v1038 = vld [vmem:[#allocation2 + $0x228] sm:$0xff]
    %v1039 = vld [vmem:[#allocation2 + $0x230] sm:$0xff]
    %v1040 = vld [vmem:[#allocation2 + $0x238] sm:$0xff]
    %v1041 = vld [vmem:[#allocation2 + $0x240] sm:$0xff]
    %v1042 = vld [vmem:[#allocation2 + $0x248] sm:$0xff]
    %v1043 = vld [vmem:[#allocation2 + $0x250] sm:$0xff]
    %v1044 = vld [vmem:[#allocation2 + $0x258] sm:$0xff]
    %v1045 = vld [vmem:[#allocation2 + $0x260] sm:$0xff]
    %v1046 = vld [vmem:[#allocation2 + $0x268] sm:$0xff]
    %v1047 = vld [vmem:[#allocation2 + $0x270] sm:$0xff]
    %v1048 = vld [vmem:[#allocation2 + $0x278] sm:$0xff]
    %v1049 = vld [vmem:[#allocation2 + $0x280] sm:$0xff]
    %v1050 = vld [vmem:[#allocation2 + $0x288] sm:$0xff]
    %v1051 = vld [vmem:[#allocation2 + $0x290] sm:$0xff]
    %v1052 = vld [vmem:[#allocation2 + $0x298] sm:$0xff]
    %v1053 = vld [vmem:[#allocation2 + $0x2a0] sm:$0xff]
    %v1054 = vld [vmem:[#allocation2 + $0x2a8] sm:$0xff]
    %v1055 = vld [vmem:[#allocation2 + $0x2b0] sm:$0xff]
    %v1056 = vld [vmem:[#allocation2 + $0x2b8] sm:$0xff]
    %v1057 = vld [vmem:[#allocation2 + $0x2c0] sm:$0xff]
    %v1058 = vld [vmem:[#allocation2 + $0x2c8] sm:$0xff]
    %v1059 = vld [vmem:[#allocation2 + $0x2d0] sm:$0xff]
    %v1060 = vld [vmem:[#allocation2 + $0x2d8] sm:$0xff]
    %v1061 = vld [vmem:[#allocation2 + $0x2e0] sm:$0xff]
    %v1062 = vld [vmem:[#allocation2 + $0x2e8] sm:$0xff]
    %v1063 = vld [vmem:[#allocation2 + $0x2f0] sm:$0xff]
    %v1064 = vld [vmem:[#allocation2 + $0x2f8] sm:$0xff]
    %v1065 = vld [vmem:[#allocation2 + $0x300] sm:$0xff]
    %v1066 = vld [vmem:[#allocation2 + $0x308] sm:$0xff]
    %v1067 = vld [vmem:[#allocation2 + $0x310] sm:$0xff]
    %v1068 = vld [vmem:[#allocation2 + $0x318] sm:$0xff]
    %v1069 = vld [vmem:[#allocation2 + $0x320] sm:$0xff]
    %v1070 = vld [vmem:[#allocation2 + $0x328] sm:$0xff]
    %v1071 = vld [vmem:[#allocation2 + $0x330] sm:$0xff]
    %v1072 = vld [vmem:[#allocation2 + $0x338] sm:$0xff]
    %v1073 = vld [vmem:[#allocation2 + $0x340] sm:$0xff]
    %v1074 = vld [vmem:[#allocation2 + $0x348] sm:$0xff]
    %v1075 = vld [vmem:[#allocation2 + $0x350] sm:$0xff]
    %v1076 = vld [vmem:[#allocation2 + $0x358] sm:$0xff]
    %v1077 = vld [vmem:[#allocation2 + $0x360] sm:$0xff]
    %v1078 = vld [vmem:[#allocation2 + $0x368] sm:$0xff]
    %v1079 = vld [vmem:[#allocation2 + $0x370] sm:$0xff]
    %v1080 = vld [vmem:[#allocation2 + $0x378] sm:$0xff]
    %v1081 = vld [vmem:[#allocation2 + $0x380] sm:$0xff]
    %v1082 = vld [vmem:[#allocation2 + $0x388] sm:$0xff]
    %v1083 = vld [vmem:[#allocation2 + $0x390] sm:$0xff]
    %v1084 = vld [vmem:[#allocation2 + $0x398] sm:$0xff]
    %v1085 = vld [vmem:[#allocation2 + $0x3a0] sm:$0xff]
    %v1086 = vld [vmem:[#allocation2 + $0x3a8] sm:$0xff]
    %v1087 = vld [vmem:[#allocation2 + $0x3b0] sm:$0xff]
    %v1088 = vld [vmem:[#allocation2 + $0x3b8] sm:$0xff]
    %v1089 = vld [vmem:[#allocation2 + $0x3c0] sm:$0xff]
    %v1090 = vld [vmem:[#allocation2 + $0x3c8] sm:$0xff]
    %v1091 = vld [vmem:[#allocation2 + $0x3d0] sm:$0xff]
    %v1092 = vld [vmem:[#allocation2 + $0x3d8] sm:$0xff]
    %v1093 = vld [vmem:[#allocation2 + $0x3e0] sm:$0xff]
    %v1094 = vld [vmem:[#allocation2 + $0x3e8] sm:$0xff]
    %v1095 = vld [vmem:[#allocation2 + $0x3f0] sm:$0xff]
    %v1096 = vld [vmem:[#allocation2 + $0x3f8] sm:$0xff]
    %v1097 = vld [vmem:[#allocation2 + $0x400] sm:$0xff]
    %v1098 = vld [vmem:[#allocation2 + $0x408] sm:$0xff]
    %v1099 = vld [vmem:[#allocation2 + $0x410] sm:$0xff]
    %v1100 = vld [vmem:[#allocation2 + $0x418] sm:$0xff]
    %v1101 = vld [vmem:[#allocation2 + $0x420] sm:$0xff]
    %v1102 = vld [vmem:[#allocation2 + $0x428] sm:$0xff]
    %v1103 = vld [vmem:[#allocation2 + $0x430] sm:$0xff]
    %v1104 = vld [vmem:[#allocation2 + $0x438] sm:$0xff]
    %v1105 = vld [vmem:[#allocation2 + $0x440] sm:$0xff]
    %v1106 = vld [vmem:[#allocation2 + $0x448] sm:$0xff]
    %v1107 = vld [vmem:[#allocation2 + $0x450] sm:$0xff]
    %v1108 = vld [vmem:[#allocation2 + $0x458] sm:$0xff]
    %v1109 = vld [vmem:[#allocation2 + $0x460] sm:$0xff]
    %v1110 = vld [vmem:[#allocation2 + $0x468] sm:$0xff]
    %v1111 = vld [vmem:[#allocation2 + $0x470] sm:$0xff]
    %v1112 = vld [vmem:[#allocation2 + $0x478] sm:$0xff]
    %v1113 = vld [vmem:[#allocation2 + $0x480] sm:$0xff]
    %v1114 = vld [vmem:[#allocation2 + $0x488] sm:$0xff]
    %v1115 = vld [vmem:[#allocation2 + $0x490] sm:$0xff]
    %v1116 = vld [vmem:[#allocation2 + $0x498] sm:$0xff]
    %v1117 = vld [vmem:[#allocation2 + $0x4a0] sm:$0xff]
    %v1118 = vld [vmem:[#allocation2 + $0x4a8] sm:$0xff]
    %v1119 = vld [vmem:[#allocation2 + $0x4b0] sm:$0xff]
    %v1120 = vld [vmem:[#allocation2 + $0x4b8] sm:$0xff]
    %v1121 = vld [vmem:[#allocation2 + $0x4c0] sm:$0xff]
    %v1122 = vld [vmem:[#allocation2 + $0x4c8] sm:$0xff]
    %v1123 = vld [vmem:[#allocation2 + $0x4d0] sm:$0xff]
    %v1124 = vld [vmem:[#allocation2 + $0x4d8] sm:$0xff]
    %v1125 = vld [vmem:[#allocation2 + $0x4e0] sm:$0xff]
    %v1126 = vld [vmem:[#allocation2 + $0x4e8] sm:$0xff]
    %v1127 = vld [vmem:[#allocation2 + $0x4f0] sm:$0xff]
    %v1128 = vld [vmem:[#allocation2 + $0x4f8] sm:$0xff]
    %v1129 = vld [vmem:[#allocation2 + $0x500] sm:$0xff]
    %v1130 = vld [vmem:[#allocation2 + $0x508] sm:$0xff]
    %v1131 = vld [vmem:[#allocation2 + $0x510] sm:$0xff]
    %v1132 = vld [vmem:[#allocation2 + $0x518] sm:$0xff]
    %v1133 = vld [vmem:[#allocation2 + $0x520] sm:$0xff]
    %v1134 = vld [vmem:[#allocation2 + $0x528] sm:$0xff]
    %v1135 = vld [vmem:[#allocation2 + $0x530] sm:$0xff]
    %v1136 = vld [vmem:[#allocation2 + $0x538] sm:$0xff]
    %v1137 = vld [vmem:[#allocation2 + $0x540] sm:$0xff]
    %v1138 = vld [vmem:[#allocation2 + $0x548] sm:$0xff]
    %v1139 = vld [vmem:[#allocation2 + $0x550] sm:$0xff]
    %v1140 = vld [vmem:[#allocation2 + $0x558] sm:$0xff]
    %v1141 = vld [vmem:[#allocation2 + $0x560] sm:$0xff]
    %v1142 = vld [vmem:[#allocation2 + $0x568] sm:$0xff]
    %v1143 = vld [vmem:[#allocation2 + $0x570] sm:$0xff]
    %v1144 = vld [vmem:[#allocation2 + $0x578] sm:$0xff]
    %v1145 = vld [vmem:[#allocation2 + $0x580] sm:$0xff]
    %v1146 = vld [vmem:[#allocation2 + $0x588] sm:$0xff]
    %v1147 = vld [vmem:[#allocation2 + $0x590] sm:$0xff]
    %v1148 = vld [vmem:[#allocation2 + $0x598] sm:$0xff]
    %v1149 = vld [vmem:[#allocation2 + $0x5a0] sm:$0xff]
    %v1150 = vld [vmem:[#allocation2 + $0x5a8] sm:$0xff]
    %v1151 = vld [vmem:[#allocation2 + $0x5b0] sm:$0xff]
    %v1152 = vld [vmem:[#allocation2 + $0x5b8] sm:$0xff]
    %v1153 = vld [vmem:[#allocation2 + $0x5c0] sm:$0xff]
    %v1154 = vld [vmem:[#allocation2 + $0x5c8] sm:$0xff]
    %v1155 = vld [vmem:[#allocation2 + $0x5d0] sm:$0xff]
    %v1156 = vld [vmem:[#allocation2 + $0x5d8] sm:$0xff]
    %v1157 = vld [vmem:[#allocation2 + $0x5e0] sm:$0xff]
    %v1158 = vld [vmem:[#allocation2 + $0x5e8] sm:$0xff]
    %v1159 = vld [vmem:[#allocation2 + $0x5f0] sm:$0xff]
    %v1160 = vld [vmem:[#allocation2 + $0x5f8] sm:$0xff]
    %v1161 = vld [vmem:[#allocation2 + $0x600] sm:$0xff]
    %v1162 = vld [vmem:[#allocation2 + $0x608] sm:$0xff]
    %v1163 = vld [vmem:[#allocation2 + $0x610] sm:$0xff]
    %v1164 = vld [vmem:[#allocation2 + $0x618] sm:$0xff]
    %v1165 = vld [vmem:[#allocation2 + $0x620] sm:$0xff]
    %v1166 = vld [vmem:[#allocation2 + $0x628] sm:$0xff]
    %v1167 = vld [vmem:[#allocation2 + $0x630] sm:$0xff]
    %v1168 = vld [vmem:[#allocation2 + $0x638] sm:$0xff]
    %v1169 = vld [vmem:[#allocation2 + $0x640] sm:$0xff]
    %v1170 = vld [vmem:[#allocation2 + $0x648] sm:$0xff]
    %v1171 = vld [vmem:[#allocation2 + $0x650] sm:$0xff]
    %v1172 = vld [vmem:[#allocation2 + $0x658] sm:$0xff]
    %v1173 = vld [vmem:[#allocation2 + $0x660] sm:$0xff]
    %v1174 = vld [vmem:[#allocation2 + $0x668] sm:$0xff]
    %v1175 = vld [vmem:[#allocation2 + $0x670] sm:$0xff]
    %v1176 = vld [vmem:[#allocation2 + $0x678] sm:$0xff]
    %v1177 = vld [vmem:[#allocation2 + $0x680] sm:$0xff]
    %v1178 = vld [vmem:[#allocation2 + $0x688] sm:$0xff]
    %v1179 = vld [vmem:[#allocation2 + $0x690] sm:$0xff]
    %v1180 = vld [vmem:[#allocation2 + $0x698] sm:$0xff]
    %v1181 = vld [vmem:[#allocation2 + $0x6a0] sm:$0xff]
    %v1182 = vld [vmem:[#allocation2 + $0x6a8] sm:$0xff]
    %v1183 = vld [vmem:[#allocation2 + $0x6b0] sm:$0xff]
    %v1184 = vld [vmem:[#allocation2 + $0x6b8] sm:$0xff]
    %v1185 = vld [vmem:[#allocation2 + $0x6c0] sm:$0xff]
    %v1186 = vld [vmem:[#allocation2 + $0x6c8] sm:$0xff]
    %v1187 = vld [vmem:[#allocation2 + $0x6d0] sm:$0xff]
    %v1188 = vld [vmem:[#allocation2 + $0x6d8] sm:$0xff]
    %v1189 = vld [vmem:[#allocation2 + $0x6e0] sm:$0xff]
    %v1190 = vld [vmem:[#allocation2 + $0x6e8] sm:$0xff]
    %v1191 = vld [vmem:[#allocation2 + $0x6f0] sm:$0xff]
    %v1192 = vld [vmem:[#allocation2 + $0x6f8] sm:$0xff]
    %v1193 = vld [vmem:[#allocation2 + $0x700] sm:$0xff]
    %v1194 = vld [vmem:[#allocation2 + $0x708] sm:$0xff]
    %v1195 = vld [vmem:[#allocation2 + $0x710] sm:$0xff]
    %v1196 = vld [vmem:[#allocation2 + $0x718] sm:$0xff]
    %v1197 = vld [vmem:[#allocation2 + $0x720] sm:$0xff]
    %v1198 = vld [vmem:[#allocation2 + $0x728] sm:$0xff]
    %v1199 = vld [vmem:[#allocation2 + $0x730] sm:$0xff]
    %v1200 = vld [vmem:[#allocation2 + $0x738] sm:$0xff]
    %v1201 = vld [vmem:[#allocation2 + $0x740] sm:$0xff]
    %v1202 = vld [vmem:[#allocation2 + $0x748] sm:$0xff]
    %v1203 = vld [vmem:[#allocation2 + $0x750] sm:$0xff]
    %v1204 = vld [vmem:[#allocation2 + $0x758] sm:$0xff]
    %v1205 = vld [vmem:[#allocation2 + $0x760] sm:$0xff]
    %v1206 = vld [vmem:[#allocation2 + $0x768] sm:$0xff]
    %v1207 = vld [vmem:[#allocation2 + $0x770] sm:$0xff]
    %v1208 = vld [vmem:[#allocation2 + $0x778] sm:$0xff]
    %v1209 = vld [vmem:[#allocation2 + $0x780] sm:$0xff]
    %v1210 = vld [vmem:[#allocation2 + $0x788] sm:$0xff]
    %v1211 = vld [vmem:[#allocation2 + $0x790] sm:$0xff]
    %v1212 = vld [vmem:[#allocation2 + $0x798] sm:$0xff]
    %v1213 = vld [vmem:[#allocation2 + $0x7a0] sm:$0xff]
    %v1214 = vld [vmem:[#allocation2 + $0x7a8] sm:$0xff]
    %v1215 = vld [vmem:[#allocation2 + $0x7b0] sm:$0xff]
    %v1216 = vld [vmem:[#allocation2 + $0x7b8] sm:$0xff]
    %v1217 = vld [vmem:[#allocation2 + $0x7c0] sm:$0xff]
    %v1218 = vld [vmem:[#allocation2 + $0x7c8] sm:$0xff]
    %v1219 = vld [vmem:[#allocation2 + $0x7d0] sm:$0xff]
    %v1220 = vld [vmem:[#allocation2 + $0x7d8] sm:$0xff]
    %v1221 = vld [vmem:[#allocation2 + $0x7e0] sm:$0xff]
    %v1222 = vld [vmem:[#allocation2 + $0x7e8] sm:$0xff]
    %v1223 = vld [vmem:[#allocation2 + $0x7f0] sm:$0xff]
    %v1224 = vld [vmem:[#allocation2 + $0x7f8] sm:$0xff]
    %v1225 = vld [vmem:[#allocation2 + $0x800] sm:$0xff]
    %v1226 = vld [vmem:[#allocation2 + $0x808] sm:$0xff]
    %v1227 = vld [vmem:[#allocation2 + $0x810] sm:$0xff]
    %v1228 = vld [vmem:[#allocation2 + $0x818] sm:$0xff]
    %v1229 = vld [vmem:[#allocation2 + $0x820] sm:$0xff]
    %v1230 = vld [vmem:[#allocation2 + $0x828] sm:$0xff]
    %v1231 = vld [vmem:[#allocation2 + $0x830] sm:$0xff]
    %v1232 = vld [vmem:[#allocation2 + $0x838] sm:$0xff]
    %v1233 = vld [vmem:[#allocation2 + $0x840] sm:$0xff]
    %v1234 = vld [vmem:[#allocation2 + $0x848] sm:$0xff]
    %v1235 = vld [vmem:[#allocation2 + $0x850] sm:$0xff]
    %v1236 = vld [vmem:[#allocation2 + $0x858] sm:$0xff]
    %v1237 = vld [vmem:[#allocation2 + $0x860] sm:$0xff]
    %v1238 = vld [vmem:[#allocation2 + $0x868] sm:$0xff]
    %v1239 = vld [vmem:[#allocation2 + $0x870] sm:$0xff]
    %v1240 = vld [vmem:[#allocation2 + $0x878] sm:$0xff]
    %v1241 = vld [vmem:[#allocation2 + $0x880] sm:$0xff]
    %v1242 = vld [vmem:[#allocation2 + $0x888] sm:$0xff]
    %v1243 = vld [vmem:[#allocation2 + $0x890] sm:$0xff]
    %v1244 = vld [vmem:[#allocation2 + $0x898] sm:$0xff]
    %v1245 = vld [vmem:[#allocation2 + $0x8a0] sm:$0xff]
    %v1246 = vld [vmem:[#allocation2 + $0x8a8] sm:$0xff]
    %v1247 = vld [vmem:[#allocation2 + $0x8b0] sm:$0xff]
    %v1248 = vld [vmem:[#allocation2 + $0x8b8] sm:$0xff]
    %v1249 = vld [vmem:[#allocation2 + $0x8c0] sm:$0xff]
    %v1250 = vld [vmem:[#allocation2 + $0x8c8] sm:$0xff]
    %v1251 = vld [vmem:[#allocation2 + $0x8d0] sm:$0xff]
    %v1252 = vld [vmem:[#allocation2 + $0x8d8] sm:$0xff]
    %v1253 = vld [vmem:[#allocation2 + $0x8e0] sm:$0xff]
    %v1254 = vld [vmem:[#allocation2 + $0x8e8] sm:$0xff]
    %v1255 = vld [vmem:[#allocation2 + $0x8f0] sm:$0xff]
    %v1256 = vld [vmem:[#allocation2 + $0x8f8] sm:$0xff]
    %v1257 = vld [vmem:[#allocation2 + $0x900] sm:$0xff]
    %v1258 = vld [vmem:[#allocation2 + $0x908] sm:$0xff]
    %v1259 = vld [vmem:[#allocation2 + $0x910] sm:$0xff]
    %v1260 = vld [vmem:[#allocation2 + $0x918] sm:$0xff]
    %v1261 = vld [vmem:[#allocation2 + $0x920] sm:$0xff]
    %v1262 = vld [vmem:[#allocation2 + $0x928] sm:$0xff]
    %v1263 = vld [vmem:[#allocation2 + $0x930] sm:$0xff]
    %v1264 = vld [vmem:[#allocation2 + $0x938] sm:$0xff]
    %v1265 = vld [vmem:[#allocation2 + $0x940] sm:$0xff]
    %v1266 = vld [vmem:[#allocation2 + $0x948] sm:$0xff]
    %v1267 = vld [vmem:[#allocation2 + $0x950] sm:$0xff]
    %v1268 = vld [vmem:[#allocation2 + $0x958] sm:$0xff]
    %v1269 = vld [vmem:[#allocation2 + $0x960] sm:$0xff]
    %v1270 = vld [vmem:[#allocation2 + $0x968] sm:$0xff]
    %v1271 = vld [vmem:[#allocation2 + $0x970] sm:$0xff]
    %v1272 = vld [vmem:[#allocation2 + $0x978] sm:$0xff]
    %v1273 = vld [vmem:[#allocation2 + $0x980] sm:$0xff]
    %v1274 = vld [vmem:[#allocation2 + $0x988] sm:$0xff]
    %v1275 = vld [vmem:[#allocation2 + $0x990] sm:$0xff]
    %v1276 = vld [vmem:[#allocation2 + $0x998] sm:$0xff]
    %v1277 = vld [vmem:[#allocation2 + $0x9a0] sm:$0xff]
    %v1278 = vld [vmem:[#allocation2 + $0x9a8] sm:$0xff]
    %v1279 = vld [vmem:[#allocation2 + $0x9b0] sm:$0xff]
    %v1280 = vld [vmem:[#allocation2 + $0x9b8] sm:$0xff]
    %v1281 = vld [vmem:[#allocation2 + $0x9c0] sm:$0xff]
    %v1282 = vld [vmem:[#allocation2 + $0x9c8] sm:$0xff]
    %v1283 = vld [vmem:[#allocation2 + $0x9d0] sm:$0xff]
    %v1284 = vld [vmem:[#allocation2 + $0x9d8] sm:$0xff]
    %v1285 = vld [vmem:[#allocation2 + $0x9e0] sm:$0xff]
    %v1286 = vld [vmem:[#allocation2 + $0x9e8] sm:$0xff]
    %v1287 = vld [vmem:[#allocation2 + $0x9f0] sm:$0xff]
    %v1288 = vld [vmem:[#allocation2 + $0x9f8] sm:$0xff]
    %v1289 = vld [vmem:[#allocation2 + $0xa00] sm:$0xff]
    %v1290 = vld [vmem:[#allocation2 + $0xa08] sm:$0xff]
    %v1291 = vld [vmem:[#allocation2 + $0xa10] sm:$0xff]
    %v1292 = vld [vmem:[#allocation2 + $0xa18] sm:$0xff]
    %v1293 = vld [vmem:[#allocation2 + $0xa20] sm:$0xff]
    %v1294 = vld [vmem:[#allocation2 + $0xa28] sm:$0xff]
    %v1295 = vld [vmem:[#allocation2 + $0xa30] sm:$0xff]
    %v1296 = vld [vmem:[#allocation2 + $0xa38] sm:$0xff]
    %v1297 = vld [vmem:[#allocation2 + $0xa40] sm:$0xff]
    %v1298 = vld [vmem:[#allocation2 + $0xa48] sm:$0xff]
    %v1299 = vld [vmem:[#allocation2 + $0xa50] sm:$0xff]
    %v1300 = vld [vmem:[#allocation2 + $0xa58] sm:$0xff]
    %v1301 = vld [vmem:[#allocation2 + $0xa60] sm:$0xff]
    %v1302 = vld [vmem:[#allocation2 + $0xa68] sm:$0xff]
    %v1303 = vld [vmem:[#allocation2 + $0xa70] sm:$0xff]
    %v1304 = vld [vmem:[#allocation2 + $0xa78] sm:$0xff]
    %v1305 = vld [vmem:[#allocation2 + $0xa80] sm:$0xff]
    %v1306 = vld [vmem:[#allocation2 + $0xa88] sm:$0xff]
    %v1307 = vld [vmem:[#allocation2 + $0xa90] sm:$0xff]
    %v1308 = vld [vmem:[#allocation2 + $0xa98] sm:$0xff]
    %v1309 = vld [vmem:[#allocation2 + $0xaa0] sm:$0xff]
    %v1310 = vld [vmem:[#allocation2 + $0xaa8] sm:$0xff]
    %v1311 = vld [vmem:[#allocation2 + $0xab0] sm:$0xff]
    %v1312 = vld [vmem:[#allocation2 + $0xab8] sm:$0xff]
    %v1313 = vld [vmem:[#allocation2 + $0xac0] sm:$0xff]
    %v1314 = vld [vmem:[#allocation2 + $0xac8] sm:$0xff]
    %v1315 = vld [vmem:[#allocation2 + $0xad0] sm:$0xff]
    %v1316 = vld [vmem:[#allocation2 + $0xad8] sm:$0xff]
    %v1317 = vld [vmem:[#allocation2 + $0xae0] sm:$0xff]
    %v1318 = vld [vmem:[#allocation2 + $0xae8] sm:$0xff]
    %v1319 = vld [vmem:[#allocation2 + $0xaf0] sm:$0xff]
    %v1320 = vld [vmem:[#allocation2 + $0xaf8] sm:$0xff]
    %v1321 = vld [vmem:[#allocation2 + $0xb00] sm:$0xff]
    %v1322 = vld [vmem:[#allocation2 + $0xb08] sm:$0xff]
    %v1323 = vld [vmem:[#allocation2 + $0xb10] sm:$0xff]
    %v1324 = vld [vmem:[#allocation2 + $0xb18] sm:$0xff]
    %v1325 = vld [vmem:[#allocation2 + $0xb20] sm:$0xff]
    %v1326 = vld [vmem:[#allocation2 + $0xb28] sm:$0xff]
    %v1327 = vld [vmem:[#allocation2 + $0xb30] sm:$0xff]
    %v1328 = vld [vmem:[#allocation2 + $0xb38] sm:$0xff]
    %v1329 = vld [vmem:[#allocation2 + $0xb40] sm:$0xff]
    %v1330 = vld [vmem:[#allocation2 + $0xb48] sm:$0xff]
    %v1331 = vld [vmem:[#allocation2 + $0xb50] sm:$0xff]
    %v1332 = vld [vmem:[#allocation2 + $0xb58] sm:$0xff]
    %v1333 = vld [vmem:[#allocation2 + $0xb60] sm:$0xff]
    %v1334 = vld [vmem:[#allocation2 + $0xb68] sm:$0xff]
    %v1335 = vld [vmem:[#allocation2 + $0xb70] sm:$0xff]
    %v1336 = vld [vmem:[#allocation2 + $0xb78] sm:$0xff]
    %v1337 = vld [vmem:[#allocation2 + $0xb80] sm:$0xff]
    %v1338 = vld [vmem:[#allocation2 + $0xb88] sm:$0xff]
    %v1339 = vld [vmem:[#allocation2 + $0xb90] sm:$0xff]
    %v1340 = vld [vmem:[#allocation2 + $0xb98] sm:$0xff]
    %v1341 = vld [vmem:[#allocation2 + $0xba0] sm:$0xff]
    %v1342 = vld [vmem:[#allocation2 + $0xba8] sm:$0xff]
    %v1343 = vld [vmem:[#allocation2 + $0xbb0] sm:$0xff]
    %v1344 = vld [vmem:[#allocation2 + $0xbb8] sm:$0xff]
    %v1345 = vld [vmem:[#allocation2 + $0xbc0] sm:$0xff]
    %v1346 = vld [vmem:[#allocation2 + $0xbc8] sm:$0xff]
    %v1347 = vld [vmem:[#allocation2 + $0xbd0] sm:$0xff]
    %v1348 = vld [vmem:[#allocation2 + $0xbd8] sm:$0xff]
    %v1349 = vld [vmem:[#allocation2 + $0xbe0] sm:$0xff]
    %v1350 = vld [vmem:[#allocation2 + $0xbe8] sm:$0xff]
    %v1351 = vld [vmem:[#allocation2 + $0xbf0] sm:$0xff]
    %v1352 = vld [vmem:[#allocation2 + $0xbf8] sm:$0xff]
    %v1353 = vld [vmem:[#allocation2 + $0xc00] sm:$0xff]
    %v1354 = vld [vmem:[#allocation2 + $0xc08] sm:$0xff]
    %v1355 = vld [vmem:[#allocation2 + $0xc10] sm:$0xff]
    %v1356 = vld [vmem:[#allocation2 + $0xc18] sm:$0xff]
    %v1357 = vld [vmem:[#allocation2 + $0xc20] sm:$0xff]
    %v1358 = vld [vmem:[#allocation2 + $0xc28] sm:$0xff]
    %v1359 = vld [vmem:[#allocation2 + $0xc30] sm:$0xff]
    %v1360 = vld [vmem:[#allocation2 + $0xc38] sm:$0xff]
    %v1361 = vld [vmem:[#allocation2 + $0xc40] sm:$0xff]
    %v1362 = vld [vmem:[#allocation2 + $0xc48] sm:$0xff]
    %v1363 = vld [vmem:[#allocation2 + $0xc50] sm:$0xff]
    %v1364 = vld [vmem:[#allocation2 + $0xc58] sm:$0xff]
    %v1365 = vld [vmem:[#allocation2 + $0xc60] sm:$0xff]
    %v1366 = vld [vmem:[#allocation2 + $0xc68] sm:$0xff]
    %v1367 = vld [vmem:[#allocation2 + $0xc70] sm:$0xff]
    %v1368 = vld [vmem:[#allocation2 + $0xc78] sm:$0xff]
    %v1369 = vld [vmem:[#allocation2 + $0xc80] sm:$0xff]
    %v1370 = vld [vmem:[#allocation2 + $0xc88] sm:$0xff]
    %v1371 = vld [vmem:[#allocation2 + $0xc90] sm:$0xff]
    %v1372 = vld [vmem:[#allocation2 + $0xc98] sm:$0xff]
    %v1373 = vld [vmem:[#allocation2 + $0xca0] sm:$0xff]
    %v1374 = vld [vmem:[#allocation2 + $0xca8] sm:$0xff]
    %v1375 = vld [vmem:[#allocation2 + $0xcb0] sm:$0xff]
    %v1376 = vld [vmem:[#allocation2 + $0xcb8] sm:$0xff]
    %v1377 = vld [vmem:[#allocation2 + $0xcc0] sm:$0xff]
    %v1378 = vld [vmem:[#allocation2 + $0xcc8] sm:$0xff]
    %v1379 = vld [vmem:[#allocation2 + $0xcd0] sm:$0xff]
    %v1380 = vld [vmem:[#allocation2 + $0xcd8] sm:$0xff]
    %v1381 = vld [vmem:[#allocation2 + $0xce0] sm:$0xff]
    %v1382 = vld [vmem:[#allocation2 + $0xce8] sm:$0xff]
    %v1383 = vld [vmem:[#allocation2 + $0xcf0] sm:$0xff]
    %v1384 = vld [vmem:[#allocation2 + $0xcf8] sm:$0xff]
    %v1385 = vld [vmem:[#allocation2 + $0xd00] sm:$0xff]
    %v1386 = vld [vmem:[#allocation2 + $0xd08] sm:$0xff]
    %v1387 = vld [vmem:[#allocation2 + $0xd10] sm:$0xff]
    %v1388 = vld [vmem:[#allocation2 + $0xd18] sm:$0xff]
    %v1389 = vld [vmem:[#allocation2 + $0xd20] sm:$0xff]
    %v1390 = vld [vmem:[#allocation2 + $0xd28] sm:$0xff]
    %v1391 = vld [vmem:[#allocation2 + $0xd30] sm:$0xff]
    %v1392 = vld [vmem:[#allocation2 + $0xd38] sm:$0xff]
    %v1393 = vld [vmem:[#allocation2 + $0xd40] sm:$0xff]
    %v1394 = vld [vmem:[#allocation2 + $0xd48] sm:$0xff]
    %v1395 = vld [vmem:[#allocation2 + $0xd50] sm:$0xff]
    %v1396 = vld [vmem:[#allocation2 + $0xd58] sm:$0xff]
    %v1397 = vld [vmem:[#allocation2 + $0xd60] sm:$0xff]
    %v1398 = vld [vmem:[#allocation2 + $0xd68] sm:$0xff]
    %v1399 = vld [vmem:[#allocation2 + $0xd70] sm:$0xff]
    %v1400 = vld [vmem:[#allocation2 + $0xd78] sm:$0xff]
    %v1401 = vld [vmem:[#allocation2 + $0xd80] sm:$0xff]
    %v1402 = vld [vmem:[#allocation2 + $0xd88] sm:$0xff]
    %v1403 = vld [vmem:[#allocation2 + $0xd90] sm:$0xff]
    %v1404 = vld [vmem:[#allocation2 + $0xd98] sm:$0xff]
    %v1405 = vld [vmem:[#allocation2 + $0xda0] sm:$0xff]
    %v1406 = vld [vmem:[#allocation2 + $0xda8] sm:$0xff]
    %v1407 = vld [vmem:[#allocation2 + $0xdb0] sm:$0xff]
    %v1408 = vld [vmem:[#allocation2 + $0xdb8] sm:$0xff]
    %v1409 = vld [vmem:[#allocation2 + $0xdc0] sm:$0xff]
    %v1410 = vld [vmem:[#allocation2 + $0xdc8] sm:$0xff]
    %v1411 = vld [vmem:[#allocation2 + $0xdd0] sm:$0xff]
    %v1412 = vld [vmem:[#allocation2 + $0xdd8] sm:$0xff]
    %v1413 = vld [vmem:[#allocation2 + $0xde0] sm:$0xff]
    %v1414 = vld [vmem:[#allocation2 + $0xde8] sm:$0xff]
    %v1415 = vld [vmem:[#allocation2 + $0xdf0] sm:$0xff]
    %v1416 = vld [vmem:[#allocation2 + $0xdf8] sm:$0xff]
    %v1417 = vld [vmem:[#allocation2 + $0xe00] sm:$0xff]
    %v1418 = vld [vmem:[#allocation2 + $0xe08] sm:$0xff]
    %v1419 = vld [vmem:[#allocation2 + $0xe10] sm:$0xff]
    %v1420 = vld [vmem:[#allocation2 + $0xe18] sm:$0xff]
    %v1421 = vld [vmem:[#allocation2 + $0xe20] sm:$0xff]
    %v1422 = vld [vmem:[#allocation2 + $0xe28] sm:$0xff]
    %v1423 = vld [vmem:[#allocation2 + $0xe30] sm:$0xff]
    %v1424 = vld [vmem:[#allocation2 + $0xe38] sm:$0xff]
    %v1425 = vld [vmem:[#allocation2 + $0xe40] sm:$0xff]
    %v1426 = vld [vmem:[#allocation2 + $0xe48] sm:$0xff]
    %v1427 = vld [vmem:[#allocation2 + $0xe50] sm:$0xff]
    %v1428 = vld [vmem:[#allocation2 + $0xe58] sm:$0xff]
    %v1429 = vld [vmem:[#allocation2 + $0xe60] sm:$0xff]
    %v1430 = vld [vmem:[#allocation2 + $0xe68] sm:$0xff]
    %v1431 = vld [vmem:[#allocation2 + $0xe70] sm:$0xff]
    %v1432 = vld [vmem:[#allocation2 + $0xe78] sm:$0xff]
    %v1433 = vld [vmem:[#allocation2 + $0xe80] sm:$0xff]
    %v1434 = vld [vmem:[#allocation2 + $0xe88] sm:$0xff]
    %v1435 = vld [vmem:[#allocation2 + $0xe90] sm:$0xff]
    %v1436 = vld [vmem:[#allocation2 + $0xe98] sm:$0xff]
    %v1437 = vld [vmem:[#allocation2 + $0xea0] sm:$0xff]
    %v1438 = vld [vmem:[#allocation2 + $0xea8] sm:$0xff]
    %v1439 = vld [vmem:[#allocation2 + $0xeb0] sm:$0xff]
    %v1440 = vld [vmem:[#allocation2 + $0xeb8] sm:$0xff]
    %v1441 = vld [vmem:[#allocation2 + $0xec0] sm:$0xff]
    %v1442 = vld [vmem:[#allocation2 + $0xec8] sm:$0xff]
    %v1443 = vld [vmem:[#allocation2 + $0xed0] sm:$0xff]
    %v1444 = vld [vmem:[#allocation2 + $0xed8] sm:$0xff]
    %v1445 = vld [vmem:[#allocation2 + $0xee0] sm:$0xff]
    %v1446 = vld [vmem:[#allocation2 + $0xee8] sm:$0xff]
    %v1447 = vld [vmem:[#allocation2 + $0xef0] sm:$0xff]
    %v1448 = vld [vmem:[#allocation2 + $0xef8] sm:$0xff]
    %v1449 = vld [vmem:[#allocation2 + $0xf00] sm:$0xff]
    %v1450 = vld [vmem:[#allocation2 + $0xf08] sm:$0xff]
    %v1451 = vld [vmem:[#allocation2 + $0xf10] sm:$0xff]
    %v1452 = vld [vmem:[#allocation2 + $0xf18] sm:$0xff]
    %v1453 = vld [vmem:[#allocation2 + $0xf20] sm:$0xff]
    %v1454 = vld [vmem:[#allocation2 + $0xf28] sm:$0xff]
    %v1455 = vld [vmem:[#allocation2 + $0xf30] sm:$0xff]
    %v1456 = vld [vmem:[#allocation2 + $0xf38] sm:$0xff]
    %v1457 = vld [vmem:[#allocation2 + $0xf40] sm:$0xff]
    %v1458 = vld [vmem:[#allocation2 + $0xf48] sm:$0xff]
    %v1459 = vld [vmem:[#allocation2 + $0xf50] sm:$0xff]
    %v1460 = vld [vmem:[#allocation2 + $0xf58] sm:$0xff]
    %v1461 = vld [vmem:[#allocation2 + $0xf60] sm:$0xff]
    %v1462 = vld [vmem:[#allocation2 + $0xf68] sm:$0xff]
    %v1463 = vld [vmem:[#allocation2 + $0xf70] sm:$0xff]
    %v1464 = vld [vmem:[#allocation2 + $0xf78] sm:$0xff]
    %v1465 = vld [vmem:[#allocation2 + $0xf80] sm:$0xff]
    %v1466 = vld [vmem:[#allocation2 + $0xf88] sm:$0xff]
    %v1467 = vld [vmem:[#allocation2 + $0xf90] sm:$0xff]
    %v1468 = vld [vmem:[#allocation2 + $0xf98] sm:$0xff]
    %v1469 = vld [vmem:[#allocation2 + $0xfa0] sm:$0xff]
    %v1470 = vld [vmem:[#allocation2 + $0xfa8] sm:$0xff]
    %v1471 = vld [vmem:[#allocation2 + $0xfb0] sm:$0xff]
    %v1472 = vld [vmem:[#allocation2 + $0xfb8] sm:$0xff]
    %v1473 = vld [vmem:[#allocation2 + $0xfc0] sm:$0xff]
    %v1474 = vld [vmem:[#allocation2 + $0xfc8] sm:$0xff]
    %v1475 = vld [vmem:[#allocation2 + $0xfd0] sm:$0xff]
    %v1476 = vld [vmem:[#allocation2 + $0xfd8] sm:$0xff]
    %v1477 = vld [vmem:[#allocation2 + $0xfe0] sm:$0xff]
    %v1478 = vld [vmem:[#allocation2 + $0xfe8] sm:$0xff]
    %v1479 = vld [vmem:[#allocation2 + $0xff0] sm:$0xff]
    %v1480 = vld [vmem:[#allocation2 + $0xff8] sm:$0xff]
    %1481 = vmatprep.subr.bf16.mxu0 %v970
    %1482 = vmatpush1.bf16.msra.mxu0 %v969
    %1483 = vmatprep.subr.bf16.mxu0 %v978
    %1484 = vmatpush1.bf16.msra.mxu0 %v977
    %1485 = vmatprep.subr.bf16.mxu0 %v986
    %1486 = vmatpush1.bf16.msra.mxu0 %v985
    %1487 = vmatprep.subr.bf16.mxu0 %v994
    %1488 = vmatpush1.bf16.msra.mxu0 %v993
    %1489 = vmatprep.subr.bf16.mxu0 %v1002
    %1490 = vmatpush1.bf16.msra.mxu0 %v1001
    %1491 = vmatprep.subr.bf16.mxu0 %v1010
    %1492 = vmatpush1.bf16.msra.mxu0 %v1009
    %1493 = vmatprep.subr.bf16.mxu0 %v1018
    %1494 = vmatpush1.bf16.msra.mxu0 %v1017
    %1495 = vmatprep.subr.bf16.mxu0 %v1026
    %1496 = vmatpush1.bf16.msra.mxu0 %v1025
    %1497 = vmatprep.subr.bf16.mxu0 %v1034
    %1498 = vmatpush1.bf16.msra.mxu0 %v1033
    %1499 = vmatprep.subr.bf16.mxu0 %v1042
    %1500 = vmatpush1.bf16.msra.mxu0 %v1041
    %1501 = vmatprep.subr.bf16.mxu0 %v1050
    %1502 = vmatpush1.bf16.msra.mxu0 %v1049
    %1503 = vmatprep.subr.bf16.mxu0 %v1058
    %1504 = vmatpush1.bf16.msra.mxu0 %v1057
    %1505 = vmatprep.subr.bf16.mxu0 %v1066
    %1506 = vmatpush1.bf16.msra.mxu0 %v1065
    %1507 = vmatprep.subr.bf16.mxu0 %v1074
    %1508 = vmatpush1.bf16.msra.mxu0 %v1073
    %1509 = vmatprep.subr.bf16.mxu0 %v1082
    %1510 = vmatpush1.bf16.msra.mxu0 %v1081
    %1511 = vmatprep.subr.bf16.mxu0 %v1090
    %1512 = vmatpush1.bf16.msra.mxu0 %v1089
    %1513 = vmatprep.mubr.bf16.mxu0 %v958
    %1514 = vmatmul.mubr.bf16.gmra.mrb[0].mxu0 %v957
    %v1515 = vpop.f32.mrb[0].mxu0
    %v1516 = vadd.f32 0.0, %v1515
    %v1517 = vpop.f32.mrb[0].mxu0
    %v1518 = vadd.f32 0.0, %v1517
    %v1519 = vpop.f32.mrb[0].mxu0
    %v1520 = vadd.f32 0.0, %v1519
    %v1521 = vpop.f32.mrb[0].mxu0
    %v1522 = vadd.f32 0.0, %v1521
    %1523 = vdwg.mxu0
    %1524 = vmatprep.subr.bf16.mxu0 %v1098
    %1525 = vmatpush1.bf16.msra.mxu0 %v1097
    %1526 = vmatprep.subr.bf16.mxu0 %v1106
    %1527 = vmatpush1.bf16.msra.mxu0 %v1105
    %1528 = vmatprep.subr.bf16.mxu0 %v1114
    %1529 = vmatpush1.bf16.msra.mxu0 %v1113
    %1530 = vmatprep.subr.bf16.mxu0 %v1122
    %1531 = vmatpush1.bf16.msra.mxu0 %v1121
    %1532 = vmatprep.subr.bf16.mxu0 %v1130
    %1533 = vmatpush1.bf16.msra.mxu0 %v1129
    %1534 = vmatprep.subr.bf16.mxu0 %v1138
    %1535 = vmatpush1.bf16.msra.mxu0 %v1137
    %1536 = vmatprep.subr.bf16.mxu0 %v1146
    %1537 = vmatpush1.bf16.msra.mxu0 %v1145
    %1538 = vmatprep.subr.bf16.mxu0 %v1154
    %1539 = vmatpush1.bf16.msra.mxu0 %v1153
    %1540 = vmatprep.subr.bf16.mxu0 %v1162
    %1541 = vmatpush1.bf16.msra.mxu0 %v1161
    %1542 = vmatprep.subr.bf16.mxu0 %v1170
    %1543 = vmatpush1.bf16.msra.mxu0 %v1169
    %1544 = vmatprep.subr.bf16.mxu0 %v1178
    %1545 = vmatpush1.bf16.msra.mxu0 %v1177
    %1546 = vmatprep.subr.bf16.mxu0 %v1186
    %1547 = vmatpush1.bf16.msra.mxu0 %v1185
    %1548 = vmatprep.subr.bf16.mxu0 %v1194
    %1549 = vmatpush1.bf16.msra.mxu0 %v1193
    %1550 = vmatprep.subr.bf16.mxu0 %v1202
    %1551 = vmatpush1.bf16.msra.mxu0 %v1201
    %1552 = vmatprep.subr.bf16.mxu0 %v1210
    %1553 = vmatpush1.bf16.msra.mxu0 %v1209
    %1554 = vmatprep.subr.bf16.mxu0 %v1218
    %1555 = vmatpush1.bf16.msra.mxu0 %v1217
    %1556 = vmatprep.mubr.bf16.mxu0 %v960
    %1557 = vmatmul.mubr.bf16.gmra.mrb[0].mxu0 %v959
    %v1558 = vpop.f32.mrb[0].mxu0
    %v1559 = vadd.f32 %v1516, %v1558
    %v1560 = vpop.f32.mrb[0].mxu0
    %v1561 = vadd.f32 %v1518, %v1560
    %v1562 = vpop.f32.mrb[0].mxu0
    %v1563 = vadd.f32 %v1520, %v1562
    %v1564 = vpop.f32.mrb[0].mxu0
    %v1565 = vadd.f32 %v1522, %v1564
    %1566 = vdwg.mxu0
    %1567 = vmatprep.subr.bf16.mxu0 %v1226
    %1568 = vmatpush1.bf16.msra.mxu0 %v1225
    %1569 = vmatprep.subr.bf16.mxu0 %v1234
    %1570 = vmatpush1.bf16.msra.mxu0 %v1233
    %1571 = vmatprep.subr.bf16.mxu0 %v1242
    %1572 = vmatpush1.bf16.msra.mxu0 %v1241
    %1573 = vmatprep.subr.bf16.mxu0 %v1250
    %1574 = vmatpush1.bf16.msra.mxu0 %v1249
    %1575 = vmatprep.subr.bf16.mxu0 %v1258
    %1576 = vmatpush1.bf16.msra.mxu0 %v1257
    %1577 = vmatprep.subr.bf16.mxu0 %v1266
    %1578 = vmatpush1.bf16.msra.mxu0 %v1265
    %1579 = vmatprep.subr.bf16.mxu0 %v1274
    %1580 = vmatpush1.bf16.msra.mxu0 %v1273
    %1581 = vmatprep.subr.bf16.mxu0 %v1282
    %1582 = vmatpush1.bf16.msra.mxu0 %v1281
    %1583 = vmatprep.subr.bf16.mxu0 %v1290
    %1584 = vmatpush1.bf16.msra.mxu0 %v1289
    %1585 = vmatprep.subr.bf16.mxu0 %v1298
    %1586 = vmatpush1.bf16.msra.mxu0 %v1297
    %1587 = vmatprep.subr.bf16.mxu0 %v1306
    %1588 = vmatpush1.bf16.msra.mxu0 %v1305
    %1589 = vmatprep.subr.bf16.mxu0 %v1314
    %1590 = vmatpush1.bf16.msra.mxu0 %v1313
    %1591 = vmatprep.subr.bf16.mxu0 %v1322
    %1592 = vmatpush1.bf16.msra.mxu0 %v1321
    %1593 = vmatprep.subr.bf16.mxu0 %v1330
    %1594 = vmatpush1.bf16.msra.mxu0 %v1329
    %1595 = vmatprep.subr.bf16.mxu0 %v1338
    %1596 = vmatpush1.bf16.msra.mxu0 %v1337
    %1597 = vmatprep.subr.bf16.mxu0 %v1346
    %1598 = vmatpush1.bf16.msra.mxu0 %v1345
    %1599 = vmatprep.mubr.bf16.mxu0 %v962
    %1600 = vmatmul.mubr.bf16.gmra.mrb[0].mxu0 %v961
    %v1601 = vpop.f32.mrb[0].mxu0
    %v1602 = vadd.f32 %v1559, %v1601
    %v1603 = vpop.f32.mrb[0].mxu0
    %v1604 = vadd.f32 %v1561, %v1603
    %v1605 = vpop.f32.mrb[0].mxu0
    %v1606 = vadd.f32 %v1563, %v1605
    %v1607 = vpop.f32.mrb[0].mxu0
    %v1608 = vadd.f32 %v1565, %v1607
    %1609 = vdwg.mxu0
    %1610 = vmatprep.subr.bf16.mxu0 %v1354
    %1611 = vmatpush1.bf16.msra.mxu0 %v1353
    %1612 = vmatprep.subr.bf16.mxu0 %v1362
    %1613 = vmatpush1.bf16.msra.mxu0 %v1361
    %1614 = vmatprep.subr.bf16.mxu0 %v1370
    %1615 = vmatpush1.bf16.msra.mxu0 %v1369
    %1616 = vmatprep.subr.bf16.mxu0 %v1378
    %1617 = vmatpush1.bf16.msra.mxu0 %v1377
    %1618 = vmatprep.subr.bf16.mxu0 %v1386
    %1619 = vmatpush1.bf16.msra.mxu0 %v1385
    %1620 = vmatprep.subr.bf16.mxu0 %v1394
    %1621 = vmatpush1.bf16.msra.mxu0 %v1393
    %1622 = vmatprep.subr.bf16.mxu0 %v1402
    %1623 = vmatpush1.bf16.msra.mxu0 %v1401
    %1624 = vmatprep.subr.bf16.mxu0 %v1410
    %1625 = vmatpush1.bf16.msra.mxu0 %v1409
    %1626 = vmatprep.subr.bf16.mxu0 %v1418
    %1627 = vmatpush1.bf16.msra.mxu0 %v1417
    %1628 = vmatprep.subr.bf16.mxu0 %v1426
    %1629 = vmatpush1.bf16.msra.mxu0 %v1425
    %1630 = vmatprep.subr.bf16.mxu0 %v1434
    %1631 = vmatpush1.bf16.msra.mxu0 %v1433
    %1632 = vmatprep.subr.bf16.mxu0 %v1442
    %1633 = vmatpush1.bf16.msra.mxu0 %v1441
    %1634 = vmatprep.subr.bf16.mxu0 %v1450
    %1635 = vmatpush1.bf16.msra.mxu0 %v1449
    %1636 = vmatprep.subr.bf16.mxu0 %v1458
    %1637 = vmatpush1.bf16.msra.mxu0 %v1457
    %1638 = vmatprep.subr.bf16.mxu0 %v1466
    %1639 = vmatpush1.bf16.msra.mxu0 %v1465
    %1640 = vmatprep.subr.bf16.mxu0 %v1474
    %1641 = vmatpush1.bf16.msra.mxu0 %v1473
    %1642 = vmatprep.mubr.bf16.mxu0 %v964
    %1643 = vmatmul.mubr.bf16.gmra.mrb[0].mxu0 %v963
    %v1644 = vpop.f32.mrb[0].mxu0
    %v1645 = vadd.f32 %v1602, %v1644
    %v1646 = vpop.f32.mrb[0].mxu0
    %v1647 = vadd.f32 %v1604, %v1646
    %v1648 = vpop.f32.mrb[0].mxu0
    %v1649 = vadd.f32 %v1606, %v1648
    %v1650 = vpop.f32.mrb[0].mxu0
    %v1651 = vadd.f32 %v1608, %v1650
    %1652 = vdwg.mxu0
    %1653 = vmatprep.subr.bf16.mxu0 %v972
    %1654 = vmatpush1.bf16.msra.mxu0 %v971
    %1655 = vmatprep.subr.bf16.mxu0 %v980
    %1656 = vmatpush1.bf16.msra.mxu0 %v979
    %1657 = vmatprep.subr.bf16.mxu0 %v988
    %1658 = vmatpush1.bf16.msra.mxu0 %v987
    %1659 = vmatprep.subr.bf16.mxu0 %v996
    %1660 = vmatpush1.bf16.msra.mxu0 %v995
    %1661 = vmatprep.subr.bf16.mxu0 %v1004
    %1662 = vmatpush1.bf16.msra.mxu0 %v1003
    %1663 = vmatprep.subr.bf16.mxu0 %v1012
    %1664 = vmatpush1.bf16.msra.mxu0 %v1011
    %1665 = vmatprep.subr.bf16.mxu0 %v1020
    %1666 = vmatpush1.bf16.msra.mxu0 %v1019
    %1667 = vmatprep.subr.bf16.mxu0 %v1028
    %1668 = vmatpush1.bf16.msra.mxu0 %v1027
    %1669 = vmatprep.subr.bf16.mxu0 %v1036
    %1670 = vmatpush1.bf16.msra.mxu0 %v1035
    %1671 = vmatprep.subr.bf16.mxu0 %v1044
    %1672 = vmatpush1.bf16.msra.mxu0 %v1043
    %1673 = vmatprep.subr.bf16.mxu0 %v1052
    %1674 = vmatpush1.bf16.msra.mxu0 %v1051
    %1675 = vmatprep.subr.bf16.mxu0 %v1060
    %1676 = vmatpush1.bf16.msra.mxu0 %v1059
    %1677 = vmatprep.subr.bf16.mxu0 %v1068
    %1678 = vmatpush1.bf16.msra.mxu0 %v1067
    %1679 = vmatprep.subr.bf16.mxu0 %v1076
    %1680 = vmatpush1.bf16.msra.mxu0 %v1075
    %1681 = vmatprep.subr.bf16.mxu0 %v1084
    %1682 = vmatpush1.bf16.msra.mxu0 %v1083
    %1683 = vmatprep.subr.bf16.mxu0 %v1092
    %1684 = vmatpush1.bf16.msra.mxu0 %v1091
    %1685 = vmatprep.mubr.bf16.mxu0 %v958
    %1686 = vmatmul.mubr.bf16.gmra.mrb[0].mxu0 %v957
    %v1687 = vpop.f32.mrb[0].mxu0
    %v1688 = vadd.f32 0.0, %v1687
    %v1689 = vpop.f32.mrb[0].mxu0
    %v1690 = vadd.f32 0.0, %v1689
    %v1691 = vpop.f32.mrb[0].mxu0
    %v1692 = vadd.f32 0.0, %v1691
    %v1693 = vpop.f32.mrb[0].mxu0
    %v1694 = vadd.f32 0.0, %v1693
    %1695 = vdwg.mxu0
    %1696 = vmatprep.subr.bf16.mxu0 %v1100
    %1697 = vmatpush1.bf16.msra.mxu0 %v1099
    %1698 = vmatprep.subr.bf16.mxu0 %v1108
    %1699 = vmatpush1.bf16.msra.mxu0 %v1107
    %1700 = vmatprep.subr.bf16.mxu0 %v1116
    %1701 = vmatpush1.bf16.msra.mxu0 %v1115
    %1702 = vmatprep.subr.bf16.mxu0 %v1124
    %1703 = vmatpush1.bf16.msra.mxu0 %v1123
    %1704 = vmatprep.subr.bf16.mxu0 %v1132
    %1705 = vmatpush1.bf16.msra.mxu0 %v1131
    %1706 = vmatprep.subr.bf16.mxu0 %v1140
    %1707 = vmatpush1.bf16.msra.mxu0 %v1139
    %1708 = vmatprep.subr.bf16.mxu0 %v1148
    %1709 = vmatpush1.bf16.msra.mxu0 %v1147
    %1710 = vmatprep.subr.bf16.mxu0 %v1156
    %1711 = vmatpush1.bf16.msra.mxu0 %v1155
    %1712 = vmatprep.subr.bf16.mxu0 %v1164
    %1713 = vmatpush1.bf16.msra.mxu0 %v1163
    %1714 = vmatprep.subr.bf16.mxu0 %v1172
    %1715 = vmatpush1.bf16.msra.mxu0 %v1171
    %1716 = vmatprep.subr.bf16.mxu0 %v1180
    %1717 = vmatpush1.bf16.msra.mxu0 %v1179
    %1718 = vmatprep.subr.bf16.mxu0 %v1188
    %1719 = vmatpush1.bf16.msra.mxu0 %v1187
    %1720 = vmatprep.subr.bf16.mxu0 %v1196
    %1721 = vmatpush1.bf16.msra.mxu0 %v1195
    %1722 = vmatprep.subr.bf16.mxu0 %v1204
    %1723 = vmatpush1.bf16.msra.mxu0 %v1203
    %1724 = vmatprep.subr.bf16.mxu0 %v1212
    %1725 = vmatpush1.bf16.msra.mxu0 %v1211
    %1726 = vmatprep.subr.bf16.mxu0 %v1220
    %1727 = vmatpush1.bf16.msra.mxu0 %v1219
    %1728 = vmatprep.mubr.bf16.mxu0 %v960
    %1729 = vmatmul.mubr.bf16.gmra.mrb[0].mxu0 %v959
    %v1730 = vpop.f32.mrb[0].mxu0
    %v1731 = vadd.f32 %v1688, %v1730
    %v1732 = vpop.f32.mrb[0].mxu0
    %v1733 = vadd.f32 %v1690, %v1732
    %v1734 = vpop.f32.mrb[0].mxu0
    %v1735 = vadd.f32 %v1692, %v1734
    %v1736 = vpop.f32.mrb[0].mxu0
    %v1737 = vadd.f32 %v1694, %v1736
    %1738 = vdwg.mxu0
    %1739 = vmatprep.subr.bf16.mxu0 %v1228
    %1740 = vmatpush1.bf16.msra.mxu0 %v1227
    %1741 = vmatprep.subr.bf16.mxu0 %v1236
    %1742 = vmatpush1.bf16.msra.mxu0 %v1235
    %1743 = vmatprep.subr.bf16.mxu0 %v1244
    %1744 = vmatpush1.bf16.msra.mxu0 %v1243
    %1745 = vmatprep.subr.bf16.mxu0 %v1252
    %1746 = vmatpush1.bf16.msra.mxu0 %v1251
    %1747 = vmatprep.subr.bf16.mxu0 %v1260
    %1748 = vmatpush1.bf16.msra.mxu0 %v1259
    %1749 = vmatprep.subr.bf16.mxu0 %v1268
    %1750 = vmatpush1.bf16.msra.mxu0 %v1267
    %1751 = vmatprep.subr.bf16.mxu0 %v1276
    %1752 = vmatpush1.bf16.msra.mxu0 %v1275
    %1753 = vmatprep.subr.bf16.mxu0 %v1284
    %1754 = vmatpush1.bf16.msra.mxu0 %v1283
    %1755 = vmatprep.subr.bf16.mxu0 %v1292
    %1756 = vmatpush1.bf16.msra.mxu0 %v1291
    %1757 = vmatprep.subr.bf16.mxu0 %v1300
    %1758 = vmatpush1.bf16.msra.mxu0 %v1299
    %1759 = vmatprep.subr.bf16.mxu0 %v1308
    %1760 = vmatpush1.bf16.msra.mxu0 %v1307
    %1761 = vmatprep.subr.bf16.mxu0 %v1316
    %1762 = vmatpush1.bf16.msra.mxu0 %v1315
    %1763 = vmatprep.subr.bf16.mxu0 %v1324
    %1764 = vmatpush1.bf16.msra.mxu0 %v1323
    %1765 = vmatprep.subr.bf16.mxu0 %v1332
    %1766 = vmatpush1.bf16.msra.mxu0 %v1331
    %1767 = vmatprep.subr.bf16.mxu0 %v1340
    %1768 = vmatpush1.bf16.msra.mxu0 %v1339
    %1769 = vmatprep.subr.bf16.mxu0 %v1348
    %1770 = vmatpush1.bf16.msra.mxu0 %v1347
    %1771 = vmatprep.mubr.bf16.mxu0 %v962
    %1772 = vmatmul.mubr.bf16.gmra.mrb[0].mxu0 %v961
    %v1773 = vpop.f32.mrb[0].mxu0
    %v1774 = vadd.f32 %v1731, %v1773
    %v1775 = vpop.f32.mrb[0].mxu0
    %v1776 = vadd.f32 %v1733, %v1775
    %v1777 = vpop.f32.mrb[0].mxu0
    %v1778 = vadd.f32 %v1735, %v1777
    %v1779 = vpop.f32.mrb[0].mxu0
    %v1780 = vadd.f32 %v1737, %v1779
    %1781 = vdwg.mxu0
    %1782 = vmatprep.subr.bf16.mxu0 %v1356
    %1783 = vmatpush1.bf16.msra.mxu0 %v1355
    %1784 = vmatprep.subr.bf16.mxu0 %v1364
    %1785 = vmatpush1.bf16.msra.mxu0 %v1363
    %1786 = vmatprep.subr.bf16.mxu0 %v1372
    %1787 = vmatpush1.bf16.msra.mxu0 %v1371
    %1788 = vmatprep.subr.bf16.mxu0 %v1380
    %1789 = vmatpush1.bf16.msra.mxu0 %v1379
    %1790 = vmatprep.subr.bf16.mxu0 %v1388
    %1791 = vmatpush1.bf16.msra.mxu0 %v1387
    %1792 = vmatprep.subr.bf16.mxu0 %v1396
    %1793 = vmatpush1.bf16.msra.mxu0 %v1395
    %1794 = vmatprep.subr.bf16.mxu0 %v1404
    %1795 = vmatpush1.bf16.msra.mxu0 %v1403
    %1796 = vmatprep.subr.bf16.mxu0 %v1412
    %1797 = vmatpush1.bf16.msra.mxu0 %v1411
    %1798 = vmatprep.subr.bf16.mxu0 %v1420
    %1799 = vmatpush1.bf16.msra.mxu0 %v1419
    %1800 = vmatprep.subr.bf16.mxu0 %v1428
    %1801 = vmatpush1.bf16.msra.mxu0 %v1427
    %1802 = vmatprep.subr.bf16.mxu0 %v1436
    %1803 = vmatpush1.bf16.msra.mxu0 %v1435
    %1804 = vmatprep.subr.bf16.mxu0 %v1444
    %1805 = vmatpush1.bf16.msra.mxu0 %v1443
    %1806 = vmatprep.subr.bf16.mxu0 %v1452
    %1807 = vmatpush1.bf16.msra.mxu0 %v1451
    %1808 = vmatprep.subr.bf16.mxu0 %v1460
    %1809 = vmatpush1.bf16.msra.mxu0 %v1459
    %1810 = vmatprep.subr.bf16.mxu0 %v1468
    %1811 = vmatpush1.bf16.msra.mxu0 %v1467
    %1812 = vmatprep.subr.bf16.mxu0 %v1476
    %1813 = vmatpush1.bf16.msra.mxu0 %v1475
    %1814 = vmatprep.mubr.bf16.mxu0 %v964
    %1815 = vmatmul.mubr.bf16.gmra.mrb[0].mxu0 %v963
    %v1816 = vpop.f32.mrb[0].mxu0
    %v1817 = vadd.f32 %v1774, %v1816
    %v1818 = vpop.f32.mrb[0].mxu0
    %v1819 = vadd.f32 %v1776, %v1818
    %v1820 = vpop.f32.mrb[0].mxu0
    %v1821 = vadd.f32 %v1778, %v1820
    %v1822 = vpop.f32.mrb[0].mxu0
    %v1823 = vadd.f32 %v1780, %v1822
    %1824 = vdwg.mxu0
    %1825 = vmatprep.subr.bf16.mxu0 %v974
    %1826 = vmatpush1.bf16.msra.mxu0 %v973
    %1827 = vmatprep.subr.bf16.mxu0 %v982
    %1828 = vmatpush1.bf16.msra.mxu0 %v981
    %1829 = vmatprep.subr.bf16.mxu0 %v990
    %1830 = vmatpush1.bf16.msra.mxu0 %v989
    %1831 = vmatprep.subr.bf16.mxu0 %v998
    %1832 = vmatpush1.bf16.msra.mxu0 %v997
    %1833 = vmatprep.subr.bf16.mxu0 %v1006
    %1834 = vmatpush1.bf16.msra.mxu0 %v1005
    %1835 = vmatprep.subr.bf16.mxu0 %v1014
    %1836 = vmatpush1.bf16.msra.mxu0 %v1013
    %1837 = vmatprep.subr.bf16.mxu0 %v1022
    %1838 = vmatpush1.bf16.msra.mxu0 %v1021
    %1839 = vmatprep.subr.bf16.mxu0 %v1030
    %1840 = vmatpush1.bf16.msra.mxu0 %v1029
    %1841 = vmatprep.subr.bf16.mxu0 %v1038
    %1842 = vmatpush1.bf16.msra.mxu0 %v1037
    %1843 = vmatprep.subr.bf16.mxu0 %v1046
    %1844 = vmatpush1.bf16.msra.mxu0 %v1045
    %1845 = vmatprep.subr.bf16.mxu0 %v1054
    %1846 = vmatpush1.bf16.msra.mxu0 %v1053
    %1847 = vmatprep.subr.bf16.mxu0 %v1062
    %1848 = vmatpush1.bf16.msra.mxu0 %v1061
    %1849 = vmatprep.subr.bf16.mxu0 %v1070
    %1850 = vmatpush1.bf16.msra.mxu0 %v1069
    %1851 = vmatprep.subr.bf16.mxu0 %v1078
    %1852 = vmatpush1.bf16.msra.mxu0 %v1077
    %1853 = vmatprep.subr.bf16.mxu0 %v1086
    %1854 = vmatpush1.bf16.msra.mxu0 %v1085
    %1855 = vmatprep.subr.bf16.mxu0 %v1094
    %1856 = vmatpush1.bf16.msra.mxu0 %v1093
    %1857 = vmatprep.mubr.bf16.mxu0 %v958
    %1858 = vmatmul.mubr.bf16.gmra.mrb[0].mxu0 %v957
    %v1859 = vpop.f32.mrb[0].mxu0
    %v1860 = vadd.f32 0.0, %v1859
    %v1861 = vpop.f32.mrb[0].mxu0
    %v1862 = vadd.f32 0.0, %v1861
    %v1863 = vpop.f32.mrb[0].mxu0
    %v1864 = vadd.f32 0.0, %v1863
    %v1865 = vpop.f32.mrb[0].mxu0
    %v1866 = vadd.f32 0.0, %v1865
    %1867 = vdwg.mxu0
    %1868 = vmatprep.subr.bf16.mxu0 %v1102
    %1869 = vmatpush1.bf16.msra.mxu0 %v1101
    %1870 = vmatprep.subr.bf16.mxu0 %v1110
    %1871 = vmatpush1.bf16.msra.mxu0 %v1109
    %1872 = vmatprep.subr.bf16.mxu0 %v1118
    %1873 = vmatpush1.bf16.msra.mxu0 %v1117
    %1874 = vmatprep.subr.bf16.mxu0 %v1126
    %1875 = vmatpush1.bf16.msra.mxu0 %v1125
    %1876 = vmatprep.subr.bf16.mxu0 %v1134
    %1877 = vmatpush1.bf16.msra.mxu0 %v1133
    %1878 = vmatprep.subr.bf16.mxu0 %v1142
    %1879 = vmatpush1.bf16.msra.mxu0 %v1141
    %1880 = vmatprep.subr.bf16.mxu0 %v1150
    %1881 = vmatpush1.bf16.msra.mxu0 %v1149
    %1882 = vmatprep.subr.bf16.mxu0 %v1158
    %1883 = vmatpush1.bf16.msra.mxu0 %v1157
    %1884 = vmatprep.subr.bf16.mxu0 %v1166
    %1885 = vmatpush1.bf16.msra.mxu0 %v1165
    %1886 = vmatprep.subr.bf16.mxu0 %v1174
    %1887 = vmatpush1.bf16.msra.mxu0 %v1173
    %1888 = vmatprep.subr.bf16.mxu0 %v1182
    %1889 = vmatpush1.bf16.msra.mxu0 %v1181
    %1890 = vmatprep.subr.bf16.mxu0 %v1190
    %1891 = vmatpush1.bf16.msra.mxu0 %v1189
    %1892 = vmatprep.subr.bf16.mxu0 %v1198
    %1893 = vmatpush1.bf16.msra.mxu0 %v1197
    %1894 = vmatprep.subr.bf16.mxu0 %v1206
    %1895 = vmatpush1.bf16.msra.mxu0 %v1205
    %1896 = vmatprep.subr.bf16.mxu0 %v1214
    %1897 = vmatpush1.bf16.msra.mxu0 %v1213
    %1898 = vmatprep.subr.bf16.mxu0 %v1222
    %1899 = vmatpush1.bf16.msra.mxu0 %v1221
    %1900 = vmatprep.mubr.bf16.mxu0 %v960
    %1901 = vmatmul.mubr.bf16.gmra.mrb[0].mxu0 %v959
    %v1902 = vpop.f32.mrb[0].mxu0
    %v1903 = vadd.f32 %v1860, %v1902
    %v1904 = vpop.f32.mrb[0].mxu0
    %v1905 = vadd.f32 %v1862, %v1904
    %v1906 = vpop.f32.mrb[0].mxu0
    %v1907 = vadd.f32 %v1864, %v1906
    %v1908 = vpop.f32.mrb[0].mxu0
    %v1909 = vadd.f32 %v1866, %v1908
    %1910 = vdwg.mxu0
    %1911 = vmatprep.subr.bf16.mxu0 %v1230
    %1912 = vmatpush1.bf16.msra.mxu0 %v1229
    %1913 = vmatprep.subr.bf16.mxu0 %v1238
    %1914 = vmatpush1.bf16.msra.mxu0 %v1237
    %1915 = vmatprep.subr.bf16.mxu0 %v1246
    %1916 = vmatpush1.bf16.msra.mxu0 %v1245
    %1917 = vmatprep.subr.bf16.mxu0 %v1254
    %1918 = vmatpush1.bf16.msra.mxu0 %v1253
    %1919 = vmatprep.subr.bf16.mxu0 %v1262
    %1920 = vmatpush1.bf16.msra.mxu0 %v1261
    %1921 = vmatprep.subr.bf16.mxu0 %v1270
    %1922 = vmatpush1.bf16.msra.mxu0 %v1269
    %1923 = vmatprep.subr.bf16.mxu0 %v1278
    %1924 = vmatpush1.bf16.msra.mxu0 %v1277
    %1925 = vmatprep.subr.bf16.mxu0 %v1286
    %1926 = vmatpush1.bf16.msra.mxu0 %v1285
    %1927 = vmatprep.subr.bf16.mxu0 %v1294
    %1928 = vmatpush1.bf16.msra.mxu0 %v1293
    %1929 = vmatprep.subr.bf16.mxu0 %v1302
    %1930 = vmatpush1.bf16.msra.mxu0 %v1301
    %1931 = vmatprep.subr.bf16.mxu0 %v1310
    %1932 = vmatpush1.bf16.msra.mxu0 %v1309
    %1933 = vmatprep.subr.bf16.mxu0 %v1318
    %1934 = vmatpush1.bf16.msra.mxu0 %v1317
    %1935 = vmatprep.subr.bf16.mxu0 %v1326
    %1936 = vmatpush1.bf16.msra.mxu0 %v1325
    %1937 = vmatprep.subr.bf16.mxu0 %v1334
    %1938 = vmatpush1.bf16.msra.mxu0 %v1333
    %1939 = vmatprep.subr.bf16.mxu0 %v1342
    %1940 = vmatpush1.bf16.msra.mxu0 %v1341
    %1941 = vmatprep.subr.bf16.mxu0 %v1350
    %1942 = vmatpush1.bf16.msra.mxu0 %v1349
    %1943 = vmatprep.mubr.bf16.mxu0 %v962
    %1944 = vmatmul.mubr.bf16.gmra.mrb[0].mxu0 %v961
    %v1945 = vpop.f32.mrb[0].mxu0
    %v1946 = vadd.f32 %v1903, %v1945
    %v1947 = vpop.f32.mrb[0].mxu0
    %v1948 = vadd.f32 %v1905, %v1947
    %v1949 = vpop.f32.mrb[0].mxu0
    %v1950 = vadd.f32 %v1907, %v1949
    %v1951 = vpop.f32.mrb[0].mxu0
    %v1952 = vadd.f32 %v1909, %v1951
    %1953 = vdwg.mxu0
    %1954 = vmatprep.subr.bf16.mxu0 %v1358
    %1955 = vmatpush1.bf16.msra.mxu0 %v1357
    %1956 = vmatprep.subr.bf16.mxu0 %v1366
    %1957 = vmatpush1.bf16.msra.mxu0 %v1365
    %1958 = vmatprep.subr.bf16.mxu0 %v1374
    %1959 = vmatpush1.bf16.msra.mxu0 %v1373
    %1960 = vmatprep.subr.bf16.mxu0 %v1382
    %1961 = vmatpush1.bf16.msra.mxu0 %v1381
    %1962 = vmatprep.subr.bf16.mxu0 %v1390
    %1963 = vmatpush1.bf16.msra.mxu0 %v1389
    %1964 = vmatprep.subr.bf16.mxu0 %v1398
    %1965 = vmatpush1.bf16.msra.mxu0 %v1397
    %1966 = vmatprep.subr.bf16.mxu0 %v1406
    %1967 = vmatpush1.bf16.msra.mxu0 %v1405
    %1968 = vmatprep.subr.bf16.mxu0 %v1414
    %1969 = vmatpush1.bf16.msra.mxu0 %v1413
    %1970 = vmatprep.subr.bf16.mxu0 %v1422
    %1971 = vmatpush1.bf16.msra.mxu0 %v1421
    %1972 = vmatprep.subr.bf16.mxu0 %v1430
    %1973 = vmatpush1.bf16.msra.mxu0 %v1429
    %1974 = vmatprep.subr.bf16.mxu0 %v1438
    %1975 = vmatpush1.bf16.msra.mxu0 %v1437
    %1976 = vmatprep.subr.bf16.mxu0 %v1446
    %1977 = vmatpush1.bf16.msra.mxu0 %v1445
    %1978 = vmatprep.subr.bf16.mxu0 %v1454
    %1979 = vmatpush1.bf16.msra.mxu0 %v1453
    %1980 = vmatprep.subr.bf16.mxu0 %v1462
    %1981 = vmatpush1.bf16.msra.mxu0 %v1461
    %1982 = vmatprep.subr.bf16.mxu0 %v1470
    %1983 = vmatpush1.bf16.msra.mxu0 %v1469
    %1984 = vmatprep.subr.bf16.mxu0 %v1478
    %1985 = vmatpush1.bf16.msra.mxu0 %v1477
    %1986 = vmatprep.mubr.bf16.mxu0 %v964
    %1987 = vmatmul.mubr.bf16.gmra.mrb[0].mxu0 %v963
    %v1988 = vpop.f32.mrb[0].mxu0
    %v1989 = vadd.f32 %v1946, %v1988
    %v1990 = vpop.f32.mrb[0].mxu0
    %v1991 = vadd.f32 %v1948, %v1990
    %v1992 = vpop.f32.mrb[0].mxu0
    %v1993 = vadd.f32 %v1950, %v1992
    %v1994 = vpop.f32.mrb[0].mxu0
    %v1995 = vadd.f32 %v1952, %v1994
    %1996 = vdwg.mxu0
    %1997 = vmatprep.subr.bf16.mxu0 %v976
    %1998 = vmatpush1.bf16.msra.mxu0 %v975
    %1999 = vmatprep.subr.bf16.mxu0 %v984
    %2000 = vmatpush1.bf16.msra.mxu0 %v983
    %2001 = vmatprep.subr.bf16.mxu0 %v992
    %2002 = vmatpush1.bf16.msra.mxu0 %v991
    %2003 = vmatprep.subr.bf16.mxu0 %v1000
    %2004 = vmatpush1.bf16.msra.mxu0 %v999
    %2005 = vmatprep.subr.bf16.mxu0 %v1008
    %2006 = vmatpush1.bf16.msra.mxu0 %v1007
    %2007 = vmatprep.subr.bf16.mxu0 %v1016
    %2008 = vmatpush1.bf16.msra.mxu0 %v1015
    %2009 = vmatprep.subr.bf16.mxu0 %v1024
    %2010 = vmatpush1.bf16.msra.mxu0 %v1023
    %2011 = vmatprep.subr.bf16.mxu0 %v1032
    %2012 = vmatpush1.bf16.msra.mxu0 %v1031
    %2013 = vmatprep.subr.bf16.mxu0 %v1040
    %2014 = vmatpush1.bf16.msra.mxu0 %v1039
    %2015 = vmatprep.subr.bf16.mxu0 %v1048
    %2016 = vmatpush1.bf16.msra.mxu0 %v1047
    %2017 = vmatprep.subr.bf16.mxu0 %v1056
    %2018 = vmatpush1.bf16.msra.mxu0 %v1055
    %2019 = vmatprep.subr.bf16.mxu0 %v1064
    %2020 = vmatpush1.bf16.msra.mxu0 %v1063
    %2021 = vmatprep.subr.bf16.mxu0 %v1072
    %2022 = vmatpush1.bf16.msra.mxu0 %v1071
    %2023 = vmatprep.subr.bf16.mxu0 %v1080
    %2024 = vmatpush1.bf16.msra.mxu0 %v1079
    %2025 = vmatprep.subr.bf16.mxu0 %v1088
    %2026 = vmatpush1.bf16.msra.mxu0 %v1087
    %2027 = vmatprep.subr.bf16.mxu0 %v1096
    %2028 = vmatpush1.bf16.msra.mxu0 %v1095
    %2029 = vmatprep.mubr.bf16.mxu0 %v958
    %2030 = vmatmul.mubr.bf16.gmra.mrb[0].mxu0 %v957
    %v2031 = vpop.f32.mrb[0].mxu0
    %v2032 = vadd.f32 0.0, %v2031
    %v2033 = vpop.f32.mrb[0].mxu0
    %v2034 = vadd.f32 0.0, %v2033
    %v2035 = vpop.f32.mrb[0].mxu0
    %v2036 = vadd.f32 0.0, %v2035
    %v2037 = vpop.f32.mrb[0].mxu0
    %v2038 = vadd.f32 0.0, %v2037
    %2039 = vdwg.mxu0
    %2040 = vmatprep.subr.bf16.mxu0 %v1104
    %2041 = vmatpush1.bf16.msra.mxu0 %v1103
    %2042 = vmatprep.subr.bf16.mxu0 %v1112
    %2043 = vmatpush1.bf16.msra.mxu0 %v1111
    %2044 = vmatprep.subr.bf16.mxu0 %v1120
    %2045 = vmatpush1.bf16.msra.mxu0 %v1119
    %2046 = vmatprep.subr.bf16.mxu0 %v1128
    %2047 = vmatpush1.bf16.msra.mxu0 %v1127
    %2048 = vmatprep.subr.bf16.mxu0 %v1136
    %2049 = vmatpush1.bf16.msra.mxu0 %v1135
    %2050 = vmatprep.subr.bf16.mxu0 %v1144
    %2051 = vmatpush1.bf16.msra.mxu0 %v1143
    %2052 = vmatprep.subr.bf16.mxu0 %v1152
    %2053 = vmatpush1.bf16.msra.mxu0 %v1151
    %2054 = vmatprep.subr.bf16.mxu0 %v1160
    %2055 = vmatpush1.bf16.msra.mxu0 %v1159
    %2056 = vmatprep.subr.bf16.mxu0 %v1168
    %2057 = vmatpush1.bf16.msra.mxu0 %v1167
    %2058 = vmatprep.subr.bf16.mxu0 %v1176
    %2059 = vmatpush1.bf16.msra.mxu0 %v1175
    %2060 = vmatprep.subr.bf16.mxu0 %v1184
    %2061 = vmatpush1.bf16.msra.mxu0 %v1183
    %2062 = vmatprep.subr.bf16.mxu0 %v1192
    %2063 = vmatpush1.bf16.msra.mxu0 %v1191
    %2064 = vmatprep.subr.bf16.mxu0 %v1200
    %2065 = vmatpush1.bf16.msra.mxu0 %v1199
    %2066 = vmatprep.subr.bf16.mxu0 %v1208
    %2067 = vmatpush1.bf16.msra.mxu0 %v1207
    %2068 = vmatprep.subr.bf16.mxu0 %v1216
    %2069 = vmatpush1.bf16.msra.mxu0 %v1215
    %2070 = vmatprep.subr.bf16.mxu0 %v1224
    %2071 = vmatpush1.bf16.msra.mxu0 %v1223
    %2072 = vmatprep.mubr.bf16.mxu0 %v960
    %2073 = vmatmul.mubr.bf16.gmra.mrb[0].mxu0 %v959
    %v2074 = vpop.f32.mrb[0].mxu0
    %v2075 = vadd.f32 %v2032, %v2074
    %v2076 = vpop.f32.mrb[0].mxu0
    %v2077 = vadd.f32 %v2034, %v2076
    %v2078 = vpop.f32.mrb[0].mxu0
    %v2079 = vadd.f32 %v2036, %v2078
    %v2080 = vpop.f32.mrb[0].mxu0
    %v2081 = vadd.f32 %v2038, %v2080
    %2082 = vdwg.mxu0
    %2083 = vmatprep.subr.bf16.mxu0 %v1232
    %2084 = vmatpush1.bf16.msra.mxu0 %v1231
    %2085 = vmatprep.subr.bf16.mxu0 %v1240
    %2086 = vmatpush1.bf16.msra.mxu0 %v1239
    %2087 = vmatprep.subr.bf16.mxu0 %v1248
    %2088 = vmatpush1.bf16.msra.mxu0 %v1247
    %2089 = vmatprep.subr.bf16.mxu0 %v1256
    %2090 = vmatpush1.bf16.msra.mxu0 %v1255
    %2091 = vmatprep.subr.bf16.mxu0 %v1264
    %2092 = vmatpush1.bf16.msra.mxu0 %v1263
    %2093 = vmatprep.subr.bf16.mxu0 %v1272
    %2094 = vmatpush1.bf16.msra.mxu0 %v1271
    %2095 = vmatprep.subr.bf16.mxu0 %v1280
    %2096 = vmatpush1.bf16.msra.mxu0 %v1279
    %2097 = vmatprep.subr.bf16.mxu0 %v1288
    %2098 = vmatpush1.bf16.msra.mxu0 %v1287
    %2099 = vmatprep.subr.bf16.mxu0 %v1296
    %2100 = vmatpush1.bf16.msra.mxu0 %v1295
    %2101 = vmatprep.subr.bf16.mxu0 %v1304
    %2102 = vmatpush1.bf16.msra.mxu0 %v1303
    %2103 = vmatprep.subr.bf16.mxu0 %v1312
    %2104 = vmatpush1.bf16.msra.mxu0 %v1311
    %2105 = vmatprep.subr.bf16.mxu0 %v1320
    %2106 = vmatpush1.bf16.msra.mxu0 %v1319
    %2107 = vmatprep.subr.bf16.mxu0 %v1328
    %2108 = vmatpush1.bf16.msra.mxu0 %v1327
    %2109 = vmatprep.subr.bf16.mxu0 %v1336
    %2110 = vmatpush1.bf16.msra.mxu0 %v1335
    %2111 = vmatprep.subr.bf16.mxu0 %v1344
    %2112 = vmatpush1.bf16.msra.mxu0 %v1343
    %2113 = vmatprep.subr.bf16.mxu0 %v1352
    %2114 = vmatpush1.bf16.msra.mxu0 %v1351
    %2115 = vmatprep.mubr.bf16.mxu0 %v962
    %2116 = vmatmul.mubr.bf16.gmra.mrb[0].mxu0 %v961
    %v2117 = vpop.f32.mrb[0].mxu0
    %v2118 = vadd.f32 %v2075, %v2117
    %v2119 = vpop.f32.mrb[0].mxu0
    %v2120 = vadd.f32 %v2077, %v2119
    %v2121 = vpop.f32.mrb[0].mxu0
    %v2122 = vadd.f32 %v2079, %v2121
    %v2123 = vpop.f32.mrb[0].mxu0
    %v2124 = vadd.f32 %v2081, %v2123
    %2125 = vdwg.mxu0
    %2126 = vmatprep.subr.bf16.mxu0 %v1360
    %2127 = vmatpush1.bf16.msra.mxu0 %v1359
    %2128 = vmatprep.subr.bf16.mxu0 %v1368
    %2129 = vmatpush1.bf16.msra.mxu0 %v1367
    %2130 = vmatprep.subr.bf16.mxu0 %v1376
    %2131 = vmatpush1.bf16.msra.mxu0 %v1375
    %2132 = vmatprep.subr.bf16.mxu0 %v1384
    %2133 = vmatpush1.bf16.msra.mxu0 %v1383
    %2134 = vmatprep.subr.bf16.mxu0 %v1392
    %2135 = vmatpush1.bf16.msra.mxu0 %v1391
    %2136 = vmatprep.subr.bf16.mxu0 %v1400
    %2137 = vmatpush1.bf16.msra.mxu0 %v1399
    %2138 = vmatprep.subr.bf16.mxu0 %v1408
    %2139 = vmatpush1.bf16.msra.mxu0 %v1407
    %2140 = vmatprep.subr.bf16.mxu0 %v1416
    %2141 = vmatpush1.bf16.msra.mxu0 %v1415
    %2142 = vmatprep.subr.bf16.mxu0 %v1424
    %2143 = vmatpush1.bf16.msra.mxu0 %v1423
    %2144 = vmatprep.subr.bf16.mxu0 %v1432
    %2145 = vmatpush1.bf16.msra.mxu0 %v1431
    %2146 = vmatprep.subr.bf16.mxu0 %v1440
    %2147 = vmatpush1.bf16.msra.mxu0 %v1439
    %2148 = vmatprep.subr.bf16.mxu0 %v1448
    %2149 = vmatpush1.bf16.msra.mxu0 %v1447
    %2150 = vmatprep.subr.bf16.mxu0 %v1456
    %2151 = vmatpush1.bf16.msra.mxu0 %v1455
    %2152 = vmatprep.subr.bf16.mxu0 %v1464
    %2153 = vmatpush1.bf16.msra.mxu0 %v1463
    %2154 = vmatprep.subr.bf16.mxu0 %v1472
    %2155 = vmatpush1.bf16.msra.mxu0 %v1471
    %2156 = vmatprep.subr.bf16.mxu0 %v1480
    %2157 = vmatpush1.bf16.msra.mxu0 %v1479
    %2158 = vmatprep.mubr.bf16.mxu0 %v964
    %2159 = vmatmul.mubr.bf16.gmra.mrb[0].mxu0 %v963
    %v2160 = vpop.f32.mrb[0].mxu0
    %v2161 = vadd.f32 %v2118, %v2160
    %v2162 = vpop.f32.mrb[0].mxu0
    %v2163 = vadd.f32 %v2120, %v2162
    %v2164 = vpop.f32.mrb[0].mxu0
    %v2165 = vadd.f32 %v2122, %v2164
    %v2166 = vpop.f32.mrb[0].mxu0
    %v2167 = vadd.f32 %v2124, %v2166
    %2168 = vdwg.mxu0
    %s2169 = scalar_lea.vmem [#allocation10], 2
    %v2170 = vld [vmem:[%s2169] ss:$8 sm:$0xf]
    %v2171 = vld [vmem:[%s2169] ss:$8 sm:$0xf0]
    %v2172 = vor.u32 %v2170, %v2171
    %s2173 = scalar_lea.vmem [#allocation10], 3
    %v2174 = vld [vmem:[%s2173] ss:$8 sm:$0xf]
    %v2175 = vld [vmem:[%s2173] ss:$8 sm:$0xf0]
    %v2176 = vor.u32 %v2174, %v2175
    %v2177 = vadd.f32 %v1645, %v1649
    %v2178 = vrot.slane %v2177, 4
    %v2179 = vadd.f32 %v2177, %v2178
    %v2180 = vrot.slane %v2179, 2
    %v2181 = vadd.f32 %v2179, %v2180
    %v2182 = vrot.slane %v2181, 1
    %v2183 = vadd.f32 %v2181, %v2182
    %v2184 = vadd.f32 %v1647, %v1651
    %v2185 = vrot.slane %v2184, 4
    %v2186 = vadd.f32 %v2184, %v2185
    %v2187 = vrot.slane %v2186, 2
    %v2188 = vadd.f32 %v2186, %v2187
    %v2189 = vrot.slane %v2188, 1
    %v2190 = vadd.f32 %v2188, %v2189
    %v2191 = vadd.f32 %v1817, %v1821
    %v2192 = vrot.slane %v2191, 4
    %v2193 = vadd.f32 %v2191, %v2192
    %v2194 = vrot.slane %v2193, 2
    %v2195 = vadd.f32 %v2193, %v2194
    %v2196 = vrot.slane %v2195, 1
    %v2197 = vadd.f32 %v2195, %v2196
    %v2198 = vadd.f32 %v1819, %v1823
    %v2199 = vrot.slane %v2198, 4
    %v2200 = vadd.f32 %v2198, %v2199
    %v2201 = vrot.slane %v2200, 2
    %v2202 = vadd.f32 %v2200, %v2201
    %v2203 = vrot.slane %v2202, 1
    %v2204 = vadd.f32 %v2202, %v2203
    %v2205 = vadd.f32 %v1989, %v1993
    %v2206 = vrot.slane %v2205, 4
    %v2207 = vadd.f32 %v2205, %v2206
    %v2208 = vrot.slane %v2207, 2
    %v2209 = vadd.f32 %v2207, %v2208
    %v2210 = vrot.slane %v2209, 1
    %v2211 = vadd.f32 %v2209, %v2210
    %v2212 = vadd.f32 %v1991, %v1995
    %v2213 = vrot.slane %v2212, 4
    %v2214 = vadd.f32 %v2212, %v2213
    %v2215 = vrot.slane %v2214, 2
    %v2216 = vadd.f32 %v2214, %v2215
    %v2217 = vrot.slane %v2216, 1
    %v2218 = vadd.f32 %v2216, %v2217
    %v2219 = vadd.f32 %v2161, %v2165
    %v2220 = vrot.slane %v2219, 4
    %v2221 = vadd.f32 %v2219, %v2220
    %v2222 = vrot.slane %v2221, 2
    %v2223 = vadd.f32 %v2221, %v2222
    %v2224 = vrot.slane %v2223, 1
    %v2225 = vadd.f32 %v2223, %v2224
    %v2226 = vadd.f32 %v2163, %v2167
    %v2227 = vrot.slane %v2226, 4
    %v2228 = vadd.f32 %v2226, %v2227
    %v2229 = vrot.slane %v2228, 2
    %v2230 = vadd.f32 %v2228, %v2229
    %v2231 = vrot.slane %v2230, 1
    %v2232 = vadd.f32 %v2230, %v2231
    %v2233 = vmul.f32 %v2183, %v580
    %v2234 = vmul.f32 %v2190, %v580
    %v2235 = vmul.f32 %v2197, %v580
    %v2236 = vmul.f32 %v2204, %v580
    %v2237 = vmul.f32 %v2211, %v580
    %v2238 = vmul.f32 %v2218, %v580
    %v2239 = vmul.f32 %v2225, %v580
    %v2240 = vmul.f32 %v2232, %v580
    %v2241 = vmul.f32 %v1645, %v1645
    %v2242 = vmul.f32 %v1647, %v1647
    %v2243 = vmul.f32 %v1817, %v1817
    %v2244 = vmul.f32 %v1819, %v1819
    %v2245 = vmul.f32 %v1989, %v1989
    %v2246 = vmul.f32 %v1991, %v1991
    %v2247 = vmul.f32 %v2161, %v2161
    %v2248 = vmul.f32 %v2163, %v2163
    %v2249 = vmul.f32 %v1649, %v1649
    %v2250 = vmul.f32 %v1651, %v1651
    %v2251 = vmul.f32 %v1821, %v1821
    %v2252 = vmul.f32 %v1823, %v1823
    %v2253 = vmul.f32 %v1993, %v1993
    %v2254 = vmul.f32 %v1995, %v1995
    %v2255 = vmul.f32 %v2165, %v2165
    %v2256 = vmul.f32 %v2167, %v2167
    %v2257 = vadd.f32 %v2241, %v2249
    %v2258 = vrot.slane %v2257, 4
    %v2259 = vadd.f32 %v2257, %v2258
    %v2260 = vrot.slane %v2259, 2
    %v2261 = vadd.f32 %v2259, %v2260
    %v2262 = vrot.slane %v2261, 1
    %v2263 = vadd.f32 %v2261, %v2262
    %v2264 = vadd.f32 %v2242, %v2250
    %v2265 = vrot.slane %v2264, 4
    %v2266 = vadd.f32 %v2264, %v2265
    %v2267 = vrot.slane %v2266, 2
    %v2268 = vadd.f32 %v2266, %v2267
    %v2269 = vrot.slane %v2268, 1
    %v2270 = vadd.f32 %v2268, %v2269
    %v2271 = vadd.f32 %v2243, %v2251
    %v2272 = vrot.slane %v2271, 4
    %v2273 = vadd.f32 %v2271, %v2272
    %v2274 = vrot.slane %v2273, 2
    %v2275 = vadd.f32 %v2273, %v2274
    %v2276 = vrot.slane %v2275, 1
    %v2277 = vadd.f32 %v2275, %v2276
    %v2278 = vadd.f32 %v2244, %v2252
    %v2279 = vrot.slane %v2278, 4
    %v2280 = vadd.f32 %v2278, %v2279
    %v2281 = vrot.slane %v2280, 2
    %v2282 = vadd.f32 %v2280, %v2281
    %v2283 = vrot.slane %v2282, 1
    %v2284 = vadd.f32 %v2282, %v2283
    %v2285 = vadd.f32 %v2245, %v2253
    %v2286 = vrot.slane %v2285, 4
    %v2287 = vadd.f32 %v2285, %v2286
    %v2288 = vrot.slane %v2287, 2
    %v2289 = vadd.f32 %v2287, %v2288
    %v2290 = vrot.slane %v2289, 1
    %v2291 = vadd.f32 %v2289, %v2290
    %v2292 = vadd.f32 %v2246, %v2254
    %v2293 = vrot.slane %v2292, 4
    %v2294 = vadd.f32 %v2292, %v2293
    %v2295 = vrot.slane %v2294, 2
    %v2296 = vadd.f32 %v2294, %v2295
    %v2297 = vrot.slane %v2296, 1
    %v2298 = vadd.f32 %v2296, %v2297
    %v2299 = vadd.f32 %v2247, %v2255
    %v2300 = vrot.slane %v2299, 4
    %v2301 = vadd.f32 %v2299, %v2300
    %v2302 = vrot.slane %v2301, 2
    %v2303 = vadd.f32 %v2301, %v2302
    %v2304 = vrot.slane %v2303, 1
    %v2305 = vadd.f32 %v2303, %v2304
    %v2306 = vadd.f32 %v2248, %v2256
    %v2307 = vrot.slane %v2306, 4
    %v2308 = vadd.f32 %v2306, %v2307
    %v2309 = vrot.slane %v2308, 2
    %v2310 = vadd.f32 %v2308, %v2309
    %v2311 = vrot.slane %v2310, 1
    %v2312 = vadd.f32 %v2310, %v2311
    %v2313 = vmul.f32 %v2263, %v580
    %v2314 = vmul.f32 %v2270, %v580
    %v2315 = vmul.f32 %v2277, %v580
    %v2316 = vmul.f32 %v2284, %v580
    %v2317 = vmul.f32 %v2291, %v580
    %v2318 = vmul.f32 %v2298, %v580
    %v2319 = vmul.f32 %v2305, %v580
    %v2320 = vmul.f32 %v2312, %v580
    %v2321 = vmul.f32 %v2233, %v2233
    %v2322 = vmul.f32 %v2234, %v2234
    %v2323 = vmul.f32 %v2235, %v2235
    %v2324 = vmul.f32 %v2236, %v2236
    %v2325 = vmul.f32 %v2237, %v2237
    %v2326 = vmul.f32 %v2238, %v2238
    %v2327 = vmul.f32 %v2239, %v2239
    %v2328 = vmul.f32 %v2240, %v2240
    %v2329 = vsub.f32 %v2313, %v2321
    %v2330 = vsub.f32 %v2314, %v2322
    %v2331 = vsub.f32 %v2315, %v2323
    %v2332 = vsub.f32 %v2316, %v2324
    %v2333 = vsub.f32 %v2317, %v2325
    %v2334 = vsub.f32 %v2318, %v2326
    %v2335 = vsub.f32 %v2319, %v2327
    %v2336 = vsub.f32 %v2320, %v2328
    %v2337 = vadd.f32 %v2329, 1e-05
    %v2338 = vadd.f32 %v2330, 1e-05
    %v2339 = vadd.f32 %v2331, 1e-05
    %v2340 = vadd.f32 %v2332, 1e-05
    %v2341 = vadd.f32 %v2333, 1e-05
    %v2342 = vadd.f32 %v2334, 1e-05
    %v2343 = vadd.f32 %v2335, 1e-05
    %v2344 = vadd.f32 %v2336, 1e-05
    %v2345 = vrsqrt.pop %v2337
    %v2346 = vrsqrt.pop %v2338
    %v2347 = vrsqrt.pop %v2339
    %v2348 = vrsqrt.pop %v2340
    %v2349 = vrsqrt.pop %v2341
    %v2350 = vrsqrt.pop %v2342
    %v2351 = vrsqrt.pop %v2343
    %v2352 = vrsqrt.pop %v2344
    %v2361 = vcombine.low %v2345, %v2346
    %v2362 = vcombine.low %v2347, %v2348
    %v2363 = vcombine.low %v2349, %v2350
    %v2364 = vcombine.low %v2351, %v2352
    %v2366 = vunpack.c.l.s4 1966171168
    %v2367 = vunpack.c.0.s8 %v2366
    %v2368 = vlaneseq
    %v2369 = vshrl.u32 %v2368, 7
    %v2370 = vsub.s32 %v2367, %v2369
    %v2371 = vrot.slane %v2361, %v2370
    %v2373 = vunpack.c.l.s4 1966171168
    %v2374 = vunpack.c.0.s8 %v2373
    %v2375 = vlaneseq
    %v2376 = vshrl.u32 %v2375, 7
    %v2377 = vsub.s32 %v2374, %v2376
    %v2378 = vrot.slane %v2362, %v2377
    %v2380 = vunpack.c.l.s4 1966171168
    %v2381 = vunpack.c.0.s8 %v2380
    %v2382 = vlaneseq
    %v2383 = vshrl.u32 %v2382, 7
    %v2384 = vsub.s32 %v2381, %v2383
    %v2385 = vrot.slane %v2363, %v2384
    %v2387 = vunpack.c.l.s4 1966171168
    %v2388 = vunpack.c.0.s8 %v2387
    %v2389 = vlaneseq
    %v2390 = vshrl.u32 %v2389, 7
    %v2391 = vsub.s32 %v2388, %v2390
    %v2392 = vrot.slane %v2364, %v2391
    %v2393 = vcombine.low %v2371, %v2378
    %v2394 = vcombine.low %v2385, %v2392
    %v2396 = vunpack.c.l.s4 1966171168
    %v2397 = vunpack.c.0.s8 %v2396
    %v2398 = vlaneseq
    %v2399 = vshrl.u32 %v2398, 7
    %v2400 = vsub.s32 %v2397, %v2399
    %v2401 = vrot.slane %v2393, %v2400
    %v2403 = vunpack.c.l.s4 1966171168
    %v2404 = vunpack.c.0.s8 %v2403
    %v2405 = vlaneseq
    %v2406 = vshrl.u32 %v2405, 7
    %v2407 = vsub.s32 %v2404, %v2406
    %v2408 = vrot.slane %v2394, %v2407
    %v2409 = vcombine.low %v2401, %v2408
    %v2411 = vmul.f32 %v2172, %v2409
    %v2413 = vlaneseq
    %v2414 = vshrl.u32 %v2413, 7
    %v2415 = vsub.s32 0, %v2414
    %v2416 = vrot.slane %v2411, %v2415
    %v2417 = vlaneseq
    %v2418 = vshrl.u32 %v2417, 7
    %v2419 = vsub.s32 1, %v2418
    %v2420 = vrot.slane %v2411, %v2419
    %v2421 = vlaneseq
    %v2422 = vshrl.u32 %v2421, 7
    %v2423 = vsub.s32 2, %v2422
    %v2424 = vrot.slane %v2411, %v2423
    %v2425 = vlaneseq
    %v2426 = vshrl.u32 %v2425, 7
    %v2427 = vsub.s32 3, %v2426
    %v2428 = vrot.slane %v2411, %v2427
    %v2429 = vlaneseq
    %v2430 = vshrl.u32 %v2429, 7
    %v2431 = vsub.s32 4, %v2430
    %v2432 = vrot.slane %v2411, %v2431
    %v2433 = vlaneseq
    %v2434 = vshrl.u32 %v2433, 7
    %v2435 = vsub.s32 5, %v2434
    %v2436 = vrot.slane %v2411, %v2435
    %v2437 = vlaneseq
    %v2438 = vshrl.u32 %v2437, 7
    %v2439 = vsub.s32 6, %v2438
    %v2440 = vrot.slane %v2411, %v2439
    %v2441 = vlaneseq
    %v2442 = vshrl.u32 %v2441, 7
    %v2443 = vsub.s32 7, %v2442
    %v2444 = vrot.slane %v2411, %v2443
    %v2453 = vmul.f32 %v2233, %v2416
    %v2454 = vmul.f32 %v2234, %v2420
    %v2455 = vmul.f32 %v2235, %v2424
    %v2456 = vmul.f32 %v2236, %v2428
    %v2457 = vmul.f32 %v2237, %v2432
    %v2458 = vmul.f32 %v2238, %v2436
    %v2459 = vmul.f32 %v2239, %v2440
    %v2460 = vmul.f32 %v2240, %v2444
    %v2469 = vcombine.low %v2453, %v2454
    %v2470 = vcombine.low %v2455, %v2456
    %v2471 = vcombine.low %v2457, %v2458
    %v2472 = vcombine.low %v2459, %v2460
    %v2474 = vunpack.c.l.s4 1966171168
    %v2475 = vunpack.c.0.s8 %v2474
    %v2476 = vlaneseq
    %v2477 = vshrl.u32 %v2476, 7
    %v2478 = vsub.s32 %v2475, %v2477
    %v2479 = vrot.slane %v2469, %v2478
    %v2481 = vunpack.c.l.s4 1966171168
    %v2482 = vunpack.c.0.s8 %v2481
    %v2483 = vlaneseq
    %v2484 = vshrl.u32 %v2483, 7
    %v2485 = vsub.s32 %v2482, %v2484
    %v2486 = vrot.slane %v2470, %v2485
    %v2488 = vunpack.c.l.s4 1966171168
    %v2489 = vunpack.c.0.s8 %v2488
    %v2490 = vlaneseq
    %v2491 = vshrl.u32 %v2490, 7
    %v2492 = vsub.s32 %v2489, %v2491
    %v2493 = vrot.slane %v2471, %v2492
    %v2495 = vunpack.c.l.s4 1966171168
    %v2496 = vunpack.c.0.s8 %v2495
    %v2497 = vlaneseq
    %v2498 = vshrl.u32 %v2497, 7
    %v2499 = vsub.s32 %v2496, %v2498
    %v2500 = vrot.slane %v2472, %v2499
    %v2501 = vcombine.low %v2479, %v2486
    %v2502 = vcombine.low %v2493, %v2500
    %v2504 = vunpack.c.l.s4 1966171168
    %v2505 = vunpack.c.0.s8 %v2504
    %v2506 = vlaneseq
    %v2507 = vshrl.u32 %v2506, 7
    %v2508 = vsub.s32 %v2505, %v2507
    %v2509 = vrot.slane %v2501, %v2508
    %v2511 = vunpack.c.l.s4 1966171168
    %v2512 = vunpack.c.0.s8 %v2511
    %v2513 = vlaneseq
    %v2514 = vshrl.u32 %v2513, 7
    %v2515 = vsub.s32 %v2512, %v2514
    %v2516 = vrot.slane %v2502, %v2515
    %v2517 = vcombine.low %v2509, %v2516
    %v2519 = vsub.f32 %v2176, %v2517
    %v2520 = vmul.f32 %v1645, %v2416
    %v2521 = vmul.f32 %v1647, %v2420
    %v2522 = vmul.f32 %v1817, %v2424
    %v2523 = vmul.f32 %v1819, %v2428
    %v2524 = vmul.f32 %v1989, %v2432
    %v2525 = vmul.f32 %v1991, %v2436
    %v2526 = vmul.f32 %v2161, %v2440
    %v2527 = vmul.f32 %v2163, %v2444
    %v2528 = vmul.f32 %v1649, %v2416
    %v2529 = vmul.f32 %v1651, %v2420
    %v2530 = vmul.f32 %v1821, %v2424
    %v2531 = vmul.f32 %v1823, %v2428
    %v2532 = vmul.f32 %v1993, %v2432
    %v2533 = vmul.f32 %v1995, %v2436
    %v2534 = vmul.f32 %v2165, %v2440
    %v2535 = vmul.f32 %v2167, %v2444
    %v2537 = vlaneseq
    %v2538 = vshrl.u32 %v2537, 7
    %v2539 = vsub.s32 0, %v2538
    %v2540 = vrot.slane %v2519, %v2539
    %v2541 = vlaneseq
    %v2542 = vshrl.u32 %v2541, 7
    %v2543 = vsub.s32 1, %v2542
    %v2544 = vrot.slane %v2519, %v2543
    %v2545 = vlaneseq
    %v2546 = vshrl.u32 %v2545, 7
    %v2547 = vsub.s32 2, %v2546
    %v2548 = vrot.slane %v2519, %v2547
    %v2549 = vlaneseq
    %v2550 = vshrl.u32 %v2549, 7
    %v2551 = vsub.s32 3, %v2550
    %v2552 = vrot.slane %v2519, %v2551
    %v2553 = vlaneseq
    %v2554 = vshrl.u32 %v2553, 7
    %v2555 = vsub.s32 4, %v2554
    %v2556 = vrot.slane %v2519, %v2555
    %v2557 = vlaneseq
    %v2558 = vshrl.u32 %v2557, 7
    %v2559 = vsub.s32 5, %v2558
    %v2560 = vrot.slane %v2519, %v2559
    %v2561 = vlaneseq
    %v2562 = vshrl.u32 %v2561, 7
    %v2563 = vsub.s32 6, %v2562
    %v2564 = vrot.slane %v2519, %v2563
    %v2565 = vlaneseq
    %v2566 = vshrl.u32 %v2565, 7
    %v2567 = vsub.s32 7, %v2566
    %v2568 = vrot.slane %v2519, %v2567
    %v2577 = vadd.f32 %v2520, %v2540
    %v2578 = vadd.f32 %v2521, %v2544
    %v2579 = vadd.f32 %v2522, %v2548
    %v2580 = vadd.f32 %v2523, %v2552
    %v2581 = vadd.f32 %v2524, %v2556
    %v2582 = vadd.f32 %v2525, %v2560
    %v2583 = vadd.f32 %v2526, %v2564
    %v2584 = vadd.f32 %v2527, %v2568
    %v2585 = vadd.f32 %v2528, %v2540
    %v2586 = vadd.f32 %v2529, %v2544
    %v2587 = vadd.f32 %v2530, %v2548
    %v2588 = vadd.f32 %v2531, %v2552
    %v2589 = vadd.f32 %v2532, %v2556
    %v2590 = vadd.f32 %v2533, %v2560
    %v2591 = vadd.f32 %v2534, %v2564
    %v2592 = vadd.f32 %v2535, %v2568
    %v2593 = vmax.f32 %v2577, 0.0
    %v2594 = vmax.f32 %v2578, 0.0
    %v2595 = vmax.f32 %v2579, 0.0
    %v2596 = vmax.f32 %v2580, 0.0
    %v2597 = vmax.f32 %v2581, 0.0
    %v2598 = vmax.f32 %v2582, 0.0
    %v2599 = vmax.f32 %v2583, 0.0
    %v2600 = vmax.f32 %v2584, 0.0
    %v2601 = vmax.f32 %v2585, 0.0
    %v2602 = vmax.f32 %v2586, 0.0
    %v2603 = vmax.f32 %v2587, 0.0
    %v2604 = vmax.f32 %v2588, 0.0
    %v2605 = vmax.f32 %v2589, 0.0
    %v2606 = vmax.f32 %v2590, 0.0
    %v2607 = vmax.f32 %v2591, 0.0
    %v2608 = vmax.f32 %v2592, 0.0
    %v2609 = vpack.c.bf16 %v2601, %v2593
    %v2610 = vpack.c.bf16 %v2602, %v2594
    %v2611 = vpack.c.bf16 %v2603, %v2595
    %v2612 = vpack.c.bf16 %v2604, %v2596
    %v2613 = vpack.c.bf16 %v2605, %v2597
    %v2614 = vpack.c.bf16 %v2606, %v2598
    %v2615 = vpack.c.bf16 %v2607, %v2599
    %v2616 = vpack.c.bf16 %v2608, %v2600
    %s2617 = smul.u32 %s965, 4
    %s2618 = sshll.u32 %s2617, 4
    %2619 = dma.done %s111, %s2618
    %v2620 = vld [vmem:[#allocation3] sm:$0xff]
    %v2621 = vld [vmem:[#allocation3 + $0x8] sm:$0xff]
    %v2622 = vld [vmem:[#allocation3 + $0x10] sm:$0xff]
    %v2623 = vld [vmem:[#allocation3 + $0x18] sm:$0xff]
    %v2624 = vld [vmem:[#allocation3 + $0x20] sm:$0xff]
    %v2625 = vld [vmem:[#allocation3 + $0x28] sm:$0xff]
    %v2626 = vld [vmem:[#allocation3 + $0x30] sm:$0xff]
    %v2627 = vld [vmem:[#allocation3 + $0x38] sm:$0xff]
    %v2628 = vld [vmem:[#allocation3 + $0x40] sm:$0xff]
    %v2629 = vld [vmem:[#allocation3 + $0x48] sm:$0xff]
    %v2630 = vld [vmem:[#allocation3 + $0x50] sm:$0xff]
    %v2631 = vld [vmem:[#allocation3 + $0x58] sm:$0xff]
    %v2632 = vld [vmem:[#allocation3 + $0x60] sm:$0xff]
    %v2633 = vld [vmem:[#allocation3 + $0x68] sm:$0xff]
    %v2634 = vld [vmem:[#allocation3 + $0x70] sm:$0xff]
    %v2635 = vld [vmem:[#allocation3 + $0x78] sm:$0xff]
    %v2636 = vld [vmem:[#allocation3 + $0x80] sm:$0xff]
    %v2637 = vld [vmem:[#allocation3 + $0x88] sm:$0xff]
    %v2638 = vld [vmem:[#allocation3 + $0x90] sm:$0xff]
    %v2639 = vld [vmem:[#allocation3 + $0x98] sm:$0xff]
    %v2640 = vld [vmem:[#allocation3 + $0xa0] sm:$0xff]
    %v2641 = vld [vmem:[#allocation3 + $0xa8] sm:$0xff]
    %v2642 = vld [vmem:[#allocation3 + $0xb0] sm:$0xff]
    %v2643 = vld [vmem:[#allocation3 + $0xb8] sm:$0xff]
    %v2644 = vld [vmem:[#allocation3 + $0xc0] sm:$0xff]
    %v2645 = vld [vmem:[#allocation3 + $0xc8] sm:$0xff]
    %v2646 = vld [vmem:[#allocation3 + $0xd0] sm:$0xff]
    %v2647 = vld [vmem:[#allocation3 + $0xd8] sm:$0xff]
    %v2648 = vld [vmem:[#allocation3 + $0xe0] sm:$0xff]
    %v2649 = vld [vmem:[#allocation3 + $0xe8] sm:$0xff]
    %v2650 = vld [vmem:[#allocation3 + $0xf0] sm:$0xff]
    %v2651 = vld [vmem:[#allocation3 + $0xf8] sm:$0xff]
    %v2652 = vld [vmem:[#allocation3 + $0x100] sm:$0xff]
    %v2653 = vld [vmem:[#allocation3 + $0x108] sm:$0xff]
    %v2654 = vld [vmem:[#allocation3 + $0x110] sm:$0xff]
    %v2655 = vld [vmem:[#allocation3 + $0x118] sm:$0xff]
    %v2656 = vld [vmem:[#allocation3 + $0x120] sm:$0xff]
    %v2657 = vld [vmem:[#allocation3 + $0x128] sm:$0xff]
    %v2658 = vld [vmem:[#allocation3 + $0x130] sm:$0xff]
    %v2659 = vld [vmem:[#allocation3 + $0x138] sm:$0xff]
    %v2660 = vld [vmem:[#allocation3 + $0x140] sm:$0xff]
    %v2661 = vld [vmem:[#allocation3 + $0x148] sm:$0xff]
    %v2662 = vld [vmem:[#allocation3 + $0x150] sm:$0xff]
    %v2663 = vld [vmem:[#allocation3 + $0x158] sm:$0xff]
    %v2664 = vld [vmem:[#allocation3 + $0x160] sm:$0xff]
    %v2665 = vld [vmem:[#allocation3 + $0x168] sm:$0xff]
    %v2666 = vld [vmem:[#allocation3 + $0x170] sm:$0xff]
    %v2667 = vld [vmem:[#allocation3 + $0x178] sm:$0xff]
    %v2668 = vld [vmem:[#allocation3 + $0x180] sm:$0xff]
    %v2669 = vld [vmem:[#allocation3 + $0x188] sm:$0xff]
    %v2670 = vld [vmem:[#allocation3 + $0x190] sm:$0xff]
    %v2671 = vld [vmem:[#allocation3 + $0x198] sm:$0xff]
    %v2672 = vld [vmem:[#allocation3 + $0x1a0] sm:$0xff]
    %v2673 = vld [vmem:[#allocation3 + $0x1a8] sm:$0xff]
    %v2674 = vld [vmem:[#allocation3 + $0x1b0] sm:$0xff]
    %v2675 = vld [vmem:[#allocation3 + $0x1b8] sm:$0xff]
    %v2676 = vld [vmem:[#allocation3 + $0x1c0] sm:$0xff]
    %v2677 = vld [vmem:[#allocation3 + $0x1c8] sm:$0xff]
    %v2678 = vld [vmem:[#allocation3 + $0x1d0] sm:$0xff]
    %v2679 = vld [vmem:[#allocation3 + $0x1d8] sm:$0xff]
    %v2680 = vld [vmem:[#allocation3 + $0x1e0] sm:$0xff]
    %v2681 = vld [vmem:[#allocation3 + $0x1e8] sm:$0xff]
    %v2682 = vld [vmem:[#allocation3 + $0x1f0] sm:$0xff]
    %v2683 = vld [vmem:[#allocation3 + $0x1f8] sm:$0xff]
    %v2684 = vld [vmem:[#allocation3 + $0x200] sm:$0xff]
    %v2685 = vld [vmem:[#allocation3 + $0x208] sm:$0xff]
    %v2686 = vld [vmem:[#allocation3 + $0x210] sm:$0xff]
    %v2687 = vld [vmem:[#allocation3 + $0x218] sm:$0xff]
    %v2688 = vld [vmem:[#allocation3 + $0x220] sm:$0xff]
    %v2689 = vld [vmem:[#allocation3 + $0x228] sm:$0xff]
    %v2690 = vld [vmem:[#allocation3 + $0x230] sm:$0xff]
    %v2691 = vld [vmem:[#allocation3 + $0x238] sm:$0xff]
    %v2692 = vld [vmem:[#allocation3 + $0x240] sm:$0xff]
    %v2693 = vld [vmem:[#allocation3 + $0x248] sm:$0xff]
    %v2694 = vld [vmem:[#allocation3 + $0x250] sm:$0xff]
    %v2695 = vld [vmem:[#allocation3 + $0x258] sm:$0xff]
    %v2696 = vld [vmem:[#allocation3 + $0x260] sm:$0xff]
    %v2697 = vld [vmem:[#allocation3 + $0x268] sm:$0xff]
    %v2698 = vld [vmem:[#allocation3 + $0x270] sm:$0xff]
    %v2699 = vld [vmem:[#allocation3 + $0x278] sm:$0xff]
    %v2700 = vld [vmem:[#allocation3 + $0x280] sm:$0xff]
    %v2701 = vld [vmem:[#allocation3 + $0x288] sm:$0xff]
    %v2702 = vld [vmem:[#allocation3 + $0x290] sm:$0xff]
    %v2703 = vld [vmem:[#allocation3 + $0x298] sm:$0xff]
    %v2704 = vld [vmem:[#allocation3 + $0x2a0] sm:$0xff]
    %v2705 = vld [vmem:[#allocation3 + $0x2a8] sm:$0xff]
    %v2706 = vld [vmem:[#allocation3 + $0x2b0] sm:$0xff]
    %v2707 = vld [vmem:[#allocation3 + $0x2b8] sm:$0xff]
    %v2708 = vld [vmem:[#allocation3 + $0x2c0] sm:$0xff]
    %v2709 = vld [vmem:[#allocation3 + $0x2c8] sm:$0xff]
    %v2710 = vld [vmem:[#allocation3 + $0x2d0] sm:$0xff]
    %v2711 = vld [vmem:[#allocation3 + $0x2d8] sm:$0xff]
    %v2712 = vld [vmem:[#allocation3 + $0x2e0] sm:$0xff]
    %v2713 = vld [vmem:[#allocation3 + $0x2e8] sm:$0xff]
    %v2714 = vld [vmem:[#allocation3 + $0x2f0] sm:$0xff]
    %v2715 = vld [vmem:[#allocation3 + $0x2f8] sm:$0xff]
    %v2716 = vld [vmem:[#allocation3 + $0x300] sm:$0xff]
    %v2717 = vld [vmem:[#allocation3 + $0x308] sm:$0xff]
    %v2718 = vld [vmem:[#allocation3 + $0x310] sm:$0xff]
    %v2719 = vld [vmem:[#allocation3 + $0x318] sm:$0xff]
    %v2720 = vld [vmem:[#allocation3 + $0x320] sm:$0xff]
    %v2721 = vld [vmem:[#allocation3 + $0x328] sm:$0xff]
    %v2722 = vld [vmem:[#allocation3 + $0x330] sm:$0xff]
    %v2723 = vld [vmem:[#allocation3 + $0x338] sm:$0xff]
    %v2724 = vld [vmem:[#allocation3 + $0x340] sm:$0xff]
    %v2725 = vld [vmem:[#allocation3 + $0x348] sm:$0xff]
    %v2726 = vld [vmem:[#allocation3 + $0x350] sm:$0xff]
    %v2727 = vld [vmem:[#allocation3 + $0x358] sm:$0xff]
    %v2728 = vld [vmem:[#allocation3 + $0x360] sm:$0xff]
    %v2729 = vld [vmem:[#allocation3 + $0x368] sm:$0xff]
    %v2730 = vld [vmem:[#allocation3 + $0x370] sm:$0xff]
    %v2731 = vld [vmem:[#allocation3 + $0x378] sm:$0xff]
    %v2732 = vld [vmem:[#allocation3 + $0x380] sm:$0xff]
    %v2733 = vld [vmem:[#allocation3 + $0x388] sm:$0xff]
    %v2734 = vld [vmem:[#allocation3 + $0x390] sm:$0xff]
    %v2735 = vld [vmem:[#allocation3 + $0x398] sm:$0xff]
    %v2736 = vld [vmem:[#allocation3 + $0x3a0] sm:$0xff]
    %v2737 = vld [vmem:[#allocation3 + $0x3a8] sm:$0xff]
    %v2738 = vld [vmem:[#allocation3 + $0x3b0] sm:$0xff]
    %v2739 = vld [vmem:[#allocation3 + $0x3b8] sm:$0xff]
    %v2740 = vld [vmem:[#allocation3 + $0x3c0] sm:$0xff]
    %v2741 = vld [vmem:[#allocation3 + $0x3c8] sm:$0xff]
    %v2742 = vld [vmem:[#allocation3 + $0x3d0] sm:$0xff]
    %v2743 = vld [vmem:[#allocation3 + $0x3d8] sm:$0xff]
    %v2744 = vld [vmem:[#allocation3 + $0x3e0] sm:$0xff]
    %v2745 = vld [vmem:[#allocation3 + $0x3e8] sm:$0xff]
    %v2746 = vld [vmem:[#allocation3 + $0x3f0] sm:$0xff]
    %v2747 = vld [vmem:[#allocation3 + $0x3f8] sm:$0xff]
    %v2748 = vld [vmem:[#allocation3 + $0x400] sm:$0xff]
    %v2749 = vld [vmem:[#allocation3 + $0x408] sm:$0xff]
    %v2750 = vld [vmem:[#allocation3 + $0x410] sm:$0xff]
    %v2751 = vld [vmem:[#allocation3 + $0x418] sm:$0xff]
    %v2752 = vld [vmem:[#allocation3 + $0x420] sm:$0xff]
    %v2753 = vld [vmem:[#allocation3 + $0x428] sm:$0xff]
    %v2754 = vld [vmem:[#allocation3 + $0x430] sm:$0xff]
    %v2755 = vld [vmem:[#allocation3 + $0x438] sm:$0xff]
    %v2756 = vld [vmem:[#allocation3 + $0x440] sm:$0xff]
    %v2757 = vld [vmem:[#allocation3 + $0x448] sm:$0xff]
    %v2758 = vld [vmem:[#allocation3 + $0x450] sm:$0xff]
    %v2759 = vld [vmem:[#allocation3 + $0x458] sm:$0xff]
    %v2760 = vld [vmem:[#allocation3 + $0x460] sm:$0xff]
    %v2761 = vld [vmem:[#allocation3 + $0x468] sm:$0xff]
    %v2762 = vld [vmem:[#allocation3 + $0x470] sm:$0xff]
    %v2763 = vld [vmem:[#allocation3 + $0x478] sm:$0xff]
    %v2764 = vld [vmem:[#allocation3 + $0x480] sm:$0xff]
    %v2765 = vld [vmem:[#allocation3 + $0x488] sm:$0xff]
    %v2766 = vld [vmem:[#allocation3 + $0x490] sm:$0xff]
    %v2767 = vld [vmem:[#allocation3 + $0x498] sm:$0xff]
    %v2768 = vld [vmem:[#allocation3 + $0x4a0] sm:$0xff]
    %v2769 = vld [vmem:[#allocation3 + $0x4a8] sm:$0xff]
    %v2770 = vld [vmem:[#allocation3 + $0x4b0] sm:$0xff]
    %v2771 = vld [vmem:[#allocation3 + $0x4b8] sm:$0xff]
    %v2772 = vld [vmem:[#allocation3 + $0x4c0] sm:$0xff]
    %v2773 = vld [vmem:[#allocation3 + $0x4c8] sm:$0xff]
    %v2774 = vld [vmem:[#allocation3 + $0x4d0] sm:$0xff]
    %v2775 = vld [vmem:[#allocation3 + $0x4d8] sm:$0xff]
    %v2776 = vld [vmem:[#allocation3 + $0x4e0] sm:$0xff]
    %v2777 = vld [vmem:[#allocation3 + $0x4e8] sm:$0xff]
    %v2778 = vld [vmem:[#allocation3 + $0x4f0] sm:$0xff]
    %v2779 = vld [vmem:[#allocation3 + $0x4f8] sm:$0xff]
    %v2780 = vld [vmem:[#allocation3 + $0x500] sm:$0xff]
    %v2781 = vld [vmem:[#allocation3 + $0x508] sm:$0xff]
    %v2782 = vld [vmem:[#allocation3 + $0x510] sm:$0xff]
    %v2783 = vld [vmem:[#allocation3 + $0x518] sm:$0xff]
    %v2784 = vld [vmem:[#allocation3 + $0x520] sm:$0xff]
    %v2785 = vld [vmem:[#allocation3 + $0x528] sm:$0xff]
    %v2786 = vld [vmem:[#allocation3 + $0x530] sm:$0xff]
    %v2787 = vld [vmem:[#allocation3 + $0x538] sm:$0xff]
    %v2788 = vld [vmem:[#allocation3 + $0x540] sm:$0xff]
    %v2789 = vld [vmem:[#allocation3 + $0x548] sm:$0xff]
    %v2790 = vld [vmem:[#allocation3 + $0x550] sm:$0xff]
    %v2791 = vld [vmem:[#allocation3 + $0x558] sm:$0xff]
    %v2792 = vld [vmem:[#allocation3 + $0x560] sm:$0xff]
    %v2793 = vld [vmem:[#allocation3 + $0x568] sm:$0xff]
    %v2794 = vld [vmem:[#allocation3 + $0x570] sm:$0xff]
    %v2795 = vld [vmem:[#allocation3 + $0x578] sm:$0xff]
    %v2796 = vld [vmem:[#allocation3 + $0x580] sm:$0xff]
    %v2797 = vld [vmem:[#allocation3 + $0x588] sm:$0xff]
    %v2798 = vld [vmem:[#allocation3 + $0x590] sm:$0xff]
    %v2799 = vld [vmem:[#allocation3 + $0x598] sm:$0xff]
    %v2800 = vld [vmem:[#allocation3 + $0x5a0] sm:$0xff]
    %v2801 = vld [vmem:[#allocation3 + $0x5a8] sm:$0xff]
    %v2802 = vld [vmem:[#allocation3 + $0x5b0] sm:$0xff]
    %v2803 = vld [vmem:[#allocation3 + $0x5b8] sm:$0xff]
    %v2804 = vld [vmem:[#allocation3 + $0x5c0] sm:$0xff]
    %v2805 = vld [vmem:[#allocation3 + $0x5c8] sm:$0xff]
    %v2806 = vld [vmem:[#allocation3 + $0x5d0] sm:$0xff]
    %v2807 = vld [vmem:[#allocation3 + $0x5d8] sm:$0xff]
    %v2808 = vld [vmem:[#allocation3 + $0x5e0] sm:$0xff]
    %v2809 = vld [vmem:[#allocation3 + $0x5e8] sm:$0xff]
    %v2810 = vld [vmem:[#allocation3 + $0x5f0] sm:$0xff]
    %v2811 = vld [vmem:[#allocation3 + $0x5f8] sm:$0xff]
    %v2812 = vld [vmem:[#allocation3 + $0x600] sm:$0xff]
    %v2813 = vld [vmem:[#allocation3 + $0x608] sm:$0xff]
    %v2814 = vld [vmem:[#allocation3 + $0x610] sm:$0xff]
    %v2815 = vld [vmem:[#allocation3 + $0x618] sm:$0xff]
    %v2816 = vld [vmem:[#allocation3 + $0x620] sm:$0xff]
    %v2817 = vld [vmem:[#allocation3 + $0x628] sm:$0xff]
    %v2818 = vld [vmem:[#allocation3 + $0x630] sm:$0xff]
    %v2819 = vld [vmem:[#allocation3 + $0x638] sm:$0xff]
    %v2820 = vld [vmem:[#allocation3 + $0x640] sm:$0xff]
    %v2821 = vld [vmem:[#allocation3 + $0x648] sm:$0xff]
    %v2822 = vld [vmem:[#allocation3 + $0x650] sm:$0xff]
    %v2823 = vld [vmem:[#allocation3 + $0x658] sm:$0xff]
    %v2824 = vld [vmem:[#allocation3 + $0x660] sm:$0xff]
    %v2825 = vld [vmem:[#allocation3 + $0x668] sm:$0xff]
    %v2826 = vld [vmem:[#allocation3 + $0x670] sm:$0xff]
    %v2827 = vld [vmem:[#allocation3 + $0x678] sm:$0xff]
    %v2828 = vld [vmem:[#allocation3 + $0x680] sm:$0xff]
    %v2829 = vld [vmem:[#allocation3 + $0x688] sm:$0xff]
    %v2830 = vld [vmem:[#allocation3 + $0x690] sm:$0xff]
    %v2831 = vld [vmem:[#allocation3 + $0x698] sm:$0xff]
    %v2832 = vld [vmem:[#allocation3 + $0x6a0] sm:$0xff]
    %v2833 = vld [vmem:[#allocation3 + $0x6a8] sm:$0xff]
    %v2834 = vld [vmem:[#allocation3 + $0x6b0] sm:$0xff]
    %v2835 = vld [vmem:[#allocation3 + $0x6b8] sm:$0xff]
    %v2836 = vld [vmem:[#allocation3 + $0x6c0] sm:$0xff]
    %v2837 = vld [vmem:[#allocation3 + $0x6c8] sm:$0xff]
    %v2838 = vld [vmem:[#allocation3 + $0x6d0] sm:$0xff]
    %v2839 = vld [vmem:[#allocation3 + $0x6d8] sm:$0xff]
    %v2840 = vld [vmem:[#allocation3 + $0x6e0] sm:$0xff]
    %v2841 = vld [vmem:[#allocation3 + $0x6e8] sm:$0xff]
    %v2842 = vld [vmem:[#allocation3 + $0x6f0] sm:$0xff]
    %v2843 = vld [vmem:[#allocation3 + $0x6f8] sm:$0xff]
    %v2844 = vld [vmem:[#allocation3 + $0x700] sm:$0xff]
    %v2845 = vld [vmem:[#allocation3 + $0x708] sm:$0xff]
    %v2846 = vld [vmem:[#allocation3 + $0x710] sm:$0xff]
    %v2847 = vld [vmem:[#allocation3 + $0x718] sm:$0xff]
    %v2848 = vld [vmem:[#allocation3 + $0x720] sm:$0xff]
    %v2849 = vld [vmem:[#allocation3 + $0x728] sm:$0xff]
    %v2850 = vld [vmem:[#allocation3 + $0x730] sm:$0xff]
    %v2851 = vld [vmem:[#allocation3 + $0x738] sm:$0xff]
    %v2852 = vld [vmem:[#allocation3 + $0x740] sm:$0xff]
    %v2853 = vld [vmem:[#allocation3 + $0x748] sm:$0xff]
    %v2854 = vld [vmem:[#allocation3 + $0x750] sm:$0xff]
    %v2855 = vld [vmem:[#allocation3 + $0x758] sm:$0xff]
    %v2856 = vld [vmem:[#allocation3 + $0x760] sm:$0xff]
    %v2857 = vld [vmem:[#allocation3 + $0x768] sm:$0xff]
    %v2858 = vld [vmem:[#allocation3 + $0x770] sm:$0xff]
    %v2859 = vld [vmem:[#allocation3 + $0x778] sm:$0xff]
    %v2860 = vld [vmem:[#allocation3 + $0x780] sm:$0xff]
    %v2861 = vld [vmem:[#allocation3 + $0x788] sm:$0xff]
    %v2862 = vld [vmem:[#allocation3 + $0x790] sm:$0xff]
    %v2863 = vld [vmem:[#allocation3 + $0x798] sm:$0xff]
    %v2864 = vld [vmem:[#allocation3 + $0x7a0] sm:$0xff]
    %v2865 = vld [vmem:[#allocation3 + $0x7a8] sm:$0xff]
    %v2866 = vld [vmem:[#allocation3 + $0x7b0] sm:$0xff]
    %v2867 = vld [vmem:[#allocation3 + $0x7b8] sm:$0xff]
    %v2868 = vld [vmem:[#allocation3 + $0x7c0] sm:$0xff]
    %v2869 = vld [vmem:[#allocation3 + $0x7c8] sm:$0xff]
    %v2870 = vld [vmem:[#allocation3 + $0x7d0] sm:$0xff]
    %v2871 = vld [vmem:[#allocation3 + $0x7d8] sm:$0xff]
    %v2872 = vld [vmem:[#allocation3 + $0x7e0] sm:$0xff]
    %v2873 = vld [vmem:[#allocation3 + $0x7e8] sm:$0xff]
    %v2874 = vld [vmem:[#allocation3 + $0x7f0] sm:$0xff]
    %v2875 = vld [vmem:[#allocation3 + $0x7f8] sm:$0xff]
    %2876 = vmatprep.subr.bf16.mxu0 %v2621
    %2877 = vmatpush1.bf16.msra.mxu0 %v2620
    %2878 = vmatprep.subr.bf16.mxu0 %v2625
    %2879 = vmatpush1.bf16.msra.mxu0 %v2624
    %2880 = vmatprep.subr.bf16.mxu0 %v2629
    %2881 = vmatpush1.bf16.msra.mxu0 %v2628
    %2882 = vmatprep.subr.bf16.mxu0 %v2633
    %2883 = vmatpush1.bf16.msra.mxu0 %v2632
    %2884 = vmatprep.subr.bf16.mxu0 %v2637
    %2885 = vmatpush1.bf16.msra.mxu0 %v2636
    %2886 = vmatprep.subr.bf16.mxu0 %v2641
    %2887 = vmatpush1.bf16.msra.mxu0 %v2640
    %2888 = vmatprep.subr.bf16.mxu0 %v2645
    %2889 = vmatpush1.bf16.msra.mxu0 %v2644
    %2890 = vmatprep.subr.bf16.mxu0 %v2649
    %2891 = vmatpush1.bf16.msra.mxu0 %v2648
    %2892 = vmatprep.subr.bf16.mxu0 %v2653
    %2893 = vmatpush1.bf16.msra.mxu0 %v2652
    %2894 = vmatprep.subr.bf16.mxu0 %v2657
    %2895 = vmatpush1.bf16.msra.mxu0 %v2656
    %2896 = vmatprep.subr.bf16.mxu0 %v2661
    %2897 = vmatpush1.bf16.msra.mxu0 %v2660
    %2898 = vmatprep.subr.bf16.mxu0 %v2665
    %2899 = vmatpush1.bf16.msra.mxu0 %v2664
    %2900 = vmatprep.subr.bf16.mxu0 %v2669
    %2901 = vmatpush1.bf16.msra.mxu0 %v2668
    %2902 = vmatprep.subr.bf16.mxu0 %v2673
    %2903 = vmatpush1.bf16.msra.mxu0 %v2672
    %2904 = vmatprep.subr.bf16.mxu0 %v2677
    %2905 = vmatpush1.bf16.msra.mxu0 %v2676
    %2906 = vmatprep.subr.bf16.mxu0 %v2681
    %2907 = vmatpush1.bf16.msra.mxu0 %v2680
    %2908 = vmatprep.mubr.bf16.mxu0 %v2610
    %2909 = vmatmul.mubr.bf16.gmra.mrb[0].mxu0 %v2609
    %v2910 = vpop.f32.mrb[0].mxu0
    %v2911 = vadd.f32 0.0, %v2910
    %v2912 = vpop.f32.mrb[0].mxu0
    %v2913 = vadd.f32 0.0, %v2912
    %v2914 = vpop.f32.mrb[0].mxu0
    %v2915 = vadd.f32 0.0, %v2914
    %v2916 = vpop.f32.mrb[0].mxu0
    %v2917 = vadd.f32 0.0, %v2916
    %2918 = vdwg.mxu0
    %2919 = vmatprep.subr.bf16.mxu0 %v2685
    %2920 = vmatpush1.bf16.msra.mxu0 %v2684
    %2921 = vmatprep.subr.bf16.mxu0 %v2689
    %2922 = vmatpush1.bf16.msra.mxu0 %v2688
    %2923 = vmatprep.subr.bf16.mxu0 %v2693
    %2924 = vmatpush1.bf16.msra.mxu0 %v2692
    %2925 = vmatprep.subr.bf16.mxu0 %v2697
    %2926 = vmatpush1.bf16.msra.mxu0 %v2696
    %2927 = vmatprep.subr.bf16.mxu0 %v2701
    %2928 = vmatpush1.bf16.msra.mxu0 %v2700
    %2929 = vmatprep.subr.bf16.mxu0 %v2705
    %2930 = vmatpush1.bf16.msra.mxu0 %v2704
    %2931 = vmatprep.subr.bf16.mxu0 %v2709
    %2932 = vmatpush1.bf16.msra.mxu0 %v2708
    %2933 = vmatprep.subr.bf16.mxu0 %v2713
    %2934 = vmatpush1.bf16.msra.mxu0 %v2712
    %2935 = vmatprep.subr.bf16.mxu0 %v2717
    %2936 = vmatpush1.bf16.msra.mxu0 %v2716
    %2937 = vmatprep.subr.bf16.mxu0 %v2721
    %2938 = vmatpush1.bf16.msra.mxu0 %v2720
    %2939 = vmatprep.subr.bf16.mxu0 %v2725
    %2940 = vmatpush1.bf16.msra.mxu0 %v2724
    %2941 = vmatprep.subr.bf16.mxu0 %v2729
    %2942 = vmatpush1.bf16.msra.mxu0 %v2728
    %2943 = vmatprep.subr.bf16.mxu0 %v2733
    %2944 = vmatpush1.bf16.msra.mxu0 %v2732
    %2945 = vmatprep.subr.bf16.mxu0 %v2737
    %2946 = vmatpush1.bf16.msra.mxu0 %v2736
    %2947 = vmatprep.subr.bf16.mxu0 %v2741
    %2948 = vmatpush1.bf16.msra.mxu0 %v2740
    %2949 = vmatprep.subr.bf16.mxu0 %v2745
    %2950 = vmatpush1.bf16.msra.mxu0 %v2744
    %2951 = vmatprep.mubr.bf16.mxu0 %v2612
    %2952 = vmatmul.mubr.bf16.gmra.mrb[0].mxu0 %v2611
    %v2953 = vpop.f32.mrb[0].mxu0
    %v2954 = vadd.f32 %v2911, %v2953
    %v2955 = vpop.f32.mrb[0].mxu0
    %v2956 = vadd.f32 %v2913, %v2955
    %v2957 = vpop.f32.mrb[0].mxu0
    %v2958 = vadd.f32 %v2915, %v2957
    %v2959 = vpop.f32.mrb[0].mxu0
    %v2960 = vadd.f32 %v2917, %v2959
    %2961 = vdwg.mxu0
    %2962 = vmatprep.subr.bf16.mxu0 %v2749
    %2963 = vmatpush1.bf16.msra.mxu0 %v2748
    %2964 = vmatprep.subr.bf16.mxu0 %v2753
    %2965 = vmatpush1.bf16.msra.mxu0 %v2752
    %2966 = vmatprep.subr.bf16.mxu0 %v2757
    %2967 = vmatpush1.bf16.msra.mxu0 %v2756
    %2968 = vmatprep.subr.bf16.mxu0 %v2761
    %2969 = vmatpush1.bf16.msra.mxu0 %v2760
    %2970 = vmatprep.subr.bf16.mxu0 %v2765
    %2971 = vmatpush1.bf16.msra.mxu0 %v2764
    %2972 = vmatprep.subr.bf16.mxu0 %v2769
    %2973 = vmatpush1.bf16.msra.mxu0 %v2768
    %2974 = vmatprep.subr.bf16.mxu0 %v2773
    %2975 = vmatpush1.bf16.msra.mxu0 %v2772
    %2976 = vmatprep.subr.bf16.mxu0 %v2777
    %2977 = vmatpush1.bf16.msra.mxu0 %v2776
    %2978 = vmatprep.subr.bf16.mxu0 %v2781
    %2979 = vmatpush1.bf16.msra.mxu0 %v2780
    %2980 = vmatprep.subr.bf16.mxu0 %v2785
    %2981 = vmatpush1.bf16.msra.mxu0 %v2784
    %2982 = vmatprep.subr.bf16.mxu0 %v2789
    %2983 = vmatpush1.bf16.msra.mxu0 %v2788
    %2984 = vmatprep.subr.bf16.mxu0 %v2793
    %2985 = vmatpush1.bf16.msra.mxu0 %v2792
    %2986 = vmatprep.subr.bf16.mxu0 %v2797
    %2987 = vmatpush1.bf16.msra.mxu0 %v2796
    %2988 = vmatprep.subr.bf16.mxu0 %v2801
    %2989 = vmatpush1.bf16.msra.mxu0 %v2800
    %2990 = vmatprep.subr.bf16.mxu0 %v2805
    %2991 = vmatpush1.bf16.msra.mxu0 %v2804
    %2992 = vmatprep.subr.bf16.mxu0 %v2809
    %2993 = vmatpush1.bf16.msra.mxu0 %v2808
    %2994 = vmatprep.mubr.bf16.mxu0 %v2614
    %2995 = vmatmul.mubr.bf16.gmra.mrb[0].mxu0 %v2613
    %v2996 = vpop.f32.mrb[0].mxu0
    %v2997 = vadd.f32 %v2954, %v2996
    %v2998 = vpop.f32.mrb[0].mxu0
    %v2999 = vadd.f32 %v2956, %v2998
    %v3000 = vpop.f32.mrb[0].mxu0
    %v3001 = vadd.f32 %v2958, %v3000
    %v3002 = vpop.f32.mrb[0].mxu0
    %v3003 = vadd.f32 %v2960, %v3002
    %3004 = vdwg.mxu0
    %3005 = vmatprep.subr.bf16.mxu0 %v2813
    %3006 = vmatpush1.bf16.msra.mxu0 %v2812
    %3007 = vmatprep.subr.bf16.mxu0 %v2817
    %3008 = vmatpush1.bf16.msra.mxu0 %v2816
    %3009 = vmatprep.subr.bf16.mxu0 %v2821
    %3010 = vmatpush1.bf16.msra.mxu0 %v2820
    %3011 = vmatprep.subr.bf16.mxu0 %v2825
    %3012 = vmatpush1.bf16.msra.mxu0 %v2824
    %3013 = vmatprep.subr.bf16.mxu0 %v2829
    %3014 = vmatpush1.bf16.msra.mxu0 %v2828
    %3015 = vmatprep.subr.bf16.mxu0 %v2833
    %3016 = vmatpush1.bf16.msra.mxu0 %v2832
    %3017 = vmatprep.subr.bf16.mxu0 %v2837
    %3018 = vmatpush1.bf16.msra.mxu0 %v2836
    %3019 = vmatprep.subr.bf16.mxu0 %v2841
    %3020 = vmatpush1.bf16.msra.mxu0 %v2840
    %3021 = vmatprep.subr.bf16.mxu0 %v2845
    %3022 = vmatpush1.bf16.msra.mxu0 %v2844
    %3023 = vmatprep.subr.bf16.mxu0 %v2849
    %3024 = vmatpush1.bf16.msra.mxu0 %v2848
    %3025 = vmatprep.subr.bf16.mxu0 %v2853
    %3026 = vmatpush1.bf16.msra.mxu0 %v2852
    %3027 = vmatprep.subr.bf16.mxu0 %v2857
    %3028 = vmatpush1.bf16.msra.mxu0 %v2856
    %3029 = vmatprep.subr.bf16.mxu0 %v2861
    %3030 = vmatpush1.bf16.msra.mxu0 %v2860
    %3031 = vmatprep.subr.bf16.mxu0 %v2865
    %3032 = vmatpush1.bf16.msra.mxu0 %v2864
    %3033 = vmatprep.subr.bf16.mxu0 %v2869
    %3034 = vmatpush1.bf16.msra.mxu0 %v2868
    %3035 = vmatprep.subr.bf16.mxu0 %v2873
    %3036 = vmatpush1.bf16.msra.mxu0 %v2872
    %3037 = vmatprep.mubr.bf16.mxu0 %v2616
    %3038 = vmatmul.mubr.bf16.gmra.mrb[0].mxu0 %v2615
    %v3039 = vpop.f32.mrb[0].mxu0
    %v3040 = vadd.f32 %v2997, %v3039
    %v3041 = vpop.f32.mrb[0].mxu0
    %v3042 = vadd.f32 %v2999, %v3041
    %v3043 = vpop.f32.mrb[0].mxu0
    %v3044 = vadd.f32 %v3001, %v3043
    %v3045 = vpop.f32.mrb[0].mxu0
    %v3046 = vadd.f32 %v3003, %v3045
    %3047 = vdwg.mxu0
    %3048 = vmatprep.subr.bf16.mxu0 %v2623
    %3049 = vmatpush1.bf16.msra.mxu0 %v2622
    %3050 = vmatprep.subr.bf16.mxu0 %v2627
    %3051 = vmatpush1.bf16.msra.mxu0 %v2626
    %3052 = vmatprep.subr.bf16.mxu0 %v2631
    %3053 = vmatpush1.bf16.msra.mxu0 %v2630
    %3054 = vmatprep.subr.bf16.mxu0 %v2635
    %3055 = vmatpush1.bf16.msra.mxu0 %v2634
    %3056 = vmatprep.subr.bf16.mxu0 %v2639
    %3057 = vmatpush1.bf16.msra.mxu0 %v2638
    %3058 = vmatprep.subr.bf16.mxu0 %v2643
    %3059 = vmatpush1.bf16.msra.mxu0 %v2642
    %3060 = vmatprep.subr.bf16.mxu0 %v2647
    %3061 = vmatpush1.bf16.msra.mxu0 %v2646
    %3062 = vmatprep.subr.bf16.mxu0 %v2651
    %3063 = vmatpush1.bf16.msra.mxu0 %v2650
    %3064 = vmatprep.subr.bf16.mxu0 %v2655
    %3065 = vmatpush1.bf16.msra.mxu0 %v2654
    %3066 = vmatprep.subr.bf16.mxu0 %v2659
    %3067 = vmatpush1.bf16.msra.mxu0 %v2658
    %3068 = vmatprep.subr.bf16.mxu0 %v2663
    %3069 = vmatpush1.bf16.msra.mxu0 %v2662
    %3070 = vmatprep.subr.bf16.mxu0 %v2667
    %3071 = vmatpush1.bf16.msra.mxu0 %v2666
    %3072 = vmatprep.subr.bf16.mxu0 %v2671
    %3073 = vmatpush1.bf16.msra.mxu0 %v2670
    %3074 = vmatprep.subr.bf16.mxu0 %v2675
    %3075 = vmatpush1.bf16.msra.mxu0 %v2674
    %3076 = vmatprep.subr.bf16.mxu0 %v2679
    %3077 = vmatpush1.bf16.msra.mxu0 %v2678
    %3078 = vmatprep.subr.bf16.mxu0 %v2683
    %3079 = vmatpush1.bf16.msra.mxu0 %v2682
    %3080 = vmatprep.mubr.bf16.mxu0 %v2610
    %3081 = vmatmul.mubr.bf16.gmra.mrb[0].mxu0 %v2609
    %v3082 = vpop.f32.mrb[0].mxu0
    %v3083 = vadd.f32 0.0, %v3082
    %v3084 = vpop.f32.mrb[0].mxu0
    %v3085 = vadd.f32 0.0, %v3084
    %v3086 = vpop.f32.mrb[0].mxu0
    %v3087 = vadd.f32 0.0, %v3086
    %v3088 = vpop.f32.mrb[0].mxu0
    %v3089 = vadd.f32 0.0, %v3088
    %3090 = vdwg.mxu0
    %3091 = vmatprep.subr.bf16.mxu0 %v2687
    %3092 = vmatpush1.bf16.msra.mxu0 %v2686
    %3093 = vmatprep.subr.bf16.mxu0 %v2691
    %3094 = vmatpush1.bf16.msra.mxu0 %v2690
    %3095 = vmatprep.subr.bf16.mxu0 %v2695
    %3096 = vmatpush1.bf16.msra.mxu0 %v2694
    %3097 = vmatprep.subr.bf16.mxu0 %v2699
    %3098 = vmatpush1.bf16.msra.mxu0 %v2698
    %3099 = vmatprep.subr.bf16.mxu0 %v2703
    %3100 = vmatpush1.bf16.msra.mxu0 %v2702
    %3101 = vmatprep.subr.bf16.mxu0 %v2707
    %3102 = vmatpush1.bf16.msra.mxu0 %v2706
    %3103 = vmatprep.subr.bf16.mxu0 %v2711
    %3104 = vmatpush1.bf16.msra.mxu0 %v2710
    %3105 = vmatprep.subr.bf16.mxu0 %v2715
    %3106 = vmatpush1.bf16.msra.mxu0 %v2714
    %3107 = vmatprep.subr.bf16.mxu0 %v2719
    %3108 = vmatpush1.bf16.msra.mxu0 %v2718
    %3109 = vmatprep.subr.bf16.mxu0 %v2723
    %3110 = vmatpush1.bf16.msra.mxu0 %v2722
    %3111 = vmatprep.subr.bf16.mxu0 %v2727
    %3112 = vmatpush1.bf16.msra.mxu0 %v2726
    %3113 = vmatprep.subr.bf16.mxu0 %v2731
    %3114 = vmatpush1.bf16.msra.mxu0 %v2730
    %3115 = vmatprep.subr.bf16.mxu0 %v2735
    %3116 = vmatpush1.bf16.msra.mxu0 %v2734
    %3117 = vmatprep.subr.bf16.mxu0 %v2739
    %3118 = vmatpush1.bf16.msra.mxu0 %v2738
    %3119 = vmatprep.subr.bf16.mxu0 %v2743
    %3120 = vmatpush1.bf16.msra.mxu0 %v2742
    %3121 = vmatprep.subr.bf16.mxu0 %v2747
    %3122 = vmatpush1.bf16.msra.mxu0 %v2746
    %3123 = vmatprep.mubr.bf16.mxu0 %v2612
    %3124 = vmatmul.mubr.bf16.gmra.mrb[0].mxu0 %v2611
    %v3125 = vpop.f32.mrb[0].mxu0
    %v3126 = vadd.f32 %v3083, %v3125
    %v3127 = vpop.f32.mrb[0].mxu0
    %v3128 = vadd.f32 %v3085, %v3127
    %v3129 = vpop.f32.mrb[0].mxu0
    %v3130 = vadd.f32 %v3087, %v3129
    %v3131 = vpop.f32.mrb[0].mxu0
    %v3132 = vadd.f32 %v3089, %v3131
    %3133 = vdwg.mxu0
    %3134 = vmatprep.subr.bf16.mxu0 %v2751
    %3135 = vmatpush1.bf16.msra.mxu0 %v2750
    %3136 = vmatprep.subr.bf16.mxu0 %v2755
    %3137 = vmatpush1.bf16.msra.mxu0 %v2754
    %3138 = vmatprep.subr.bf16.mxu0 %v2759
    %3139 = vmatpush1.bf16.msra.mxu0 %v2758
    %3140 = vmatprep.subr.bf16.mxu0 %v2763
    %3141 = vmatpush1.bf16.msra.mxu0 %v2762
    %3142 = vmatprep.subr.bf16.mxu0 %v2767
    %3143 = vmatpush1.bf16.msra.mxu0 %v2766
    %3144 = vmatprep.subr.bf16.mxu0 %v2771
    %3145 = vmatpush1.bf16.msra.mxu0 %v2770
    %3146 = vmatprep.subr.bf16.mxu0 %v2775
    %3147 = vmatpush1.bf16.msra.mxu0 %v2774
    %3148 = vmatprep.subr.bf16.mxu0 %v2779
    %3149 = vmatpush1.bf16.msra.mxu0 %v2778
    %3150 = vmatprep.subr.bf16.mxu0 %v2783
    %3151 = vmatpush1.bf16.msra.mxu0 %v2782
    %3152 = vmatprep.subr.bf16.mxu0 %v2787
    %3153 = vmatpush1.bf16.msra.mxu0 %v2786
    %3154 = vmatprep.subr.bf16.mxu0 %v2791
    %3155 = vmatpush1.bf16.msra.mxu0 %v2790
    %3156 = vmatprep.subr.bf16.mxu0 %v2795
    %3157 = vmatpush1.bf16.msra.mxu0 %v2794
    %3158 = vmatprep.subr.bf16.mxu0 %v2799
    %3159 = vmatpush1.bf16.msra.mxu0 %v2798
    %3160 = vmatprep.subr.bf16.mxu0 %v2803
    %3161 = vmatpush1.bf16.msra.mxu0 %v2802
    %3162 = vmatprep.subr.bf16.mxu0 %v2807
    %3163 = vmatpush1.bf16.msra.mxu0 %v2806
    %3164 = vmatprep.subr.bf16.mxu0 %v2811
    %3165 = vmatpush1.bf16.msra.mxu0 %v2810
    %3166 = vmatprep.mubr.bf16.mxu0 %v2614
    %3167 = vmatmul.mubr.bf16.gmra.mrb[0].mxu0 %v2613
    %v3168 = vpop.f32.mrb[0].mxu0
    %v3169 = vadd.f32 %v3126, %v3168
    %v3170 = vpop.f32.mrb[0].mxu0
    %v3171 = vadd.f32 %v3128, %v3170
    %v3172 = vpop.f32.mrb[0].mxu0
    %v3173 = vadd.f32 %v3130, %v3172
    %v3174 = vpop.f32.mrb[0].mxu0
    %v3175 = vadd.f32 %v3132, %v3174
    %3176 = vdwg.mxu0
    %3177 = vmatprep.subr.bf16.mxu0 %v2815
    %3178 = vmatpush1.bf16.msra.mxu0 %v2814
    %3179 = vmatprep.subr.bf16.mxu0 %v2819
    %3180 = vmatpush1.bf16.msra.mxu0 %v2818
    %3181 = vmatprep.subr.bf16.mxu0 %v2823
    %3182 = vmatpush1.bf16.msra.mxu0 %v2822
    %3183 = vmatprep.subr.bf16.mxu0 %v2827
    %3184 = vmatpush1.bf16.msra.mxu0 %v2826
    %3185 = vmatprep.subr.bf16.mxu0 %v2831
    %3186 = vmatpush1.bf16.msra.mxu0 %v2830
    %3187 = vmatprep.subr.bf16.mxu0 %v2835
    %3188 = vmatpush1.bf16.msra.mxu0 %v2834
    %3189 = vmatprep.subr.bf16.mxu0 %v2839
    %3190 = vmatpush1.bf16.msra.mxu0 %v2838
    %3191 = vmatprep.subr.bf16.mxu0 %v2843
    %3192 = vmatpush1.bf16.msra.mxu0 %v2842
    %3193 = vmatprep.subr.bf16.mxu0 %v2847
    %3194 = vmatpush1.bf16.msra.mxu0 %v2846
    %3195 = vmatprep.subr.bf16.mxu0 %v2851
    %3196 = vmatpush1.bf16.msra.mxu0 %v2850
    %3197 = vmatprep.subr.bf16.mxu0 %v2855
    %3198 = vmatpush1.bf16.msra.mxu0 %v2854
    %3199 = vmatprep.subr.bf16.mxu0 %v2859
    %3200 = vmatpush1.bf16.msra.mxu0 %v2858
    %3201 = vmatprep.subr.bf16.mxu0 %v2863
    %3202 = vmatpush1.bf16.msra.mxu0 %v2862
    %3203 = vmatprep.subr.bf16.mxu0 %v2867
    %3204 = vmatpush1.bf16.msra.mxu0 %v2866
    %3205 = vmatprep.subr.bf16.mxu0 %v2871
    %3206 = vmatpush1.bf16.msra.mxu0 %v2870
    %3207 = vmatprep.subr.bf16.mxu0 %v2875
    %3208 = vmatpush1.bf16.msra.mxu0 %v2874
    %3209 = vmatprep.mubr.bf16.mxu0 %v2616
    %3210 = vmatmul.mubr.bf16.gmra.mrb[0].mxu0 %v2615
    %v3211 = vpop.f32.mrb[0].mxu0
    %v3212 = vadd.f32 %v3169, %v3211
    %v3213 = vpop.f32.mrb[0].mxu0
    %v3214 = vadd.f32 %v3171, %v3213
    %v3215 = vpop.f32.mrb[0].mxu0
    %v3216 = vadd.f32 %v3173, %v3215
    %v3217 = vpop.f32.mrb[0].mxu0
    %v3218 = vadd.f32 %v3175, %v3217
    %3219 = vdwg.mxu0
    %s3220 = scalar_lea.vmem [#allocation10], 4
    %v3221 = vld [vmem:[%s3220] ss:$8 sm:$0xf]
    %s3222 = scalar_lea.vmem [#allocation10], 5
    %v3223 = vld [vmem:[%s3222] ss:$8 sm:$0xf]
    %v3224 = vadd.f32 %v3040, %v3044
    %v3225 = vrot.slane %v3224, 4
    %v3226 = vadd.f32 %v3224, %v3225
    %v3227 = vrot.slane %v3226, 2
    %v3228 = vadd.f32 %v3226, %v3227
    %v3229 = vrot.slane %v3228, 1
    %v3230 = vadd.f32 %v3228, %v3229
    %v3231 = vadd.f32 %v3042, %v3046
    %v3232 = vrot.slane %v3231, 4
    %v3233 = vadd.f32 %v3231, %v3232
    %v3234 = vrot.slane %v3233, 2
    %v3235 = vadd.f32 %v3233, %v3234
    %v3236 = vrot.slane %v3235, 1
    %v3237 = vadd.f32 %v3235, %v3236
    %v3238 = vadd.f32 %v3212, %v3216
    %v3239 = vrot.slane %v3238, 4
    %v3240 = vadd.f32 %v3238, %v3239
    %v3241 = vrot.slane %v3240, 2
    %v3242 = vadd.f32 %v3240, %v3241
    %v3243 = vrot.slane %v3242, 1
    %v3244 = vadd.f32 %v3242, %v3243
    %v3245 = vadd.f32 %v3214, %v3218
    %v3246 = vrot.slane %v3245, 4
    %v3247 = vadd.f32 %v3245, %v3246
    %v3248 = vrot.slane %v3247, 2
    %v3249 = vadd.f32 %v3247, %v3248
    %v3250 = vrot.slane %v3249, 1
    %v3251 = vadd.f32 %v3249, %v3250
    %v3252 = vmul.f32 %v3230, %v580
    %v3253 = vmul.f32 %v3237, %v580
    %v3254 = vmul.f32 %v3244, %v580
    %v3255 = vmul.f32 %v3251, %v580
    %v3256 = vmul.f32 %v3040, %v3040
    %v3257 = vmul.f32 %v3042, %v3042
    %v3258 = vmul.f32 %v3212, %v3212
    %v3259 = vmul.f32 %v3214, %v3214
    %v3260 = vmul.f32 %v3044, %v3044
    %v3261 = vmul.f32 %v3046, %v3046
    %v3262 = vmul.f32 %v3216, %v3216
    %v3263 = vmul.f32 %v3218, %v3218
    %v3264 = vadd.f32 %v3256, %v3260
    %v3265 = vrot.slane %v3264, 4
    %v3266 = vadd.f32 %v3264, %v3265
    %v3267 = vrot.slane %v3266, 2
    %v3268 = vadd.f32 %v3266, %v3267
    %v3269 = vrot.slane %v3268, 1
    %v3270 = vadd.f32 %v3268, %v3269
    %v3271 = vadd.f32 %v3257, %v3261
    %v3272 = vrot.slane %v3271, 4
    %v3273 = vadd.f32 %v3271, %v3272
    %v3274 = vrot.slane %v3273, 2
    %v3275 = vadd.f32 %v3273, %v3274
    %v3276 = vrot.slane %v3275, 1
    %v3277 = vadd.f32 %v3275, %v3276
    %v3278 = vadd.f32 %v3258, %v3262
    %v3279 = vrot.slane %v3278, 4
    %v3280 = vadd.f32 %v3278, %v3279
    %v3281 = vrot.slane %v3280, 2
    %v3282 = vadd.f32 %v3280, %v3281
    %v3283 = vrot.slane %v3282, 1
    %v3284 = vadd.f32 %v3282, %v3283
    %v3285 = vadd.f32 %v3259, %v3263
    %v3286 = vrot.slane %v3285, 4
    %v3287 = vadd.f32 %v3285, %v3286
    %v3288 = vrot.slane %v3287, 2
    %v3289 = vadd.f32 %v3287, %v3288
    %v3290 = vrot.slane %v3289, 1
    %v3291 = vadd.f32 %v3289, %v3290
    %v3292 = vmul.f32 %v3270, %v580
    %v3293 = vmul.f32 %v3277, %v580
    %v3294 = vmul.f32 %v3284, %v580
    %v3295 = vmul.f32 %v3291, %v580
    %v3296 = vmul.f32 %v3252, %v3252
    %v3297 = vmul.f32 %v3253, %v3253
    %v3298 = vmul.f32 %v3254, %v3254
    %v3299 = vmul.f32 %v3255, %v3255
    %v3300 = vsub.f32 %v3292, %v3296
    %v3301 = vsub.f32 %v3293, %v3297
    %v3302 = vsub.f32 %v3294, %v3298
    %v3303 = vsub.f32 %v3295, %v3299
    %v3304 = vadd.f32 %v3300, 1e-05
    %v3305 = vadd.f32 %v3301, 1e-05
    %v3306 = vadd.f32 %v3302, 1e-05
    %v3307 = vadd.f32 %v3303, 1e-05
    %v3308 = vrsqrt.pop %v3304
    %v3309 = vrsqrt.pop %v3305
    %v3310 = vrsqrt.pop %v3306
    %v3311 = vrsqrt.pop %v3307
    %v3316 = vcombine.low %v3308, %v3309
    %v3317 = vcombine.low %v3310, %v3311
    %v3319 = vunpack.c.l.s4 1966171168
    %v3320 = vunpack.c.0.s8 %v3319
    %v3321 = vlaneseq
    %v3322 = vshrl.u32 %v3321, 7
    %v3323 = vsub.s32 %v3320, %v3322
    %v3324 = vrot.slane %v3316, %v3323
    %v3326 = vunpack.c.l.s4 1966171168
    %v3327 = vunpack.c.0.s8 %v3326
    %v3328 = vlaneseq
    %v3329 = vshrl.u32 %v3328, 7
    %v3330 = vsub.s32 %v3327, %v3329
    %v3331 = vrot.slane %v3317, %v3330
    %v3332 = vcombine.low %v3324, %v3331
    %v3334 = vunpack.c.l.s4 1966171168
    %v3335 = vunpack.c.0.s8 %v3334
    %v3336 = vlaneseq
    %v3337 = vshrl.u32 %v3336, 7
    %v3338 = vsub.s32 %v3335, %v3337
    %v3339 = vrot.slane %v3332, %v3338
    %v3341 = vmul.f32 %v3221, %v3339
    %v3343 = vlaneseq
    %v3344 = vshrl.u32 %v3343, 7
    %v3345 = vsub.s32 0, %v3344
    %v3346 = vrot.slane %v3341, %v3345
    %v3347 = vlaneseq
    %v3348 = vshrl.u32 %v3347, 7
    %v3349 = vsub.s32 1, %v3348
    %v3350 = vrot.slane %v3341, %v3349
    %v3351 = vlaneseq
    %v3352 = vshrl.u32 %v3351, 7
    %v3353 = vsub.s32 2, %v3352
    %v3354 = vrot.slane %v3341, %v3353
    %v3355 = vlaneseq
    %v3356 = vshrl.u32 %v3355, 7
    %v3357 = vsub.s32 3, %v3356
    %v3358 = vrot.slane %v3341, %v3357
    %v3363 = vmul.f32 %v3252, %v3346
    %v3364 = vmul.f32 %v3253, %v3350
    %v3365 = vmul.f32 %v3254, %v3354
    %v3366 = vmul.f32 %v3255, %v3358
    %v3371 = vcombine.low %v3363, %v3364
    %v3372 = vcombine.low %v3365, %v3366
    %v3374 = vunpack.c.l.s4 1966171168
    %v3375 = vunpack.c.0.s8 %v3374
    %v3376 = vlaneseq
    %v3377 = vshrl.u32 %v3376, 7
    %v3378 = vsub.s32 %v3375, %v3377
    %v3379 = vrot.slane %v3371, %v3378
    %v3381 = vunpack.c.l.s4 1966171168
    %v3382 = vunpack.c.0.s8 %v3381
    %v3383 = vlaneseq
    %v3384 = vshrl.u32 %v3383, 7
    %v3385 = vsub.s32 %v3382, %v3384
    %v3386 = vrot.slane %v3372, %v3385
    %v3387 = vcombine.low %v3379, %v3386
    %v3389 = vunpack.c.l.s4 1966171168
    %v3390 = vunpack.c.0.s8 %v3389
    %v3391 = vlaneseq
    %v3392 = vshrl.u32 %v3391, 7
    %v3393 = vsub.s32 %v3390, %v3392
    %v3394 = vrot.slane %v3387, %v3393
    %v3396 = vsub.f32 %v3223, %v3394
    %v3397 = vmul.f32 %v3040, %v3346
    %v3398 = vmul.f32 %v3042, %v3350
    %v3399 = vmul.f32 %v3212, %v3354
    %v3400 = vmul.f32 %v3214, %v3358
    %v3401 = vmul.f32 %v3044, %v3346
    %v3402 = vmul.f32 %v3046, %v3350
    %v3403 = vmul.f32 %v3216, %v3354
    %v3404 = vmul.f32 %v3218, %v3358
    %v3406 = vlaneseq
    %v3407 = vshrl.u32 %v3406, 7
    %v3408 = vsub.s32 0, %v3407
    %v3409 = vrot.slane %v3396, %v3408
    %v3410 = vlaneseq
    %v3411 = vshrl.u32 %v3410, 7
    %v3412 = vsub.s32 1, %v3411
    %v3413 = vrot.slane %v3396, %v3412
    %v3414 = vlaneseq
    %v3415 = vshrl.u32 %v3414, 7
    %v3416 = vsub.s32 2, %v3415
    %v3417 = vrot.slane %v3396, %v3416
    %v3418 = vlaneseq
    %v3419 = vshrl.u32 %v3418, 7
    %v3420 = vsub.s32 3, %v3419
    %v3421 = vrot.slane %v3396, %v3420
    %v3426 = vadd.f32 %v3397, %v3409
    %v3427 = vadd.f32 %v3398, %v3413
    %v3428 = vadd.f32 %v3399, %v3417
    %v3429 = vadd.f32 %v3400, %v3421
    %v3430 = vadd.f32 %v3401, %v3409
    %v3431 = vadd.f32 %v3402, %v3413
    %v3432 = vadd.f32 %v3403, %v3417
    %v3433 = vadd.f32 %v3404, %v3421
    %v3434 = vmax.f32 %v3426, 0.0
    %v3435 = vmax.f32 %v3427, 0.0
    %v3436 = vmax.f32 %v3428, 0.0
    %v3437 = vmax.f32 %v3429, 0.0
    %v3438 = vmax.f32 %v3430, 0.0
    %v3439 = vmax.f32 %v3431, 0.0
    %v3440 = vmax.f32 %v3432, 0.0
    %v3441 = vmax.f32 %v3433, 0.0
    %v3442 = vpack.c.bf16 %v3438, %v3434
    %v3443 = vpack.c.bf16 %v3439, %v3435
    %v3444 = vpack.c.bf16 %v3440, %v3436
    %v3445 = vpack.c.bf16 %v3441, %v3437
    %v3446 = vld [vmem:[#allocation9] sm:$0xf]
    %v3447 = vld [vmem:[#allocation9 + $0x4] sm:$0xf]
    %v3448 = vld [vmem:[#allocation9 + $0x8] sm:$0xf]
    %v3449 = vld [vmem:[#allocation9 + $0xc] sm:$0xf]
    %v3450 = vld [vmem:[#allocation9 + $0x10] sm:$0xf]
    %v3451 = vld [vmem:[#allocation9 + $0x14] sm:$0xf]
    %v3452 = vld [vmem:[#allocation9 + $0x18] sm:$0xf]
    %v3453 = vld [vmem:[#allocation9 + $0x1c] sm:$0xf]
    %v3454 = vld [vmem:[#allocation9 + $0x20] sm:$0xf]
    %v3455 = vld [vmem:[#allocation9 + $0x24] sm:$0xf]
    %v3456 = vld [vmem:[#allocation9 + $0x28] sm:$0xf]
    %v3457 = vld [vmem:[#allocation9 + $0x2c] sm:$0xf]
    %v3458 = vld [vmem:[#allocation9 + $0x30] sm:$0xf]
    %v3459 = vld [vmem:[#allocation9 + $0x34] sm:$0xf]
    %v3460 = vld [vmem:[#allocation9 + $0x38] sm:$0xf]
    %v3461 = vld [vmem:[#allocation9 + $0x3c] sm:$0xf]
    %v3462 = vld [vmem:[#allocation9 + $0x40] sm:$0xf]
    %v3463 = vld [vmem:[#allocation9 + $0x44] sm:$0xf]
    %v3464 = vld [vmem:[#allocation9 + $0x48] sm:$0xf]
    %v3465 = vld [vmem:[#allocation9 + $0x4c] sm:$0xf]
    %v3466 = vld [vmem:[#allocation9 + $0x50] sm:$0xf]
    %v3467 = vld [vmem:[#allocation9 + $0x54] sm:$0xf]
    %v3468 = vld [vmem:[#allocation9 + $0x58] sm:$0xf]
    %v3469 = vld [vmem:[#allocation9 + $0x5c] sm:$0xf]
    %v3470 = vld [vmem:[#allocation9 + $0x60] sm:$0xf]
    %v3471 = vld [vmem:[#allocation9 + $0x64] sm:$0xf]
    %v3472 = vld [vmem:[#allocation9 + $0x68] sm:$0xf]
    %v3473 = vld [vmem:[#allocation9 + $0x6c] sm:$0xf]
    %v3474 = vld [vmem:[#allocation9 + $0x70] sm:$0xf]
    %v3475 = vld [vmem:[#allocation9 + $0x74] sm:$0xf]
    %v3476 = vld [vmem:[#allocation9 + $0x78] sm:$0xf]
    %v3477 = vld [vmem:[#allocation9 + $0x7c] sm:$0xf]
    %v3478 = vld [vmem:[#allocation9 + $0x80] sm:$0xf]
    %v3479 = vld [vmem:[#allocation9 + $0x84] sm:$0xf]
    %v3480 = vld [vmem:[#allocation9 + $0x88] sm:$0xf]
    %v3481 = vld [vmem:[#allocation9 + $0x8c] sm:$0xf]
    %v3482 = vld [vmem:[#allocation9 + $0x90] sm:$0xf]
    %v3483 = vld [vmem:[#allocation9 + $0x94] sm:$0xf]
    %v3484 = vld [vmem:[#allocation9 + $0x98] sm:$0xf]
    %v3485 = vld [vmem:[#allocation9 + $0x9c] sm:$0xf]
    %v3486 = vld [vmem:[#allocation9 + $0xa0] sm:$0xf]
    %v3487 = vld [vmem:[#allocation9 + $0xa4] sm:$0xf]
    %v3488 = vld [vmem:[#allocation9 + $0xa8] sm:$0xf]
    %v3489 = vld [vmem:[#allocation9 + $0xac] sm:$0xf]
    %v3490 = vld [vmem:[#allocation9 + $0xb0] sm:$0xf]
    %v3491 = vld [vmem:[#allocation9 + $0xb4] sm:$0xf]
    %v3492 = vld [vmem:[#allocation9 + $0xb8] sm:$0xf]
    %v3493 = vld [vmem:[#allocation9 + $0xbc] sm:$0xf]
    %v3494 = vld [vmem:[#allocation9 + $0xc0] sm:$0xf]
    %v3495 = vld [vmem:[#allocation9 + $0xc4] sm:$0xf]
    %v3496 = vld [vmem:[#allocation9 + $0xc8] sm:$0xf]
    %v3497 = vld [vmem:[#allocation9 + $0xcc] sm:$0xf]
    %v3498 = vld [vmem:[#allocation9 + $0xd0] sm:$0xf]
    %v3499 = vld [vmem:[#allocation9 + $0xd4] sm:$0xf]
    %v3500 = vld [vmem:[#allocation9 + $0xd8] sm:$0xf]
    %v3501 = vld [vmem:[#allocation9 + $0xdc] sm:$0xf]
    %v3502 = vld [vmem:[#allocation9 + $0xe0] sm:$0xf]
    %v3503 = vld [vmem:[#allocation9 + $0xe4] sm:$0xf]
    %v3504 = vld [vmem:[#allocation9 + $0xe8] sm:$0xf]
    %v3505 = vld [vmem:[#allocation9 + $0xec] sm:$0xf]
    %v3506 = vld [vmem:[#allocation9 + $0xf0] sm:$0xf]
    %v3507 = vld [vmem:[#allocation9 + $0xf4] sm:$0xf]
    %v3508 = vld [vmem:[#allocation9 + $0xf8] sm:$0xf]
    %v3509 = vld [vmem:[#allocation9 + $0xfc] sm:$0xf]
    %v3510 = vld [vmem:[#allocation10 + $0x6] ss:$0 sm:$0xff]
    %v3575 = vunpack.c.l.b16 %v3446
    %v3576 = vunpack.c.l.b16 %v3447
    %v3577 = vunpack.c.l.b16 %v3448
    %v3578 = vunpack.c.l.b16 %v3449
    %v3579 = vunpack.c.l.b16 %v3450
    %v3580 = vunpack.c.l.b16 %v3451
    %v3581 = vunpack.c.l.b16 %v3452
    %v3582 = vunpack.c.l.b16 %v3453
    %v3583 = vunpack.c.l.b16 %v3454
    %v3584 = vunpack.c.l.b16 %v3455
    %v3585 = vunpack.c.l.b16 %v3456
    %v3586 = vunpack.c.l.b16 %v3457
    %v3587 = vunpack.c.l.b16 %v3458
    %v3588 = vunpack.c.l.b16 %v3459
    %v3589 = vunpack.c.l.b16 %v3460
    %v3590 = vunpack.c.l.b16 %v3461
    %v3591 = vunpack.c.l.b16 %v3462
    %v3592 = vunpack.c.l.b16 %v3463
    %v3593 = vunpack.c.l.b16 %v3464
    %v3594 = vunpack.c.l.b16 %v3465
    %v3595 = vunpack.c.l.b16 %v3466
    %v3596 = vunpack.c.l.b16 %v3467
    %v3597 = vunpack.c.l.b16 %v3468
    %v3598 = vunpack.c.l.b16 %v3469
    %v3599 = vunpack.c.l.b16 %v3470
    %v3600 = vunpack.c.l.b16 %v3471
    %v3601 = vunpack.c.l.b16 %v3472
    %v3602 = vunpack.c.l.b16 %v3473
    %v3603 = vunpack.c.l.b16 %v3474
    %v3604 = vunpack.c.l.b16 %v3475
    %v3605 = vunpack.c.l.b16 %v3476
    %v3606 = vunpack.c.l.b16 %v3477
    %v3607 = vunpack.c.l.b16 %v3478
    %v3608 = vunpack.c.l.b16 %v3479
    %v3609 = vunpack.c.l.b16 %v3480
    %v3610 = vunpack.c.l.b16 %v3481
    %v3611 = vunpack.c.l.b16 %v3482
    %v3612 = vunpack.c.l.b16 %v3483
    %v3613 = vunpack.c.l.b16 %v3484
    %v3614 = vunpack.c.l.b16 %v3485
    %v3615 = vunpack.c.l.b16 %v3486
    %v3616 = vunpack.c.l.b16 %v3487
    %v3617 = vunpack.c.l.b16 %v3488
    %v3618 = vunpack.c.l.b16 %v3489
    %v3619 = vunpack.c.l.b16 %v3490
    %v3620 = vunpack.c.l.b16 %v3491
    %v3621 = vunpack.c.l.b16 %v3492
    %v3622 = vunpack.c.l.b16 %v3493
    %v3623 = vunpack.c.l.b16 %v3494
    %v3624 = vunpack.c.l.b16 %v3495
    %v3625 = vunpack.c.l.b16 %v3496
    %v3626 = vunpack.c.l.b16 %v3497
    %v3627 = vunpack.c.l.b16 %v3498
    %v3628 = vunpack.c.l.b16 %v3499
    %v3629 = vunpack.c.l.b16 %v3500
    %v3630 = vunpack.c.l.b16 %v3501
    %v3631 = vunpack.c.l.b16 %v3502
    %v3632 = vunpack.c.l.b16 %v3503
    %v3633 = vunpack.c.l.b16 %v3504
    %v3634 = vunpack.c.l.b16 %v3505
    %v3635 = vunpack.c.l.b16 %v3506
    %v3636 = vunpack.c.l.b16 %v3507
    %v3637 = vunpack.c.l.b16 %v3508
    %v3638 = vunpack.c.l.b16 %v3509
    %v3639 = vpack.c.b16 %v3576, %v3575
    %v3640 = vpack.c.b16 %v3578, %v3577
    %v3641 = vpack.c.b16 %v3580, %v3579
    %v3642 = vpack.c.b16 %v3582, %v3581
    %v3643 = vpack.c.b16 %v3584, %v3583
    %v3644 = vpack.c.b16 %v3586, %v3585
    %v3645 = vpack.c.b16 %v3588, %v3587
    %v3646 = vpack.c.b16 %v3590, %v3589
    %v3647 = vpack.c.b16 %v3592, %v3591
    %v3648 = vpack.c.b16 %v3594, %v3593
    %v3649 = vpack.c.b16 %v3596, %v3595
    %v3650 = vpack.c.b16 %v3598, %v3597
    %v3651 = vpack.c.b16 %v3600, %v3599
    %v3652 = vpack.c.b16 %v3602, %v3601
    %v3653 = vpack.c.b16 %v3604, %v3603
    %v3654 = vpack.c.b16 %v3606, %v3605
    %v3655 = vpack.c.b16 %v3608, %v3607
    %v3656 = vpack.c.b16 %v3610, %v3609
    %v3657 = vpack.c.b16 %v3612, %v3611
    %v3658 = vpack.c.b16 %v3614, %v3613
    %v3659 = vpack.c.b16 %v3616, %v3615
    %v3660 = vpack.c.b16 %v3618, %v3617
    %v3661 = vpack.c.b16 %v3620, %v3619
    %v3662 = vpack.c.b16 %v3622, %v3621
    %v3663 = vpack.c.b16 %v3624, %v3623
    %v3664 = vpack.c.b16 %v3626, %v3625
    %v3665 = vpack.c.b16 %v3628, %v3627
    %v3666 = vpack.c.b16 %v3630, %v3629
    %v3667 = vpack.c.b16 %v3632, %v3631
    %v3668 = vpack.c.b16 %v3634, %v3633
    %v3669 = vpack.c.b16 %v3636, %v3635
    %v3670 = vpack.c.b16 %v3638, %v3637
    %3703 = vmatprep.subr.bf16.mxu0 0
    %3704 = vmatpush1.bf16.msra.mxu0 %v3639
    %3705 = vmatprep.subr.bf16.mxu0 0
    %3706 = vmatpush1.bf16.msra.mxu0 %v3640
    %3707 = vmatprep.subr.bf16.mxu0 0
    %3708 = vmatpush1.bf16.msra.mxu0 %v3641
    %3709 = vmatprep.subr.bf16.mxu0 0
    %3710 = vmatpush1.bf16.msra.mxu0 %v3642
    %3711 = vmatprep.subr.bf16.mxu0 0
    %3712 = vmatpush1.bf16.msra.mxu0 %v3643
    %3713 = vmatprep.subr.bf16.mxu0 0
    %3714 = vmatpush1.bf16.msra.mxu0 %v3644
    %3715 = vmatprep.subr.bf16.mxu0 0
    %3716 = vmatpush1.bf16.msra.mxu0 %v3645
    %3717 = vmatprep.subr.bf16.mxu0 0
    %3718 = vmatpush1.bf16.msra.mxu0 %v3646
    %3719 = vmatprep.subr.bf16.mxu0 0
    %3720 = vmatpush1.bf16.msra.mxu0 %v3647
    %3721 = vmatprep.subr.bf16.mxu0 0
    %3722 = vmatpush1.bf16.msra.mxu0 %v3648
    %3723 = vmatprep.subr.bf16.mxu0 0
    %3724 = vmatpush1.bf16.msra.mxu0 %v3649
    %3725 = vmatprep.subr.bf16.mxu0 0
    %3726 = vmatpush1.bf16.msra.mxu0 %v3650
    %3727 = vmatprep.subr.bf16.mxu0 0
    %3728 = vmatpush1.bf16.msra.mxu0 %v3651
    %3729 = vmatprep.subr.bf16.mxu0 0
    %3730 = vmatpush1.bf16.msra.mxu0 %v3652
    %3731 = vmatprep.subr.bf16.mxu0 0
    %3732 = vmatpush1.bf16.msra.mxu0 %v3653
    %3733 = vmatprep.subr.bf16.mxu0 0
    %3734 = vmatpush1.bf16.msra.mxu0 %v3654
    %3735 = vmatprep.mubr.bf16.mxu0 %v3443
    %3736 = vmatmul.mubr.bf16.gmra.mrb[0].mxu0 %v3442
    %v3737 = vpop.f32.mrb[0].mxu0
    %v3738 = vadd.f32 %v3510, %v3737
    %v3739 = vpop.f32.mrb[0].mxu0
    %v3740 = vpop.f32.mrb[0].mxu0
    %v3741 = vadd.f32 %v3510, %v3740
    %v3742 = vpop.f32.mrb[0].mxu0
    %3743 = vdwg.mxu0
    %3744 = vmatprep.subr.bf16.mxu0 0
    %3745 = vmatpush1.bf16.msra.mxu0 %v3655
    %3746 = vmatprep.subr.bf16.mxu0 0
    %3747 = vmatpush1.bf16.msra.mxu0 %v3656
    %3748 = vmatprep.subr.bf16.mxu0 0
    %3749 = vmatpush1.bf16.msra.mxu0 %v3657
    %3750 = vmatprep.subr.bf16.mxu0 0
    %3751 = vmatpush1.bf16.msra.mxu0 %v3658
    %3752 = vmatprep.subr.bf16.mxu0 0
    %3753 = vmatpush1.bf16.msra.mxu0 %v3659
    %3754 = vmatprep.subr.bf16.mxu0 0
    %3755 = vmatpush1.bf16.msra.mxu0 %v3660
    %3756 = vmatprep.subr.bf16.mxu0 0
    %3757 = vmatpush1.bf16.msra.mxu0 %v3661
    %3758 = vmatprep.subr.bf16.mxu0 0
    %3759 = vmatpush1.bf16.msra.mxu0 %v3662
    %3760 = vmatprep.subr.bf16.mxu0 0
    %3761 = vmatpush1.bf16.msra.mxu0 %v3663
    %3762 = vmatprep.subr.bf16.mxu0 0
    %3763 = vmatpush1.bf16.msra.mxu0 %v3664
    %3764 = vmatprep.subr.bf16.mxu0 0
    %3765 = vmatpush1.bf16.msra.mxu0 %v3665
    %3766 = vmatprep.subr.bf16.mxu0 0
    %3767 = vmatpush1.bf16.msra.mxu0 %v3666
    %3768 = vmatprep.subr.bf16.mxu0 0
    %3769 = vmatpush1.bf16.msra.mxu0 %v3667
    %3770 = vmatprep.subr.bf16.mxu0 0
    %3771 = vmatpush1.bf16.msra.mxu0 %v3668
    %3772 = vmatprep.subr.bf16.mxu0 0
    %3773 = vmatpush1.bf16.msra.mxu0 %v3669
    %3774 = vmatprep.subr.bf16.mxu0 0
    %3775 = vmatpush1.bf16.msra.mxu0 %v3670
    %3776 = vmatprep.mubr.bf16.mxu0 %v3445
    %3777 = vmatmul.mubr.bf16.gmra.mrb[0].mxu0 %v3444
    %v3778 = vpop.f32.mrb[0].mxu0
    %v3779 = vadd.f32 %v3738, %v3778
    %v3780 = vpop.f32.mrb[0].mxu0
    %v3781 = vpop.f32.mrb[0].mxu0
    %v3782 = vadd.f32 %v3741, %v3781
    %v3783 = vpop.f32.mrb[0].mxu0
    %3784 = vdwg.mxu0
    %v3785 = vmax.f32 %v3779, 0.0
    %v3786 = vmax.f32 %v3782, 0.0
    %v3787 = vld [vmem:[%s5] sm:$0xff]
    %v3788 = vld [vmem:[%s5 + $0x8] sm:$0xff]
    %v3789 = vld [vmem:[%s5 + $0x10] sm:$0xff]
    %v3790 = vld [vmem:[%s5 + $0x18] sm:$0xff]
    %v3791 = vld [vmem:[%s5 + $0x20] sm:$0xff]
    %v3792 = vld [vmem:[%s5 + $0x28] sm:$0xff]
    %v3793 = vld [vmem:[%s5 + $0x30] sm:$0xff]
    %v3794 = vld [vmem:[%s5 + $0x38] sm:$0xff]
    %v3795 = vld [vmem:[%s5 + $0x40] sm:$0xff]
    %v3796 = vld [vmem:[%s5 + $0x48] sm:$0xff]
    %v3797 = vld [vmem:[%s5 + $0x50] sm:$0xff]
    %v3798 = vld [vmem:[%s5 + $0x58] sm:$0xff]
    %v3799 = vld [vmem:[%s5 + $0x60] sm:$0xff]
    %v3800 = vld [vmem:[%s5 + $0x68] sm:$0xff]
    %v3801 = vld [vmem:[%s5 + $0x70] sm:$0xff]
    %v3802 = vld [vmem:[%s5 + $0x78] sm:$0xff]
    %v3803 = vld [vmem:[#allocation10 + $0x7] ss:$0 sm:$0xff]
    %3804 = vmatprep.subr.mxu0 0.0
    %3805 = vmatpush1.msra.mxu0 %v3787
    %3806 = vmatprep.subr.mxu0 0.0
    %3807 = vmatpush1.msra.mxu0 %v3788
    %3808 = vmatprep.subr.mxu0 0.0
    %3809 = vmatpush1.msra.mxu0 %v3789
    %3810 = vmatprep.subr.mxu0 0.0
    %3811 = vmatpush1.msra.mxu0 %v3790
    %3812 = vmatprep.subr.mxu0 0.0
    %3813 = vmatpush1.msra.mxu0 %v3791
    %3814 = vmatprep.subr.mxu0 0.0
    %3815 = vmatpush1.msra.mxu0 %v3792
    %3816 = vmatprep.subr.mxu0 0.0
    %3817 = vmatpush1.msra.mxu0 %v3793
    %3818 = vmatprep.subr.mxu0 0.0
    %3819 = vmatpush1.msra.mxu0 %v3794
    %3820 = vmatprep.subr.mxu0 0.0
    %3821 = vmatpush1.msra.mxu0 %v3795
    %3822 = vmatprep.subr.mxu0 0.0
    %3823 = vmatpush1.msra.mxu0 %v3796
    %3824 = vmatprep.subr.mxu0 0.0
    %3825 = vmatpush1.msra.mxu0 %v3797
    %3826 = vmatprep.subr.mxu0 0.0
    %3827 = vmatpush1.msra.mxu0 %v3798
    %3828 = vmatprep.subr.mxu0 0.0
    %3829 = vmatpush1.msra.mxu0 %v3799
    %3830 = vmatprep.subr.mxu0 0.0
    %3831 = vmatpush1.msra.mxu0 %v3800
    %3832 = vmatprep.subr.mxu0 0.0
    %3833 = vmatpush1.msra.mxu0 %v3801
    %3834 = vmatprep.subr.mxu0 0.0
    %3835 = vmatpush1.msra.mxu0 %v3802
    %3836 = vmatprep.subr.mxu0 0.0
    %3837 = vmatpush1.msra.mxu0 0.0
    %3838 = vmatprep.subr.mxu0 0.0
    %3839 = vmatpush1.msra.mxu0 0.0
    %3840 = vmatprep.subr.mxu0 0.0
    %3841 = vmatpush1.msra.mxu0 0.0
    %3842 = vmatprep.subr.mxu0 0.0
    %3843 = vmatpush1.msra.mxu0 0.0
    %3844 = vmatprep.subr.mxu0 0.0
    %3845 = vmatpush1.msra.mxu0 0.0
    %3846 = vmatprep.subr.mxu0 0.0
    %3847 = vmatpush1.msra.mxu0 0.0
    %3848 = vmatprep.subr.mxu0 0.0
    %3849 = vmatpush1.msra.mxu0 0.0
    %3850 = vmatprep.subr.mxu0 0.0
    %3851 = vmatpush1.msra.mxu0 0.0
    %3852 = vmatprep.subr.mxu0 0.0
    %3853 = vmatpush1.msra.mxu0 0.0
    %3854 = vmatprep.subr.mxu0 0.0
    %3855 = vmatpush1.msra.mxu0 0.0
    %3856 = vmatprep.subr.mxu0 0.0
    %3857 = vmatpush1.msra.mxu0 0.0
    %3858 = vmatprep.subr.mxu0 0.0
    %3859 = vmatpush1.msra.mxu0 0.0
    %3860 = vmatprep.subr.mxu0 0.0
    %3861 = vmatpush1.msra.mxu0 0.0
    %3862 = vmatprep.subr.mxu0 0.0
    %3863 = vmatpush1.msra.mxu0 0.0
    %3864 = vmatprep.subr.mxu0 0.0
    %3865 = vmatpush1.msra.mxu0 0.0
    %3866 = vmatprep.subr.mxu0 0.0
    %3867 = vmatpush1.msra.mxu0 0.0
    %3868 = vmatprep.mubr.f32.mxu0 0.0
    %3869 = vmatmul.mubr.f32.gmra.mrb[0].mxu0 %v3785
    %v3870 = vpop.f32.mrb[0].mxu0
    %v3871 = vadd.f32 %v3803, %v3870
    %v3872 = vpop.f32.mrb[0].mxu0
    %3873 = vmatprep.mubr.f32.mxu0 0.0
    %3874 = vmatmul.mubr.f32.gmra.mrb[0].mxu0 %v3786
    %v3875 = vpop.f32.mrb[0].mxu0
    %v3876 = vadd.f32 %v3803, %v3875
    %v3877 = vpop.f32.mrb[0].mxu0
    %3878 = vdwg.mxu0
    %vm3879 = vcmask 15360
    %3880 = vst.msk [vmem:[%s7] sm:$0xff] %vm3879, %v3871
    %3881 = vst.msk [vmem:[%s7 + $0x8] sm:$0xff] %vm3879, %v3876
    // Predicated region
    $region38: #{tpu_custom_call.1} parent=1 // pred_check
      _
    $region39: #{tpu_custom_call.1} parent=1 // pred_check_branch
      %3883 = sbr.rel (0) target = $region41
    $region40: #{tpu_custom_call.1} parent=1 // pred_region
      _
    $region41: #{tpu_custom_call.1} parent=1 // pred_fallthru
      _
    // Predicated region
    $region42: #{tpu_custom_call.1} parent=1 // pred_check
      _
    $region43: #{tpu_custom_call.1} parent=1 // pred_check_branch
      %3885 = sbr.rel (0) target = $region45
    $region44: #{tpu_custom_call.1} parent=1 // pred_region
      _
    $region45: #{tpu_custom_call.1} parent=1 // pred_fallthru
      _
    %3886 = vsyncpa [#allocation6], 1
    %3887 = vsyncpa [#allocation8], 1
    %3888 = vsyncpa [#allocation11], 1
  %3889 = vsyncmov [#allocation4]
  %s3890 = vpop.sfrf %3889
  %p3891 = scmp.eq.s32.totalorder %s3890, 0
  %p3892 = pneg %p3891
  %3894 = shalt.err (%p3892)
  %s3895 = scalar_lea.sflag [#allocation4], 1
  %3896 = vsyncmov %s3895
  %s3897 = vpop.sfrf %3896
  %p3898 = scmp.eq.s32.totalorder %s3897, 0
  %p3899 = pneg %p3898
  %3901 = shalt.err (%p3899)

</llo_original>
